<compile_context>
chip_gen: v7x
topology: tpu7x:2x2x1
jax: 0.10.0
libtpu: 0.0.40
codegen_flags: <defaults>
</compile_context>

<pallas_src>
import functools

import jax
import jax.numpy as jnp
from jax.experimental import pallas as pl
from jax.experimental.pallas import tpu as pltpu

BN_EPS = 1e-5


# ----------------------------------------------------------------------------
# Fused Bottleneck kernel: one grid step == one image.
# ----------------------------------------------------------------------------
def _bottleneck_kernel(x_ref, mask_ref, w1_ref, b1_ref, w2_ref, b2_ref,
                       w3_ref, b3_ref, wd_ref, bd_ref, out_ref, h1_ref,
                       *, stride, hh, ho, wo):
    """Shapes per grid step (s = stride, P = s*s*hh):

      x_ref    : (1, P, Whp, Cin) bf16  padded + phase-split input image
      mask_ref : (P*Whp, 1)       f32   1.0 on real pixels, 0.0 on padding
      w1_ref   : (Cin, C)   bf16        conv1 weight, BN1 scale folded in
      w2_ref   : (9, C, C)  bf16        conv2 taps (dh*3+dw), BN2 scale folded
      w3_ref   : (C, C4)    bf16        conv3 weight, BN3 scale folded in
      wd_ref   : (Cin, C4)  bf16        downsample weight, BNd scale folded in
      b*_ref   : (1, C|C4)  f32         folded BN shifts
      out_ref  : (1, Ho*Wo, C4) f32
      h1_ref   : VMEM scratch (P, Whp, C) f32 — conv1 output (padded layout)
    """
    s = stride
    p_rows, whp, cin = x_ref.shape[1], x_ref.shape[2], x_ref.shape[3]
    c = w1_ref.shape[1]
    c4 = wd_ref.shape[1]

    # ---- conv1 (1x1) + bn1 + relu over every (padded) pixel ----------------
    x_img = x_ref[0]                                    # (P, Whp, Cin) bf16
    x_flat = x_img.reshape(p_rows * whp, cin)           # free: Whp % 16 == 0
    h1 = jnp.dot(x_flat, w1_ref[...], preferred_element_type=jnp.float32)
    # mask zeroes the conv2 zero-padding ring (relu(shift) != 0 there otherwise)
    h1 = jnp.maximum(h1 + b1_ref[...], 0.0) * mask_ref[...]
    h1_ref[...] = h1.reshape(p_rows, whp, c)            # stays in VMEM

    # ---- conv2 (3x3, stride) + bn2 + relu: 9 tap matmuls off the scratch ----
    acc2 = jnp.zeros((ho * wo, c), jnp.float32)
    for dh in range(3):
        for dw in range(3):
            ph = (dh % s) * s + (dw % s)                # phase plane
            a_off = dh // s                             # row offset in plane
            b_off = dw // s                             # col offset in plane
            tap = h1_ref[pl.ds(ph * hh + a_off, ho), pl.ds(b_off, wo), :]
            tap = tap.reshape(ho * wo, c).astype(jnp.bfloat16)
            acc2 = acc2 + jnp.dot(tap, w2_ref[dh * 3 + dw],
                                  preferred_element_type=jnp.float32)
    h2 = jnp.maximum(acc2 + b2_ref[...], 0.0).astype(jnp.bfloat16)

    # ---- conv3 (1x1) + bn3 ---------------------------------------------------
    y = jnp.dot(h2, w3_ref[...], preferred_element_type=jnp.float32)
    y = y + b3_ref[...]

    # ---- downsample (1x1, stride) + bn_d, read from the resident x tile ------
    # Computed over whole phase-plane rows so all reshapes are layout-free
    # (Whp % 16 == 0); the unused columns are sliced away after the matmul.
    ph_d = (1 % s) * s + (1 % s)
    a_d = 1 // s
    b_d = 1 // s
    xs = x_ref[0, pl.ds(ph_d * hh + a_d, ho), :, :]     # (Ho, Whp, Cin) bf16
    xs = xs.reshape(ho * whp, cin)                      # free: Whp % 16 == 0
    res = jnp.dot(xs, wd_ref[...], preferred_element_type=jnp.float32)
    res = res.reshape(ho, whp, c4)[:, b_d:b_d + wo, :]  # drop unused columns
    res = res.reshape(ho * wo, c4) + bd_ref[...]

    # ---- residual add + relu --------------------------------------------------
    out_ref[...] = jnp.maximum(y + res, 0.0)[None, :, :].astype(out_ref.dtype)


# ----------------------------------------------------------------------------
# Wrapper glue (plain JAX): layout packing, BN folding, pallas_call
# ----------------------------------------------------------------------------
def _fold_bn(gamma, beta, mean, var, eps=BN_EPS):
    scale = gamma / jnp.sqrt(var + eps)
    shift = beta - mean * scale
    return scale, shift


def _phase_split(img, stride, hh, whp):
    """(N, hh*s, whp*s, Ch) padded image -> (N, s*s*hh, whp, Ch).

    Row (r*s + t)*hh + a, column b holds padded pixel (s*a + r, s*b + t).
    """
    n, hs, ws, ch = img.shape
    assert hs == hh * stride and ws == whp * stride
    x = img.reshape(n, hh, stride, whp, stride, ch)
    x = jnp.transpose(x, (0, 2, 4, 1, 3, 5))            # (N, r, t, a, b, ch)
    return x.reshape(n, stride * stride * hh, whp, ch)


def bottleneck_forward(x_nchw, params, stride):
    s = int(stride)
    x = jnp.transpose(x_nchw, (0, 2, 3, 1)).astype(jnp.float32)   # NCHW -> NHWC
    n, h, w, cin = x.shape
    c = params["conv1_w"].shape[0]
    c4 = params["conv3_w"].shape[0]
    ho = (h + 2 - 3) // s + 1
    wo = (w + 2 - 3) // s + 1

    # Zero-pad (conv2's padding ring + alignment) and phase-split the input.
    hh = -(-(h + 2) // s)                       # rows per phase plane
    wh = -(-(w + 2) // s)
    whp = -(-wh // 16) * 16                     # align per-phase width for bf16
    hs, ws = hh * s, whp * s
    pads = ((0, 0), (1, 1 + hs - (h + 2)), (1, 1 + ws - (w + 2)), (0, 0))
    xps = _phase_split(jnp.pad(x, pads), s, hh, whp)          # (N, P, Whp, Cin)
    xps = xps.astype(jnp.bfloat16)      # kernel feeds bf16 to the MXU anyway
    p_rows = s * s * hh

    ones = jnp.pad(jnp.ones((1, h, w, 1), jnp.float32), pads)
    mask = _phase_split(ones, s, hh, whp).reshape(p_rows * whp, 1)

    # Fold eval-mode BN scale into bf16 weights; kernel only adds the shift.
    sc1, sh1 = _fold_bn(*params["bn1"])
    sc2, sh2 = _fold_bn(*params["bn2"])
    sc3, sh3 = _fold_bn(*params["bn3"])
    scd, shd = _fold_bn(*params["bnd"])

    w1 = (params["conv1_w"][:, :, 0, 0] * sc1[:, None]).T.astype(jnp.bfloat16)
    w2 = (jnp.transpose(params["conv2_w"], (2, 3, 1, 0)) * sc2)
    w2 = w2.reshape(9, c, c).astype(jnp.bfloat16)
    w3 = (params["conv3_w"][:, :, 0, 0] * sc3[:, None]).T.astype(jnp.bfloat16)
    wd = (params["down_w"][:, :, 0, 0] * scd[:, None]).T.astype(jnp.bfloat16)
    b1 = sh1[None, :].astype(jnp.float32)
    b2 = sh2[None, :].astype(jnp.float32)
    b3 = sh3[None, :].astype(jnp.float32)
    bd = shd[None, :].astype(jnp.float32)

    kernel = functools.partial(_bottleneck_kernel, stride=s, hh=hh, ho=ho, wo=wo)

    out_flat = pl.pallas_call(
        kernel,
        out_shape=jax.ShapeDtypeStruct((n, ho * wo, c4), jnp.float32),
        grid_spec=pltpu.PrefetchScalarGridSpec(
            num_scalar_prefetch=0,
            grid=(n,),
            in_specs=[
                pl.BlockSpec((1, p_rows, whp, cin), lambda i: (i, 0, 0, 0)),
                pl.BlockSpec((p_rows * whp, 1), lambda i: (0, 0)),
                pl.BlockSpec((cin, c), lambda i: (0, 0)),
                pl.BlockSpec((1, c), lambda i: (0, 0)),
                pl.BlockSpec((9, c, c), lambda i: (0, 0, 0)),
                pl.BlockSpec((1, c), lambda i: (0, 0)),
                pl.BlockSpec((c, c4), lambda i: (0, 0)),
                pl.BlockSpec((1, c4), lambda i: (0, 0)),
                pl.BlockSpec((cin, c4), lambda i: (0, 0)),
                pl.BlockSpec((1, c4), lambda i: (0, 0)),
            ],
            out_specs=pl.BlockSpec((1, ho * wo, c4), lambda i: (i, 0, 0)),
            scratch_shapes=[pltpu.VMEM((p_rows, whp, c), jnp.float32)],
        ),
        compiler_params=pltpu.CompilerParams(
            dimension_semantics=("parallel",)),
    )(xps, mask, w1, b1, w2, b2, w3, b3, wd, bd)

    out = out_flat.reshape(n, ho, wo, c4)
    return jnp.transpose(out, (0, 3, 1, 2))              # NHWC -> NCHW


# ----------------------------------------------------------------------------
# Pure-JAX reference (mirrors the PyTorch Bottleneck in eval mode)
# ----------------------------------------------------------------------------
def reference_forward(x, params, stride, eps=BN_EPS):
    def conv(x, w, s, pad):
        return jax.lax.conv_general_dilated(
            x, w, (s, s), [(pad, pad), (pad, pad)],
            dimension_numbers=("NCHW", "OIHW", "NCHW"),
            precision=jax.lax.Precision.HIGHEST)

    def bn(x, p):
        g, b, m, v = p
        sc = (g / jnp.sqrt(v + eps))[None, :, None, None]
        return (x - m[None, :, None, None]) * sc + b[None, :, None, None]

    out = jax.nn.relu(bn(conv(x, params["conv1_w"], 1, 0), params["bn1"]))
    out = jax.nn.relu(bn(conv(out, params["conv2_w"], stride, 1), params["bn2"]))
    out = bn(conv(out, params["conv3_w"], 1, 0), params["bn3"])
    res = bn(conv(x, params["down_w"], stride, 0), params["bnd"])
    return jax.nn.relu(out + res)


# ----------------------------------------------------------------------------
# Deterministic parameter construction
# ----------------------------------------------------------------------------
def make_params(key, cin, channels):
    c, c4 = channels, channels * 4
    ks = jax.random.split(key, 8)

    def bn_params(k, width):
        k1, k2, k3, k4 = jax.random.split(k, 4)
        gamma = 1.0 + 0.1 * jax.random.normal(k1, (width,), jnp.float32)
        beta = 0.1 * jax.random.normal(k2, (width,), jnp.float32)
        mean = 0.1 * jax.random.normal(k3, (width,), jnp.float32)
        var = jnp.abs(jax.random.normal(k4, (width,), jnp.float32)) + 0.5
        return (gamma, beta, mean, var)

    return {
        "conv1_w": 0.1 * jax.random.normal(ks[0], (c, cin, 1, 1), jnp.float32),
        "conv2_w": 0.1 * jax.random.normal(ks[1], (c, c, 3, 3), jnp.float32),
        "conv3_w": 0.1 * jax.random.normal(ks[2], (c4, c, 1, 1), jnp.float32),
        "down_w": 0.1 * jax.random.normal(ks[3], (c4, cin, 1, 1), jnp.float32),
        "bn1": bn_params(ks[4], c),
        "bn2": bn_params(ks[5], c),
        "bn3": bn_params(ks[6], c4),
        "bnd": bn_params(ks[7], c4),
    }


if __name__ == "__main__":
    key = jax.random.PRNGKey(0)
    kx, kp = jax.random.split(key)

    N, CIN, H, W = 2, 4, 16, 16
    CHANNELS, STRIDE = 8, 2          # out channels = 4*CHANNELS = 32; downsample active

    x = jax.random.normal(kx, (N, CIN, H, W), jnp.float32)
    params = make_params(kp, CIN, CHANNELS)

    run = jax.jit(bottleneck_forward, static_argnums=(2,))
    out = jax.block_until_ready(run(x, params, STRIDE))

    ref = jax.block_until_ready(
        jax.jit(reference_forward, static_argnums=(2,))(x, params, STRIDE))

    assert out.shape == ref.shape == (N, 4 * CHANNELS, H // STRIDE, W // STRIDE)
    err = float(jnp.max(jnp.abs(out - ref)))
    assert jnp.allclose(out, ref, atol=1e-2, rtol=1e-2), err

    print("KERNEL_OK")
</pallas_src>

<mosaic_0001>
module attributes {stable_mosaic.version = 11 : i64} {
  func.func @_bottleneck_kernel(%arg0: i32, %arg1: memref<1x36x16x4xbf16, #tpu.memory_space<vmem>>, %arg2: memref<576x1xf32, #tpu.memory_space<vmem>>, %arg3: memref<4x8xbf16, #tpu.memory_space<vmem>>, %arg4: memref<1x8xf32, #tpu.memory_space<vmem>>, %arg5: memref<9x8x8xbf16, #tpu.memory_space<vmem>>, %arg6: memref<1x8xf32, #tpu.memory_space<vmem>>, %arg7: memref<8x32xbf16, #tpu.memory_space<vmem>>, %arg8: memref<1x32xf32, #tpu.memory_space<vmem>>, %arg9: memref<4x32xbf16, #tpu.memory_space<vmem>>, %arg10: memref<1x32xf32, #tpu.memory_space<vmem>>, %arg11: memref<1x64x32xf32, #tpu.memory_space<vmem>>, %arg12: memref<36x16x8xf32, #tpu.memory_space<vmem>>) attributes {dimension_semantics = [#tpu.dimension_semantics<parallel>], iteration_bounds = array<i64: 2>, scalar_prefetch = 0 : i64, scratch_operands = 1 : i64, tpu.core_type = #tpu.core_type<tc>, window_params = [{transform_indices = @transform_0, window_bounds = array<i64: 1, 36, 16, 4>}, {pipeline_mode = #tpu.pipeline_mode<synchronous>, transform_indices = @transform_1, window_bounds = array<i64: 576, 1>}, {pipeline_mode = #tpu.pipeline_mode<synchronous>, transform_indices = @transform_2, window_bounds = array<i64: 4, 8>}, {pipeline_mode = #tpu.pipeline_mode<synchronous>, transform_indices = @transform_3, window_bounds = array<i64: 1, 8>}, {pipeline_mode = #tpu.pipeline_mode<synchronous>, transform_indices = @transform_4, window_bounds = array<i64: 9, 8, 8>}, {pipeline_mode = #tpu.pipeline_mode<synchronous>, transform_indices = @transform_5, window_bounds = array<i64: 1, 8>}, {pipeline_mode = #tpu.pipeline_mode<synchronous>, transform_indices = @transform_6, window_bounds = array<i64: 8, 32>}, {pipeline_mode = #tpu.pipeline_mode<synchronous>, transform_indices = @transform_7, window_bounds = array<i64: 1, 32>}, {pipeline_mode = #tpu.pipeline_mode<synchronous>, transform_indices = @transform_8, window_bounds = array<i64: 4, 32>}, {pipeline_mode = #tpu.pipeline_mode<synchronous>, transform_indices = @transform_9, window_bounds = array<i64: 1, 32>}, {transform_indices = @transform_10, window_bounds = array<i64: 1, 64, 32>}]} {
    %c0 = arith.constant 0 : index
    %c0_0 = arith.constant 0 : index
    %c0_1 = arith.constant 0 : index
    %c0_2 = arith.constant 0 : index
    %0 = vector.load %arg1[%c0, %c0_0, %c0_1, %c0_2] : memref<1x36x16x4xbf16, #tpu.memory_space<vmem>>, vector<1x36x16x4xbf16>
    %1 = vector.shape_cast %0 : vector<1x36x16x4xbf16> to vector<36x16x4xbf16>
    %2 = vector.shape_cast %1 : vector<36x16x4xbf16> to vector<576x4xbf16>
    %c0_3 = arith.constant 0 : index
    %c0_4 = arith.constant 0 : index
    %3 = vector.load %arg3[%c0_3, %c0_4] : memref<4x8xbf16, #tpu.memory_space<vmem>>, vector<4x8xbf16>
    %cst = arith.constant dense<0.000000e+00> : vector<576x8xf32>
    %4 = tpu.matmul %2, %3, %cst {dimension_numbers = #tpu.dot_dimension_numbers<[1], [0], [0], [1], [0, 0, 1, 1], [], []>} : vector<576x4xbf16>, vector<4x8xbf16>, vector<576x8xf32> -> vector<576x8xf32>
    %c0_5 = arith.constant 0 : index
    %c0_6 = arith.constant 0 : index
    %5 = vector.load %arg4[%c0_5, %c0_6] : memref<1x8xf32, #tpu.memory_space<vmem>>, vector<1x8xf32>
    %6 = vector.broadcast %5 : vector<1x8xf32> to vector<576x8xf32>
    %7 = arith.addf %4, %6 : vector<576x8xf32>
    %cst_7 = arith.constant 0.000000e+00 : f32
    %8 = vector.broadcast %cst_7 : f32 to vector<576x8xf32>
    %9 = arith.maximumf %7, %8 : vector<576x8xf32>
    %c0_8 = arith.constant 0 : index
    %c0_9 = arith.constant 0 : index
    %10 = vector.load %arg2[%c0_8, %c0_9] : memref<576x1xf32, #tpu.memory_space<vmem>>, vector<576x1xf32>
    %11 = vector.broadcast %10 : vector<576x1xf32> to vector<576x8xf32>
    %12 = arith.mulf %9, %11 : vector<576x8xf32>
    %13 = vector.shape_cast %12 : vector<576x8xf32> to vector<36x16x8xf32>
    %c0_10 = arith.constant 0 : index
    %c0_11 = arith.constant 0 : index
    %c0_12 = arith.constant 0 : index
    %14 = vector.load %arg12[%c0_10, %c0_11, %c0_12] : memref<36x16x8xf32, #tpu.memory_space<vmem>>, vector<36x16x8xf32>
    tpu.vector_store %arg12[%c0_10, %c0_11, %c0_12], %13 {strides = array<i32>} : memref<36x16x8xf32, #tpu.memory_space<vmem>>, vector<36x16x8xf32>,
    %cst_13 = arith.constant 0.000000e+00 : f32
    %15 = vector.broadcast %cst_13 : f32 to vector<64x8xf32>
    %c0_14 = arith.constant 0 : index
    %c0_15 = arith.constant 0 : index
    %c0_16 = arith.constant 0 : index
    %16 = vector.load %arg12[%c0_14, %c0_15, %c0_16] : memref<36x16x8xf32, #tpu.memory_space<vmem>>, vector<8x8x8xf32>
    %17 = vector.shape_cast %16 : vector<8x8x8xf32> to vector<64x8xf32>
    %18 = arith.truncf %17 : vector<64x8xf32> to vector<64x8xbf16>
    %c0_17 = arith.constant 0 : index
    %c0_18 = arith.constant 0 : index
    %c0_19 = arith.constant 0 : index
    %19 = vector.load %arg5[%c0_17, %c0_18, %c0_19] : memref<9x8x8xbf16, #tpu.memory_space<vmem>>, vector<1x8x8xbf16>
    %20 = vector.shape_cast %19 : vector<1x8x8xbf16> to vector<8x8xbf16>
    %cst_20 = arith.constant dense<0.000000e+00> : vector<64x8xf32>
    %21 = tpu.matmul %18, %20, %cst_20 {dimension_numbers = #tpu.dot_dimension_numbers<[1], [0], [0], [1], [0, 0, 1, 1], [], []>} : vector<64x8xbf16>, vector<8x8xbf16>, vector<64x8xf32> -> vector<64x8xf32>
    %22 = arith.addf %15, %21 : vector<64x8xf32>
    %c9 = arith.constant 9 : index
    %c0_21 = arith.constant 0 : index
    %c0_22 = arith.constant 0 : index
    %23 = vector.load %arg12[%c9, %c0_21, %c0_22] : memref<36x16x8xf32, #tpu.memory_space<vmem>>, vector<8x8x8xf32>
    %24 = vector.shape_cast %23 : vector<8x8x8xf32> to vector<64x8xf32>
    %25 = arith.truncf %24 : vector<64x8xf32> to vector<64x8xbf16>
    %c1 = arith.constant 1 : index
    %c0_23 = arith.constant 0 : index
    %c0_24 = arith.constant 0 : index
    %26 = vector.load %arg5[%c1, %c0_23, %c0_24] : memref<9x8x8xbf16, #tpu.memory_space<vmem>>, vector<1x8x8xbf16>
    %27 = vector.shape_cast %26 : vector<1x8x8xbf16> to vector<8x8xbf16>
    %cst_25 = arith.constant dense<0.000000e+00> : vector<64x8xf32>
    %28 = tpu.matmul %25, %27, %cst_25 {dimension_numbers = #tpu.dot_dimension_numbers<[1], [0], [0], [1], [0, 0, 1, 1], [], []>} : vector<64x8xbf16>, vector<8x8xbf16>, vector<64x8xf32> -> vector<64x8xf32>
    %29 = arith.addf %22, %28 : vector<64x8xf32>
    %c0_26 = arith.constant 0 : index
    %c1_27 = arith.constant 1 : index
    %c0_28 = arith.constant 0 : index
    %30 = vector.load %arg12[%c0_26, %c1_27, %c0_28] : memref<36x16x8xf32, #tpu.memory_space<vmem>>, vector<8x8x8xf32>
    %31 = vector.shape_cast %30 : vector<8x8x8xf32> to vector<64x8xf32>
    %32 = arith.truncf %31 : vector<64x8xf32> to vector<64x8xbf16>
    %c2 = arith.constant 2 : index
    %c0_29 = arith.constant 0 : index
    %c0_30 = arith.constant 0 : index
    %33 = vector.load %arg5[%c2, %c0_29, %c0_30] : memref<9x8x8xbf16, #tpu.memory_space<vmem>>, vector<1x8x8xbf16>
    %34 = vector.shape_cast %33 : vector<1x8x8xbf16> to vector<8x8xbf16>
    %cst_31 = arith.constant dense<0.000000e+00> : vector<64x8xf32>
    %35 = tpu.matmul %32, %34, %cst_31 {dimension_numbers = #tpu.dot_dimension_numbers<[1], [0], [0], [1], [0, 0, 1, 1], [], []>} : vector<64x8xbf16>, vector<8x8xbf16>, vector<64x8xf32> -> vector<64x8xf32>
    %36 = arith.addf %29, %35 : vector<64x8xf32>
    %c18 = arith.constant 18 : index
    %c0_32 = arith.constant 0 : index
    %c0_33 = arith.constant 0 : index
    %37 = vector.load %arg12[%c18, %c0_32, %c0_33] : memref<36x16x8xf32, #tpu.memory_space<vmem>>, vector<8x8x8xf32>
    %38 = vector.shape_cast %37 : vector<8x8x8xf32> to vector<64x8xf32>
    %39 = arith.truncf %38 : vector<64x8xf32> to vector<64x8xbf16>
    %c3 = arith.constant 3 : index
    %c0_34 = arith.constant 0 : index
    %c0_35 = arith.constant 0 : index
    %40 = vector.load %arg5[%c3, %c0_34, %c0_35] : memref<9x8x8xbf16, #tpu.memory_space<vmem>>, vector<1x8x8xbf16>
    %41 = vector.shape_cast %40 : vector<1x8x8xbf16> to vector<8x8xbf16>
    %cst_36 = arith.constant dense<0.000000e+00> : vector<64x8xf32>
    %42 = tpu.matmul %39, %41, %cst_36 {dimension_numbers = #tpu.dot_dimension_numbers<[1], [0], [0], [1], [0, 0, 1, 1], [], []>} : vector<64x8xbf16>, vector<8x8xbf16>, vector<64x8xf32> -> vector<64x8xf32>
    %43 = arith.addf %36, %42 : vector<64x8xf32>
    %c27 = arith.constant 27 : index
    %c0_37 = arith.constant 0 : index
    %c0_38 = arith.constant 0 : index
    %44 = vector.load %arg12[%c27, %c0_37, %c0_38] : memref<36x16x8xf32, #tpu.memory_space<vmem>>, vector<8x8x8xf32>
    %45 = vector.shape_cast %44 : vector<8x8x8xf32> to vector<64x8xf32>
    %46 = arith.truncf %45 : vector<64x8xf32> to vector<64x8xbf16>
    %c4 = arith.constant 4 : index
    %c0_39 = arith.constant 0 : index
    %c0_40 = arith.constant 0 : index
    %47 = vector.load %arg5[%c4, %c0_39, %c0_40] : memref<9x8x8xbf16, #tpu.memory_space<vmem>>, vector<1x8x8xbf16>
    %48 = vector.shape_cast %47 : vector<1x8x8xbf16> to vector<8x8xbf16>
    %cst_41 = arith.constant dense<0.000000e+00> : vector<64x8xf32>
    %49 = tpu.matmul %46, %48, %cst_41 {dimension_numbers = #tpu.dot_dimension_numbers<[1], [0], [0], [1], [0, 0, 1, 1], [], []>} : vector<64x8xbf16>, vector<8x8xbf16>, vector<64x8xf32> -> vector<64x8xf32>
    %50 = arith.addf %43, %49 : vector<64x8xf32>
    %c18_42 = arith.constant 18 : index
    %c1_43 = arith.constant 1 : index
    %c0_44 = arith.constant 0 : index
    %51 = vector.load %arg12[%c18_42, %c1_43, %c0_44] : memref<36x16x8xf32, #tpu.memory_space<vmem>>, vector<8x8x8xf32>
    %52 = vector.shape_cast %51 : vector<8x8x8xf32> to vector<64x8xf32>
    %53 = arith.truncf %52 : vector<64x8xf32> to vector<64x8xbf16>
    %c5 = arith.constant 5 : index
    %c0_45 = arith.constant 0 : index
    %c0_46 = arith.constant 0 : index
    %54 = vector.load %arg5[%c5, %c0_45, %c0_46] : memref<9x8x8xbf16, #tpu.memory_space<vmem>>, vector<1x8x8xbf16>
    %55 = vector.shape_cast %54 : vector<1x8x8xbf16> to vector<8x8xbf16>
    %cst_47 = arith.constant dense<0.000000e+00> : vector<64x8xf32>
    %56 = tpu.matmul %53, %55, %cst_47 {dimension_numbers = #tpu.dot_dimension_numbers<[1], [0], [0], [1], [0, 0, 1, 1], [], []>} : vector<64x8xbf16>, vector<8x8xbf16>, vector<64x8xf32> -> vector<64x8xf32>
    %57 = arith.addf %50, %56 : vector<64x8xf32>
    %c1_48 = arith.constant 1 : index
    %c0_49 = arith.constant 0 : index
    %c0_50 = arith.constant 0 : index
    %58 = vector.load %arg12[%c1_48, %c0_49, %c0_50] : memref<36x16x8xf32, #tpu.memory_space<vmem>>, vector<8x8x8xf32>
    %59 = vector.shape_cast %58 : vector<8x8x8xf32> to vector<64x8xf32>
    %60 = arith.truncf %59 : vector<64x8xf32> to vector<64x8xbf16>
    %c6 = arith.constant 6 : index
    %c0_51 = arith.constant 0 : index
    %c0_52 = arith.constant 0 : index
    %61 = vector.load %arg5[%c6, %c0_51, %c0_52] : memref<9x8x8xbf16, #tpu.memory_space<vmem>>, vector<1x8x8xbf16>
    %62 = vector.shape_cast %61 : vector<1x8x8xbf16> to vector<8x8xbf16>
    %cst_53 = arith.constant dense<0.000000e+00> : vector<64x8xf32>
    %63 = tpu.matmul %60, %62, %cst_53 {dimension_numbers = #tpu.dot_dimension_numbers<[1], [0], [0], [1], [0, 0, 1, 1], [], []>} : vector<64x8xbf16>, vector<8x8xbf16>, vector<64x8xf32> -> vector<64x8xf32>
    %64 = arith.addf %57, %63 : vector<64x8xf32>
    %c10 = arith.constant 10 : index
    %c0_54 = arith.constant 0 : index
    %c0_55 = arith.constant 0 : index
    %65 = vector.load %arg12[%c10, %c0_54, %c0_55] : memref<36x16x8xf32, #tpu.memory_space<vmem>>, vector<8x8x8xf32>
    %66 = vector.shape_cast %65 : vector<8x8x8xf32> to vector<64x8xf32>
    %67 = arith.truncf %66 : vector<64x8xf32> to vector<64x8xbf16>
    %c7 = arith.constant 7 : index
    %c0_56 = arith.constant 0 : index
    %c0_57 = arith.constant 0 : index
    %68 = vector.load %arg5[%c7, %c0_56, %c0_57] : memref<9x8x8xbf16, #tpu.memory_space<vmem>>, vector<1x8x8xbf16>
    %69 = vector.shape_cast %68 : vector<1x8x8xbf16> to vector<8x8xbf16>
    %cst_58 = arith.constant dense<0.000000e+00> : vector<64x8xf32>
    %70 = tpu.matmul %67, %69, %cst_58 {dimension_numbers = #tpu.dot_dimension_numbers<[1], [0], [0], [1], [0, 0, 1, 1], [], []>} : vector<64x8xbf16>, vector<8x8xbf16>, vector<64x8xf32> -> vector<64x8xf32>
    %71 = arith.addf %64, %70 : vector<64x8xf32>
    %c1_59 = arith.constant 1 : index
    %c1_60 = arith.constant 1 : index
    %c0_61 = arith.constant 0 : index
    %72 = vector.load %arg12[%c1_59, %c1_60, %c0_61] : memref<36x16x8xf32, #tpu.memory_space<vmem>>, vector<8x8x8xf32>
    %73 = vector.shape_cast %72 : vector<8x8x8xf32> to vector<64x8xf32>
    %74 = arith.truncf %73 : vector<64x8xf32> to vector<64x8xbf16>
    %c8 = arith.constant 8 : index
    %c0_62 = arith.constant 0 : index
    %c0_63 = arith.constant 0 : index
    %75 = vector.load %arg5[%c8, %c0_62, %c0_63] : memref<9x8x8xbf16, #tpu.memory_space<vmem>>, vector<1x8x8xbf16>
    %76 = vector.shape_cast %75 : vector<1x8x8xbf16> to vector<8x8xbf16>
    %cst_64 = arith.constant dense<0.000000e+00> : vector<64x8xf32>
    %77 = tpu.matmul %74, %76, %cst_64 {dimension_numbers = #tpu.dot_dimension_numbers<[1], [0], [0], [1], [0, 0, 1, 1], [], []>} : vector<64x8xbf16>, vector<8x8xbf16>, vector<64x8xf32> -> vector<64x8xf32>
    %78 = arith.addf %71, %77 : vector<64x8xf32>
    %c0_65 = arith.constant 0 : index
    %c0_66 = arith.constant 0 : index
    %79 = vector.load %arg6[%c0_65, %c0_66] : memref<1x8xf32, #tpu.memory_space<vmem>>, vector<1x8xf32>
    %80 = vector.broadcast %79 : vector<1x8xf32> to vector<64x8xf32>
    %81 = arith.addf %78, %80 : vector<64x8xf32>
    %cst_67 = arith.constant 0.000000e+00 : f32
    %82 = vector.broadcast %cst_67 : f32 to vector<64x8xf32>
    %83 = arith.maximumf %81, %82 : vector<64x8xf32>
    %84 = arith.truncf %83 : vector<64x8xf32> to vector<64x8xbf16>
    %c0_68 = arith.constant 0 : index
    %c0_69 = arith.constant 0 : index
    %85 = vector.load %arg7[%c0_68, %c0_69] : memref<8x32xbf16, #tpu.memory_space<vmem>>, vector<8x32xbf16>
    %cst_70 = arith.constant dense<0.000000e+00> : vector<64x32xf32>
    %86 = tpu.matmul %84, %85, %cst_70 {dimension_numbers = #tpu.dot_dimension_numbers<[1], [0], [0], [1], [0, 0, 1, 1], [], []>} : vector<64x8xbf16>, vector<8x32xbf16>, vector<64x32xf32> -> vector<64x32xf32>
    %c0_71 = arith.constant 0 : index
    %c0_72 = arith.constant 0 : index
    %87 = vector.load %arg8[%c0_71, %c0_72] : memref<1x32xf32, #tpu.memory_space<vmem>>, vector<1x32xf32>
    %88 = vector.broadcast %87 : vector<1x32xf32> to vector<64x32xf32>
    %89 = arith.addf %86, %88 : vector<64x32xf32>
    %c0_73 = arith.constant 0 : index
    %c27_74 = arith.constant 27 : index
    %c0_75 = arith.constant 0 : index
    %c0_76 = arith.constant 0 : index
    %90 = vector.load %arg1[%c0_73, %c27_74, %c0_75, %c0_76] : memref<1x36x16x4xbf16, #tpu.memory_space<vmem>>, vector<1x8x16x4xbf16>
    %91 = vector.shape_cast %90 : vector<1x8x16x4xbf16> to vector<8x16x4xbf16>
    %92 = vector.shape_cast %91 : vector<8x16x4xbf16> to vector<128x4xbf16>
    %c0_77 = arith.constant 0 : index
    %c0_78 = arith.constant 0 : index
    %93 = vector.load %arg9[%c0_77, %c0_78] : memref<4x32xbf16, #tpu.memory_space<vmem>>, vector<4x32xbf16>
    %cst_79 = arith.constant dense<0.000000e+00> : vector<128x32xf32>
    %94 = tpu.matmul %92, %93, %cst_79 {dimension_numbers = #tpu.dot_dimension_numbers<[1], [0], [0], [1], [0, 0, 1, 1], [], []>} : vector<128x4xbf16>, vector<4x32xbf16>, vector<128x32xf32> -> vector<128x32xf32>
    %95 = vector.shape_cast %94 : vector<128x32xf32> to vector<8x16x32xf32>
    %96 = vector.extract_strided_slice %95 {offsets = [0, 0, 0], sizes = [8, 8, 32], strides = [1, 1, 1]} : vector<8x16x32xf32> to vector<8x8x32xf32>
    %97 = vector.shape_cast %96 : vector<8x8x32xf32> to vector<64x32xf32>
    %c0_80 = arith.constant 0 : index
    %c0_81 = arith.constant 0 : index
    %98 = vector.load %arg10[%c0_80, %c0_81] : memref<1x32xf32, #tpu.memory_space<vmem>>, vector<1x32xf32>
    %99 = vector.broadcast %98 : vector<1x32xf32> to vector<64x32xf32>
    %100 = arith.addf %97, %99 : vector<64x32xf32>
    %101 = arith.addf %89, %100 : vector<64x32xf32>
    %cst_82 = arith.constant 0.000000e+00 : f32
    %102 = vector.broadcast %cst_82 : f32 to vector<64x32xf32>
    %103 = arith.maximumf %101, %102 : vector<64x32xf32>
    %104 = vector.shape_cast %103 : vector<64x32xf32> to vector<1x64x32xf32>
    %c0_83 = arith.constant 0 : index
    %c0_84 = arith.constant 0 : index
    %c0_85 = arith.constant 0 : index
    %105 = vector.load %arg11[%c0_83, %c0_84, %c0_85] : memref<1x64x32xf32, #tpu.memory_space<vmem>>, vector<1x64x32xf32>
    tpu.vector_store %arg11[%c0_83, %c0_84, %c0_85], %104 {strides = array<i32>} : memref<1x64x32xf32, #tpu.memory_space<vmem>>, vector<1x64x32xf32>,
    return
  }
  func.func @transform_0(%arg0: i32) -> (i32, i32, i32, i32) {
    %c0_i32 = arith.constant 0 : i32
    %c0_i32_0 = arith.constant 0 : i32
    %c0_i32_1 = arith.constant 0 : i32
    %c0_i32_2 = arith.constant 0 : i32
    return %arg0, %c0_i32, %c0_i32_0, %c0_i32_1 : i32, i32, i32, i32
  }
  func.func @transform_1(%arg0: i32) -> (i32, i32) {
    %c0_i32 = arith.constant 0 : i32
    %c0_i32_0 = arith.constant 0 : i32
    %c0_i32_1 = arith.constant 0 : i32
    return %c0_i32, %c0_i32_0 : i32, i32
  }
  func.func @transform_2(%arg0: i32) -> (i32, i32) {
    %c0_i32 = arith.constant 0 : i32
    %c0_i32_0 = arith.constant 0 : i32
    %c0_i32_1 = arith.constant 0 : i32
    return %c0_i32, %c0_i32_0 : i32, i32
  }
  func.func @transform_3(%arg0: i32) -> (i32, i32) {
    %c0_i32 = arith.constant 0 : i32
    %c0_i32_0 = arith.constant 0 : i32
    %c0_i32_1 = arith.constant 0 : i32
    return %c0_i32, %c0_i32_0 : i32, i32
  }
  func.func @transform_4(%arg0: i32) -> (i32, i32, i32) {
    %c0_i32 = arith.constant 0 : i32
    %c0_i32_0 = arith.constant 0 : i32
    %c0_i32_1 = arith.constant 0 : i32
    %c0_i32_2 = arith.constant 0 : i32
    return %c0_i32, %c0_i32_0, %c0_i32_1 : i32, i32, i32
  }
  func.func @transform_5(%arg0: i32) -> (i32, i32) {
    %c0_i32 = arith.constant 0 : i32
    %c0_i32_0 = arith.constant 0 : i32
    %c0_i32_1 = arith.constant 0 : i32
    return %c0_i32, %c0_i32_0 : i32, i32
  }
  func.func @transform_6(%arg0: i32) -> (i32, i32) {
    %c0_i32 = arith.constant 0 : i32
    %c0_i32_0 = arith.constant 0 : i32
    %c0_i32_1 = arith.constant 0 : i32
    return %c0_i32, %c0_i32_0 : i32, i32
  }
  func.func @transform_7(%arg0: i32) -> (i32, i32) {
    %c0_i32 = arith.constant 0 : i32
    %c0_i32_0 = arith.constant 0 : i32
    %c0_i32_1 = arith.constant 0 : i32
    return %c0_i32, %c0_i32_0 : i32, i32
  }
  func.func @transform_8(%arg0: i32) -> (i32, i32) {
    %c0_i32 = arith.constant 0 : i32
    %c0_i32_0 = arith.constant 0 : i32
    %c0_i32_1 = arith.constant 0 : i32
    return %c0_i32, %c0_i32_0 : i32, i32
  }
  func.func @transform_9(%arg0: i32) -> (i32, i32) {
    %c0_i32 = arith.constant 0 : i32
    %c0_i32_0 = arith.constant 0 : i32
    %c0_i32_1 = arith.constant 0 : i32
    return %c0_i32, %c0_i32_0 : i32, i32
  }
  func.func @transform_10(%arg0: i32) -> (i32, i32, i32) {
    %c0_i32 = arith.constant 0 : i32
    %c0_i32_0 = arith.constant 0 : i32
    %c0_i32_1 = arith.constant 0 : i32
    return %arg0, %c0_i32, %c0_i32_0 : i32, i32, i32
  }
}

</mosaic_0001>

<llo_original>
// kernel: bottleneck_forward.1
$region0: #{bottleneck_forward.1}
  #allocation0 [shape = 'u32[]', space=smem, size = 0x4, offset = 0x4, fixed_abs, tag = 'smem constant byte address 0x4 - core index']
  #allocation1 [shape = 'u32[144,128]{1,0:T(1,128)}', space=vmem, size = 0x12000, scoped, tag = 'internal scratch']
  #allocation2 [shape = 'f32[36,16,8]{2,1,0:T(8,128)}', space=vmem, size = 0x48000, scoped, tag = 'scratch operand']
  %s0 = inlined_call_operand.vmem [shape: bf16[2,36,16,4], index: 0, kind: input, shape index: {}]
  %s1 = inlined_call_operand.vmem [shape: f32[576,1], index: 1, kind: input, shape index: {}]
  %s2 = inlined_call_operand.vmem [shape: bf16[4,8], index: 2, kind: input, shape index: {}]
  %s3 = inlined_call_operand.vmem [shape: f32[1,8], index: 3, kind: input, shape index: {}]
  %s4 = inlined_call_operand.vmem [shape: bf16[9,8,8], index: 4, kind: input, shape index: {}]
  %s5 = inlined_call_operand.vmem [shape: f32[1,8], index: 5, kind: input, shape index: {}]
  %s6 = inlined_call_operand.vmem [shape: bf16[8,32], index: 6, kind: input, shape index: {}]
  %s7 = inlined_call_operand.vmem [shape: f32[1,32], index: 7, kind: input, shape index: {}]
  %s8 = inlined_call_operand.vmem [shape: bf16[4,32], index: 8, kind: input, shape index: {}]
  %s9 = inlined_call_operand.vmem [shape: f32[1,32], index: 9, kind: input, shape index: {}]
  %s10 = inlined_call_operand.hbm [shape: f32[2,64,32], index: 10, kind: output, shape index: {}]
  %s11 = sld [smem:[#allocation0]]
  $region73: #{bottleneck_forward.1} parent=0
    _
  %s13 = ssub.s32 1, %s11
  %s14 = scalar_select 0, %s13, %s11
  $region1: #{bottleneck_forward.1} parent=0
    #allocation3 [shape = 'u8[65536]{0}', space=vmem, size = 0x10000, scoped, tag = 'output window, operand 0']
    #allocation4 [shape = 's32[2]{0}', space=sflag, size = 0x8, scoped, tag = 'scoped memory for bottleneck_forward.1']
    %15 = vsyncpa [#allocation4], 0
    %s16 = scalar_lea.sflag [#allocation4], 1
    %17 = vsyncpa %s16, 0
    loop: start=0, step=1, limit=4
    $region2: #{bottleneck_forward.1} parent=1 // loop_pre_header
      _
    $region3: #{bottleneck_forward.1} parent=1 // loop_header
      %s19 = sphi 0, %s23
      %p20 = scmp.ge.s32.totalorder %s19, 4
      %s29 = sphi 0, %s31
      %s32 = sphi 0, %s29
      %s33 = sphi 0, %s32
      %s49 = sphi 0, %s33
      %s53 = sphi 0, %s53
      %s55 = sphi 0, %s53
      %s56 = sphi 0, %s55
      %s70 = sphi 0, %s56
      %s74 = sphi 0, %s74
      %s76 = sphi 0, %s74
      %s77 = sphi 0, %s76
      %s91 = sphi 0, %s77
      %s95 = sphi 0, %s95
      %s97 = sphi 0, %s95
      %s98 = sphi 0, %s97
      %s112 = sphi 0, %s98
      %s116 = sphi 0, %s116
      %s118 = sphi 0, %s116
      %s119 = sphi 0, %s118
      %s133 = sphi 0, %s119
      %s137 = sphi 0, %s137
      %s139 = sphi 0, %s137
      %s140 = sphi 0, %s139
      %s154 = sphi 0, %s140
      %s158 = sphi 0, %s158
      %s160 = sphi 0, %s158
      %s161 = sphi 0, %s160
      %s175 = sphi 0, %s161
      %s179 = sphi 0, %s179
      %s181 = sphi 0, %s179
      %s182 = sphi 0, %s181
      %s196 = sphi 0, %s182
      %s200 = sphi 0, %s200
      %s202 = sphi 0, %s200
      %s203 = sphi 0, %s202
      %s217 = sphi 0, %s203
      %s221 = sphi 0, %s221
      %s223 = sphi 0, %s221
      %s224 = sphi 0, %s223
      %s238 = sphi 0, %s224
      %s244 = sphi 0, %s246
      %s247 = sphi 0, %s244
      %s248 = sphi 0, %s247
      %s264 = sphi 0, %s248
    $region4: #{bottleneck_forward.1} parent=1 // loop_header_branch
      %22 = sbr.rel (%p20) target = $region8
    $region5: #{bottleneck_forward.1} parent=1 // loop_body
      %s24 = ssub.s32 %s19, 1
      %s25 = ssub.s32 %s19, 2
      %s26 = sadd.s32 %s19, 1
      %s27 = ssub.s32 %s19, %s26
      %p28 = scmp.eq.s32.totalorder %s27, 0
      %s30 = sadd.s32 %s29, 1
      %s31 = scalar_select %p28, %s29, %s30
      %p34 = pneg %p28
      %p35 = scmp.eq.s32.totalorder %s19, 1
      %p36 = por %p34, %p35
      %p37 = scmp.ne.s32.totalorder %s29, %s32
      %p38 = scmp.eq.s32.totalorder %s19, 0
      %p39 = por %p37, %p38
      %p40 = scmp.ne.s32.totalorder %s29, %s32
      %p41 = scmp.eq.s32.totalorder %s24, 1
      %p42 = por %p40, %p41
      %p43 = scmp.ne.s32.totalorder %s32, %s33
      %p44 = scmp.eq.s32.totalorder %s24, 0
      %p45 = por %p43, %p44
      %p46 = scmp.ne.s32.totalorder %s32, %s33
      %p47 = scmp.eq.s32.totalorder %s25, 1
      %p48 = por %p46, %p47
      %p50 = scmp.ne.s32.totalorder %s33, %s49
      %p51 = scmp.eq.s32.totalorder %s25, 0
      %p52 = por %p50, %p51
      %s54 = sadd.s32 %s53, 1
      %p57 = scmp.eq.s32.totalorder %s19, 1
      %p58 = scmp.ne.s32.totalorder %s53, %s55
      %p59 = scmp.eq.s32.totalorder %s19, 0
      %p60 = por %p58, %p59
      %p61 = scmp.ne.s32.totalorder %s53, %s55
      %p62 = scmp.eq.s32.totalorder %s24, 1
      %p63 = por %p61, %p62
      %p64 = scmp.ne.s32.totalorder %s55, %s56
      %p65 = scmp.eq.s32.totalorder %s24, 0
      %p66 = por %p64, %p65
      %p67 = scmp.ne.s32.totalorder %s55, %s56
      %p68 = scmp.eq.s32.totalorder %s25, 1
      %p69 = por %p67, %p68
      %p71 = scmp.ne.s32.totalorder %s56, %s70
      %p72 = scmp.eq.s32.totalorder %s25, 0
      %p73 = por %p71, %p72
      %s75 = sadd.s32 %s74, 1
      %p78 = scmp.eq.s32.totalorder %s19, 1
      %p79 = scmp.ne.s32.totalorder %s74, %s76
      %p80 = scmp.eq.s32.totalorder %s19, 0
      %p81 = por %p79, %p80
      %p82 = scmp.ne.s32.totalorder %s74, %s76
      %p83 = scmp.eq.s32.totalorder %s24, 1
      %p84 = por %p82, %p83
      %p85 = scmp.ne.s32.totalorder %s76, %s77
      %p86 = scmp.eq.s32.totalorder %s24, 0
      %p87 = por %p85, %p86
      %p88 = scmp.ne.s32.totalorder %s76, %s77
      %p89 = scmp.eq.s32.totalorder %s25, 1
      %p90 = por %p88, %p89
      %p92 = scmp.ne.s32.totalorder %s77, %s91
      %p93 = scmp.eq.s32.totalorder %s25, 0
      %p94 = por %p92, %p93
      %s96 = sadd.s32 %s95, 1
      %p99 = scmp.eq.s32.totalorder %s19, 1
      %p100 = scmp.ne.s32.totalorder %s95, %s97
      %p101 = scmp.eq.s32.totalorder %s19, 0
      %p102 = por %p100, %p101
      %p103 = scmp.ne.s32.totalorder %s95, %s97
      %p104 = scmp.eq.s32.totalorder %s24, 1
      %p105 = por %p103, %p104
      %p106 = scmp.ne.s32.totalorder %s97, %s98
      %p107 = scmp.eq.s32.totalorder %s24, 0
      %p108 = por %p106, %p107
      %p109 = scmp.ne.s32.totalorder %s97, %s98
      %p110 = scmp.eq.s32.totalorder %s25, 1
      %p111 = por %p109, %p110
      %p113 = scmp.ne.s32.totalorder %s98, %s112
      %p114 = scmp.eq.s32.totalorder %s25, 0
      %p115 = por %p113, %p114
      %s117 = sadd.s32 %s116, 1
      %p120 = scmp.eq.s32.totalorder %s19, 1
      %p121 = scmp.ne.s32.totalorder %s116, %s118
      %p122 = scmp.eq.s32.totalorder %s19, 0
      %p123 = por %p121, %p122
      %p124 = scmp.ne.s32.totalorder %s116, %s118
      %p125 = scmp.eq.s32.totalorder %s24, 1
      %p126 = por %p124, %p125
      %p127 = scmp.ne.s32.totalorder %s118, %s119
      %p128 = scmp.eq.s32.totalorder %s24, 0
      %p129 = por %p127, %p128
      %p130 = scmp.ne.s32.totalorder %s118, %s119
      %p131 = scmp.eq.s32.totalorder %s25, 1
      %p132 = por %p130, %p131
      %p134 = scmp.ne.s32.totalorder %s119, %s133
      %p135 = scmp.eq.s32.totalorder %s25, 0
      %p136 = por %p134, %p135
      %s138 = sadd.s32 %s137, 1
      %p141 = scmp.eq.s32.totalorder %s19, 1
      %p142 = scmp.ne.s32.totalorder %s137, %s139
      %p143 = scmp.eq.s32.totalorder %s19, 0
      %p144 = por %p142, %p143
      %p145 = scmp.ne.s32.totalorder %s137, %s139
      %p146 = scmp.eq.s32.totalorder %s24, 1
      %p147 = por %p145, %p146
      %p148 = scmp.ne.s32.totalorder %s139, %s140
      %p149 = scmp.eq.s32.totalorder %s24, 0
      %p150 = por %p148, %p149
      %p151 = scmp.ne.s32.totalorder %s139, %s140
      %p152 = scmp.eq.s32.totalorder %s25, 1
      %p153 = por %p151, %p152
      %p155 = scmp.ne.s32.totalorder %s140, %s154
      %p156 = scmp.eq.s32.totalorder %s25, 0
      %p157 = por %p155, %p156
      %s159 = sadd.s32 %s158, 1
      %p162 = scmp.eq.s32.totalorder %s19, 1
      %p163 = scmp.ne.s32.totalorder %s158, %s160
      %p164 = scmp.eq.s32.totalorder %s19, 0
      %p165 = por %p163, %p164
      %p166 = scmp.ne.s32.totalorder %s158, %s160
      %p167 = scmp.eq.s32.totalorder %s24, 1
      %p168 = por %p166, %p167
      %p169 = scmp.ne.s32.totalorder %s160, %s161
      %p170 = scmp.eq.s32.totalorder %s24, 0
      %p171 = por %p169, %p170
      %p172 = scmp.ne.s32.totalorder %s160, %s161
      %p173 = scmp.eq.s32.totalorder %s25, 1
      %p174 = por %p172, %p173
      %p176 = scmp.ne.s32.totalorder %s161, %s175
      %p177 = scmp.eq.s32.totalorder %s25, 0
      %p178 = por %p176, %p177
      %s180 = sadd.s32 %s179, 1
      %p183 = scmp.eq.s32.totalorder %s19, 1
      %p184 = scmp.ne.s32.totalorder %s179, %s181
      %p185 = scmp.eq.s32.totalorder %s19, 0
      %p186 = por %p184, %p185
      %p187 = scmp.ne.s32.totalorder %s179, %s181
      %p188 = scmp.eq.s32.totalorder %s24, 1
      %p189 = por %p187, %p188
      %p190 = scmp.ne.s32.totalorder %s181, %s182
      %p191 = scmp.eq.s32.totalorder %s24, 0
      %p192 = por %p190, %p191
      %p193 = scmp.ne.s32.totalorder %s181, %s182
      %p194 = scmp.eq.s32.totalorder %s25, 1
      %p195 = por %p193, %p194
      %p197 = scmp.ne.s32.totalorder %s182, %s196
      %p198 = scmp.eq.s32.totalorder %s25, 0
      %p199 = por %p197, %p198
      %s201 = sadd.s32 %s200, 1
      %p204 = scmp.eq.s32.totalorder %s19, 1
      %p205 = scmp.ne.s32.totalorder %s200, %s202
      %p206 = scmp.eq.s32.totalorder %s19, 0
      %p207 = por %p205, %p206
      %p208 = scmp.ne.s32.totalorder %s200, %s202
      %p209 = scmp.eq.s32.totalorder %s24, 1
      %p210 = por %p208, %p209
      %p211 = scmp.ne.s32.totalorder %s202, %s203
      %p212 = scmp.eq.s32.totalorder %s24, 0
      %p213 = por %p211, %p212
      %p214 = scmp.ne.s32.totalorder %s202, %s203
      %p215 = scmp.eq.s32.totalorder %s25, 1
      %p216 = por %p214, %p215
      %p218 = scmp.ne.s32.totalorder %s203, %s217
      %p219 = scmp.eq.s32.totalorder %s25, 0
      %p220 = por %p218, %p219
      %s222 = sadd.s32 %s221, 1
      %p225 = scmp.eq.s32.totalorder %s19, 1
      %p226 = scmp.ne.s32.totalorder %s221, %s223
      %p227 = scmp.eq.s32.totalorder %s19, 0
      %p228 = por %p226, %p227
      %p229 = scmp.ne.s32.totalorder %s221, %s223
      %p230 = scmp.eq.s32.totalorder %s24, 1
      %p231 = por %p229, %p230
      %p232 = scmp.ne.s32.totalorder %s223, %s224
      %p233 = scmp.eq.s32.totalorder %s24, 0
      %p234 = por %p232, %p233
      %p235 = scmp.ne.s32.totalorder %s223, %s224
      %p236 = scmp.eq.s32.totalorder %s25, 1
      %p237 = por %p235, %p236
      %p239 = scmp.ne.s32.totalorder %s224, %s238
      %p240 = scmp.eq.s32.totalorder %s25, 0
      %p241 = por %p239, %p240
      %s242 = ssub.s32 %s19, %s26
      %p243 = scmp.eq.s32.totalorder %s242, 0
      %s245 = sadd.s32 %s244, 1
      %s246 = scalar_select %p243, %s244, %s245
      %p249 = pneg %p243
      %p250 = scmp.eq.s32.totalorder %s19, 1
      %p251 = por %p249, %p250
      %p252 = scmp.ne.s32.totalorder %s244, %s247
      %p253 = scmp.eq.s32.totalorder %s19, 0
      %p254 = por %p252, %p253
      %p255 = scmp.ne.s32.totalorder %s244, %s247
      %p256 = scmp.eq.s32.totalorder %s24, 1
      %p257 = por %p255, %p256
      %p258 = scmp.ne.s32.totalorder %s247, %s248
      %p259 = scmp.eq.s32.totalorder %s24, 0
      %p260 = por %p258, %p259
      %p261 = scmp.ne.s32.totalorder %s247, %s248
      %p262 = scmp.eq.s32.totalorder %s25, 1
      %p263 = por %p261, %p262
      %p265 = scmp.ne.s32.totalorder %s248, %s264
      %p266 = scmp.eq.s32.totalorder %s25, 0
      %p267 = por %p265, %p266
      %p268 = scmp.le.s32.totalorder 1, %s19
      %p269 = scmp.lt.s32.totalorder %s19, 3
      %p270 = pnand %p268, %p269
      %p271 = pneg %p270
      // Predicated region
      $region9: #{bottleneck_forward.1} parent=5 // pred_check
        _
      $region10: #{bottleneck_forward.1} parent=5 // pred_check_branch
        %273 = sbr.rel (%p270) target = $region12
      $region11: #{bottleneck_forward.1} parent=5 // pred_region
        %s274 = ssub.s32 %s19, 1
        // Predicated region
        $region13: #{bottleneck_forward.1} parent=11 // pred_check
          %p275 = pneg %p66
        $region14: #{bottleneck_forward.1} parent=11 // pred_check_branch
          %277 = sbr.rel (%p275) target = $region16
        $region15: #{bottleneck_forward.1} parent=11 // pred_region
          _
        $region16: #{bottleneck_forward.1} parent=11 // pred_fallthru
          _
        // Predicated region
        $region17: #{bottleneck_forward.1} parent=11 // pred_check
          %p278 = pneg %p87
        $region18: #{bottleneck_forward.1} parent=11 // pred_check_branch
          %280 = sbr.rel (%p278) target = $region20
        $region19: #{bottleneck_forward.1} parent=11 // pred_region
          _
        $region20: #{bottleneck_forward.1} parent=11 // pred_fallthru
          _
        // Predicated region
        $region21: #{bottleneck_forward.1} parent=11 // pred_check
          %p281 = pneg %p108
        $region22: #{bottleneck_forward.1} parent=11 // pred_check_branch
          %283 = sbr.rel (%p281) target = $region24
        $region23: #{bottleneck_forward.1} parent=11 // pred_region
          _
        $region24: #{bottleneck_forward.1} parent=11 // pred_fallthru
          _
        // Predicated region
        $region25: #{bottleneck_forward.1} parent=11 // pred_check
          %p284 = pneg %p129
        $region26: #{bottleneck_forward.1} parent=11 // pred_check_branch
          %286 = sbr.rel (%p284) target = $region28
        $region27: #{bottleneck_forward.1} parent=11 // pred_region
          _
        $region28: #{bottleneck_forward.1} parent=11 // pred_fallthru
          _
        // Predicated region
        $region29: #{bottleneck_forward.1} parent=11 // pred_check
          %p287 = pneg %p150
        $region30: #{bottleneck_forward.1} parent=11 // pred_check_branch
          %289 = sbr.rel (%p287) target = $region32
        $region31: #{bottleneck_forward.1} parent=11 // pred_region
          _
        $region32: #{bottleneck_forward.1} parent=11 // pred_fallthru
          _
        // Predicated region
        $region33: #{bottleneck_forward.1} parent=11 // pred_check
          %p290 = pneg %p171
        $region34: #{bottleneck_forward.1} parent=11 // pred_check_branch
          %292 = sbr.rel (%p290) target = $region36
        $region35: #{bottleneck_forward.1} parent=11 // pred_region
          _
        $region36: #{bottleneck_forward.1} parent=11 // pred_fallthru
          _
        // Predicated region
        $region37: #{bottleneck_forward.1} parent=11 // pred_check
          %p293 = pneg %p192
        $region38: #{bottleneck_forward.1} parent=11 // pred_check_branch
          %295 = sbr.rel (%p293) target = $region40
        $region39: #{bottleneck_forward.1} parent=11 // pred_region
          _
        $region40: #{bottleneck_forward.1} parent=11 // pred_fallthru
          _
        // Predicated region
        $region41: #{bottleneck_forward.1} parent=11 // pred_check
          %p296 = pneg %p213
        $region42: #{bottleneck_forward.1} parent=11 // pred_check_branch
          %298 = sbr.rel (%p296) target = $region44
        $region43: #{bottleneck_forward.1} parent=11 // pred_region
          _
        $region44: #{bottleneck_forward.1} parent=11 // pred_fallthru
          _
        // Predicated region
        $region45: #{bottleneck_forward.1} parent=11 // pred_check
          %p299 = pneg %p234
        $region46: #{bottleneck_forward.1} parent=11 // pred_check_branch
          %301 = sbr.rel (%p299) target = $region48
        $region47: #{bottleneck_forward.1} parent=11 // pred_region
          _
        $region48: #{bottleneck_forward.1} parent=11 // pred_fallthru
          _
      $region12: #{bottleneck_forward.1} parent=5 // pred_fallthru
        _
      %p302 = scmp.lt.s32.totalorder %s19, 2
      // Predicated region
      $region49: #{bottleneck_forward.1} parent=5 // pred_check
        %p303 = pneg %p302
      $region50: #{bottleneck_forward.1} parent=5 // pred_check_branch
        %305 = sbr.rel (%p303) target = $region52
      $region51: #{bottleneck_forward.1} parent=5 // pred_region
        // Predicated region
        $region53: #{bottleneck_forward.1} parent=51 // pred_check
          %p306 = pneg %p39
        $region54: #{bottleneck_forward.1} parent=51 // pred_check_branch
          %308 = sbr.rel (%p306) target = $region56
        $region55: #{bottleneck_forward.1} parent=51 // pred_region
          %p309 = scmp.lt.s32.totalorder %s19, 1
          %s310 = scalar_select %p309, %s19, 1
          %s311 = smul.addr %s310, 72
          %s312 = smul.addr %s311, 4
          %s313 = scalar_lea.vmem %s0, %s312
        $region56: #{bottleneck_forward.1} parent=51 // pred_fallthru
          _
      $region52: #{bottleneck_forward.1} parent=5 // pred_fallthru
        _
      %p314 = scmp.le.s32.totalorder 1, %s19
      %p315 = scmp.lt.s32.totalorder %s19, 3
      %p316 = pnand %p314, %p315
      %p317 = pneg %p316
      // Predicated region
      $region57: #{bottleneck_forward.1} parent=5 // pred_check
        _
      $region58: #{bottleneck_forward.1} parent=5 // pred_check_branch
        %319 = sbr.rel (%p316) target = $region60
      $region59: #{bottleneck_forward.1} parent=5 // pred_region
        %s320 = ssub.s32 %s19, 1
        %p321 = scmp.lt.s32.totalorder %s24, 1
        %s322 = scalar_select %p321, %s24, 1
        %s323 = smul.addr %s322, 72
        %s324 = smul.addr %s323, 4
        %s325 = scalar_lea.vmem %s0, %s324
        %p326 = pneg %p45
        %p327 = pneg %p42
        %p328 = pneg %p66
        %p329 = pneg %p63
        %p330 = pneg %p87
        %p331 = pneg %p84
        %p332 = pneg %p108
        %p333 = pneg %p105
        %p334 = pneg %p129
        %p335 = pneg %p126
        %p336 = pneg %p150
        %p337 = pneg %p147
        %p338 = pneg %p171
        %p339 = pneg %p168
        %p340 = pneg %p192
        %p341 = pneg %p189
        %p342 = pneg %p213
        %p343 = pneg %p210
        %p344 = pneg %p234
        %p345 = pneg %p231
        %p346 = pneg %p260
        %p347 = pneg %p257
        %s348 = sand.u32 %s247, 1
        %s349 = scalar_lea.sflag [#allocation4], %s348
        %s350 = sand.u32 %s247, 1
        %s351 = smul.addr %s350, 64
        %s352 = scalar_lea.vmem [#allocation3], %s351
        %p353 = scmp.lt.s32.totalorder %s24, 1
        %s354 = scalar_select %p353, %s24, 1
        %s355 = smul.addr %s354, 72
        %s356 = smul.addr %s355, 4
        %s357 = scalar_lea.vmem %s0, %s356
        %v359 = vld [vmem:[%s357] sm:$0xf]
        %v360 = vld [vmem:[%s357 + $0x4] sm:$0xf]
        %v361 = vld [vmem:[%s357 + $0x8] sm:$0xf]
        %v362 = vld [vmem:[%s357 + $0xc] sm:$0xf]
        %v363 = vld [vmem:[%s357 + $0x10] sm:$0xf]
        %v364 = vld [vmem:[%s357 + $0x14] sm:$0xf]
        %v365 = vld [vmem:[%s357 + $0x18] sm:$0xf]
        %v366 = vld [vmem:[%s357 + $0x1c] sm:$0xf]
        %v367 = vld [vmem:[%s357 + $0x20] sm:$0xf]
        %v368 = vld [vmem:[%s357 + $0x24] sm:$0xf]
        %v369 = vld [vmem:[%s357 + $0x28] sm:$0xf]
        %v370 = vld [vmem:[%s357 + $0x2c] sm:$0xf]
        %v371 = vld [vmem:[%s357 + $0x30] sm:$0xf]
        %v372 = vld [vmem:[%s357 + $0x34] sm:$0xf]
        %v373 = vld [vmem:[%s357 + $0x38] sm:$0xf]
        %v374 = vld [vmem:[%s357 + $0x3c] sm:$0xf]
        %v375 = vld [vmem:[%s357 + $0x40] sm:$0xf]
        %v376 = vld [vmem:[%s357 + $0x44] sm:$0xf]
        %v377 = vld [vmem:[%s357 + $0x48] sm:$0xf]
        %v378 = vld [vmem:[%s357 + $0x4c] sm:$0xf]
        %v379 = vld [vmem:[%s357 + $0x50] sm:$0xf]
        %v380 = vld [vmem:[%s357 + $0x54] sm:$0xf]
        %v381 = vld [vmem:[%s357 + $0x58] sm:$0xf]
        %v382 = vld [vmem:[%s357 + $0x5c] sm:$0xf]
        %v383 = vld [vmem:[%s357 + $0x60] sm:$0xf]
        %v384 = vld [vmem:[%s357 + $0x64] sm:$0xf]
        %v385 = vld [vmem:[%s357 + $0x68] sm:$0xf]
        %v386 = vld [vmem:[%s357 + $0x6c] sm:$0xf]
        %v387 = vld [vmem:[%s357 + $0x70] sm:$0xf]
        %v388 = vld [vmem:[%s357 + $0x74] sm:$0xf]
        %v389 = vld [vmem:[%s357 + $0x78] sm:$0xf]
        %v390 = vld [vmem:[%s357 + $0x7c] sm:$0xf]
        %v391 = vld [vmem:[%s357 + $0x80] sm:$0xf]
        %v392 = vld [vmem:[%s357 + $0x84] sm:$0xf]
        %v393 = vld [vmem:[%s357 + $0x88] sm:$0xf]
        %v394 = vld [vmem:[%s357 + $0x8c] sm:$0xf]
        %v395 = vld [vmem:[%s357 + $0x90] sm:$0xf]
        %v396 = vld [vmem:[%s357 + $0x94] sm:$0xf]
        %v397 = vld [vmem:[%s357 + $0x98] sm:$0xf]
        %v398 = vld [vmem:[%s357 + $0x9c] sm:$0xf]
        %v399 = vld [vmem:[%s357 + $0xa0] sm:$0xf]
        %v400 = vld [vmem:[%s357 + $0xa4] sm:$0xf]
        %v401 = vld [vmem:[%s357 + $0xa8] sm:$0xf]
        %v402 = vld [vmem:[%s357 + $0xac] sm:$0xf]
        %v403 = vld [vmem:[%s357 + $0xb0] sm:$0xf]
        %v404 = vld [vmem:[%s357 + $0xb4] sm:$0xf]
        %v405 = vld [vmem:[%s357 + $0xb8] sm:$0xf]
        %v406 = vld [vmem:[%s357 + $0xbc] sm:$0xf]
        %v407 = vld [vmem:[%s357 + $0xc0] sm:$0xf]
        %v408 = vld [vmem:[%s357 + $0xc4] sm:$0xf]
        %v409 = vld [vmem:[%s357 + $0xc8] sm:$0xf]
        %v410 = vld [vmem:[%s357 + $0xcc] sm:$0xf]
        %v411 = vld [vmem:[%s357 + $0xd0] sm:$0xf]
        %v412 = vld [vmem:[%s357 + $0xd4] sm:$0xf]
        %v413 = vld [vmem:[%s357 + $0xd8] sm:$0xf]
        %v414 = vld [vmem:[%s357 + $0xdc] sm:$0xf]
        %v415 = vld [vmem:[%s357 + $0xe0] sm:$0xf]
        %v416 = vld [vmem:[%s357 + $0xe4] sm:$0xf]
        %v417 = vld [vmem:[%s357 + $0xe8] sm:$0xf]
        %v418 = vld [vmem:[%s357 + $0xec] sm:$0xf]
        %v419 = vld [vmem:[%s357 + $0xf0] sm:$0xf]
        %v420 = vld [vmem:[%s357 + $0xf4] sm:$0xf]
        %v421 = vld [vmem:[%s357 + $0xf8] sm:$0xf]
        %v422 = vld [vmem:[%s357 + $0xfc] sm:$0xf]
        %v423 = vld [vmem:[%s357 + $0x100] sm:$0xf]
        %v424 = vld [vmem:[%s357 + $0x104] sm:$0xf]
        %v425 = vld [vmem:[%s357 + $0x108] sm:$0xf]
        %v426 = vld [vmem:[%s357 + $0x10c] sm:$0xf]
        %v427 = vld [vmem:[%s357 + $0x110] sm:$0xf]
        %v428 = vld [vmem:[%s357 + $0x114] sm:$0xf]
        %v429 = vld [vmem:[%s357 + $0x118] sm:$0xf]
        %v430 = vld [vmem:[%s357 + $0x11c] sm:$0xf]
        %v431 = vld [vmem:[%s2] sm:$0x3]
        %v432 = vld [vmem:[%s3] sm:$0x1]
        %v434 = vlaneseq
        %v435 = vshrl.u32 %v434, 7
        %v436 = vsub.s32 0, %v435
        %v437 = vrot.slane %v432, %v436
        %v511 = vunpack.c.l.b16 %v359
        %v512 = vunpack.c.l.b16 %v360
        %v513 = vunpack.c.l.b16 %v361
        %v514 = vunpack.c.l.b16 %v362
        %v515 = vunpack.c.l.b16 %v363
        %v516 = vunpack.c.l.b16 %v364
        %v517 = vunpack.c.l.b16 %v365
        %v518 = vunpack.c.l.b16 %v366
        %v519 = vunpack.c.l.b16 %v367
        %v520 = vunpack.c.l.b16 %v368
        %v521 = vunpack.c.l.b16 %v369
        %v522 = vunpack.c.l.b16 %v370
        %v523 = vunpack.c.l.b16 %v371
        %v524 = vunpack.c.l.b16 %v372
        %v525 = vunpack.c.l.b16 %v373
        %v526 = vunpack.c.l.b16 %v374
        %v527 = vunpack.c.l.b16 %v375
        %v528 = vunpack.c.l.b16 %v376
        %v529 = vunpack.c.l.b16 %v377
        %v530 = vunpack.c.l.b16 %v378
        %v531 = vunpack.c.l.b16 %v379
        %v532 = vunpack.c.l.b16 %v380
        %v533 = vunpack.c.l.b16 %v381
        %v534 = vunpack.c.l.b16 %v382
        %v535 = vunpack.c.l.b16 %v383
        %v536 = vunpack.c.l.b16 %v384
        %v537 = vunpack.c.l.b16 %v385
        %v538 = vunpack.c.l.b16 %v386
        %v539 = vunpack.c.l.b16 %v387
        %v540 = vunpack.c.l.b16 %v388
        %v541 = vunpack.c.l.b16 %v389
        %v542 = vunpack.c.l.b16 %v390
        %v543 = vunpack.c.l.b16 %v391
        %v544 = vunpack.c.l.b16 %v392
        %v545 = vunpack.c.l.b16 %v393
        %v546 = vunpack.c.l.b16 %v394
        %v547 = vunpack.c.l.b16 %v395
        %v548 = vunpack.c.l.b16 %v396
        %v549 = vunpack.c.l.b16 %v397
        %v550 = vunpack.c.l.b16 %v398
        %v551 = vunpack.c.l.b16 %v399
        %v552 = vunpack.c.l.b16 %v400
        %v553 = vunpack.c.l.b16 %v401
        %v554 = vunpack.c.l.b16 %v402
        %v555 = vunpack.c.l.b16 %v403
        %v556 = vunpack.c.l.b16 %v404
        %v557 = vunpack.c.l.b16 %v405
        %v558 = vunpack.c.l.b16 %v406
        %v559 = vunpack.c.l.b16 %v407
        %v560 = vunpack.c.l.b16 %v408
        %v561 = vunpack.c.l.b16 %v409
        %v562 = vunpack.c.l.b16 %v410
        %v563 = vunpack.c.l.b16 %v411
        %v564 = vunpack.c.l.b16 %v412
        %v565 = vunpack.c.l.b16 %v413
        %v566 = vunpack.c.l.b16 %v414
        %v567 = vunpack.c.l.b16 %v415
        %v568 = vunpack.c.l.b16 %v416
        %v569 = vunpack.c.l.b16 %v417
        %v570 = vunpack.c.l.b16 %v418
        %v571 = vunpack.c.l.b16 %v419
        %v572 = vunpack.c.l.b16 %v420
        %v573 = vunpack.c.l.b16 %v421
        %v574 = vunpack.c.l.b16 %v422
        %v575 = vunpack.c.l.b16 %v423
        %v576 = vunpack.c.l.b16 %v424
        %v577 = vunpack.c.l.b16 %v425
        %v578 = vunpack.c.l.b16 %v426
        %v579 = vunpack.c.l.b16 %v427
        %v580 = vunpack.c.l.b16 %v428
        %v581 = vunpack.c.l.b16 %v429
        %v582 = vunpack.c.l.b16 %v430
        %v583 = vpack.c.b16 %v512, %v511
        %v584 = vpack.c.b16 %v514, %v513
        %v585 = vpack.c.b16 %v516, %v515
        %v586 = vpack.c.b16 %v518, %v517
        %v587 = vpack.c.b16 %v520, %v519
        %v588 = vpack.c.b16 %v522, %v521
        %v589 = vpack.c.b16 %v524, %v523
        %v590 = vpack.c.b16 %v526, %v525
        %v591 = vpack.c.b16 %v528, %v527
        %v592 = vpack.c.b16 %v530, %v529
        %v593 = vpack.c.b16 %v532, %v531
        %v594 = vpack.c.b16 %v534, %v533
        %v595 = vpack.c.b16 %v536, %v535
        %v596 = vpack.c.b16 %v538, %v537
        %v597 = vpack.c.b16 %v540, %v539
        %v598 = vpack.c.b16 %v542, %v541
        %v599 = vpack.c.b16 %v544, %v543
        %v600 = vpack.c.b16 %v546, %v545
        %v601 = vpack.c.b16 %v548, %v547
        %v602 = vpack.c.b16 %v550, %v549
        %v603 = vpack.c.b16 %v552, %v551
        %v604 = vpack.c.b16 %v554, %v553
        %v605 = vpack.c.b16 %v556, %v555
        %v606 = vpack.c.b16 %v558, %v557
        %v607 = vpack.c.b16 %v560, %v559
        %v608 = vpack.c.b16 %v562, %v561
        %v609 = vpack.c.b16 %v564, %v563
        %v610 = vpack.c.b16 %v566, %v565
        %v611 = vpack.c.b16 %v568, %v567
        %v612 = vpack.c.b16 %v570, %v569
        %v613 = vpack.c.b16 %v572, %v571
        %v614 = vpack.c.b16 %v574, %v573
        %v615 = vpack.c.b16 %v576, %v575
        %v616 = vpack.c.b16 %v578, %v577
        %v617 = vpack.c.b16 %v580, %v579
        %v618 = vpack.c.b16 %v582, %v581
        %vm619 = vcmask 31744
        %v621 = vsel %vm619, %v583, 0
        %v624 = vsel %vm619, %v584, 0
        %v627 = vsel %vm619, %v585, 0
        %v630 = vsel %vm619, %v586, 0
        %v633 = vsel %vm619, %v587, 0
        %v636 = vsel %vm619, %v588, 0
        %v639 = vsel %vm619, %v589, 0
        %v642 = vsel %vm619, %v590, 0
        %v645 = vsel %vm619, %v591, 0
        %v648 = vsel %vm619, %v592, 0
        %v651 = vsel %vm619, %v593, 0
        %v654 = vsel %vm619, %v594, 0
        %v657 = vsel %vm619, %v595, 0
        %v660 = vsel %vm619, %v596, 0
        %v663 = vsel %vm619, %v597, 0
        %v666 = vsel %vm619, %v598, 0
        %v669 = vsel %vm619, %v599, 0
        %v672 = vsel %vm619, %v600, 0
        %v675 = vsel %vm619, %v601, 0
        %v678 = vsel %vm619, %v602, 0
        %v681 = vsel %vm619, %v603, 0
        %v684 = vsel %vm619, %v604, 0
        %v687 = vsel %vm619, %v605, 0
        %v690 = vsel %vm619, %v606, 0
        %v693 = vsel %vm619, %v607, 0
        %v696 = vsel %vm619, %v608, 0
        %v699 = vsel %vm619, %v609, 0
        %v702 = vsel %vm619, %v610, 0
        %v705 = vsel %vm619, %v611, 0
        %v708 = vsel %vm619, %v612, 0
        %v711 = vsel %vm619, %v613, 0
        %v714 = vsel %vm619, %v614, 0
        %v717 = vsel %vm619, %v615, 0
        %v720 = vsel %vm619, %v616, 0
        %v723 = vsel %vm619, %v617, 0
        %v726 = vsel %vm619, %v618, 0
        %vm728 = vcmask 1041408
        %v730 = vsel %vm728, %v431, 0
        %732 = vmatprep.subr.bf16.mxu0 0
        %733 = vmatpush1.bf16.msra.mxu0 %v730
        %734 = vmatprep.subr.bf16.mxu0 0
        %735 = vmatpush1.bf16.msra.mxu0 0
        %736 = vmatprep.subr.bf16.mxu0 0
        %737 = vmatpush1.bf16.msra.mxu0 0
        %738 = vmatprep.subr.bf16.mxu0 0
        %739 = vmatpush1.bf16.msra.mxu0 0
        %740 = vmatprep.subr.bf16.mxu0 0
        %741 = vmatpush1.bf16.msra.mxu0 0
        %742 = vmatprep.subr.bf16.mxu0 0
        %743 = vmatpush1.bf16.msra.mxu0 0
        %744 = vmatprep.subr.bf16.mxu0 0
        %745 = vmatpush1.bf16.msra.mxu0 0
        %746 = vmatprep.subr.bf16.mxu0 0
        %747 = vmatpush1.bf16.msra.mxu0 0
        %748 = vmatprep.subr.bf16.mxu0 0
        %749 = vmatpush1.bf16.msra.mxu0 0
        %750 = vmatprep.subr.bf16.mxu0 0
        %751 = vmatpush1.bf16.msra.mxu0 0
        %752 = vmatprep.subr.bf16.mxu0 0
        %753 = vmatpush1.bf16.msra.mxu0 0
        %754 = vmatprep.subr.bf16.mxu0 0
        %755 = vmatpush1.bf16.msra.mxu0 0
        %756 = vmatprep.subr.bf16.mxu0 0
        %757 = vmatpush1.bf16.msra.mxu0 0
        %758 = vmatprep.subr.bf16.mxu0 0
        %759 = vmatpush1.bf16.msra.mxu0 0
        %760 = vmatprep.subr.bf16.mxu0 0
        %761 = vmatpush1.bf16.msra.mxu0 0
        %762 = vmatprep.subr.bf16.mxu0 0
        %763 = vmatpush1.bf16.msra.mxu0 0
        %764 = vmatprep.mubr.bf16.mxu0 0
        %765 = vmatmul.mubr.bf16.gmra.mrb[0].mxu0 %v621
        %v766 = vpop.f32.mrb[0].mxu0
        %v767 = vadd.f32 %v437, %v766
        %v768 = vpop.f32.mrb[0].mxu0
        %v769 = vpop.f32.mrb[0].mxu0
        %v770 = vadd.f32 %v437, %v769
        %v771 = vpop.f32.mrb[0].mxu0
        %772 = vmatprep.mubr.bf16.mxu0 0
        %773 = vmatmul.mubr.bf16.gmra.mrb[0].mxu0 %v624
        %v774 = vpop.f32.mrb[0].mxu0
        %v775 = vadd.f32 %v437, %v774
        %v776 = vpop.f32.mrb[0].mxu0
        %v777 = vpop.f32.mrb[0].mxu0
        %v778 = vadd.f32 %v437, %v777
        %v779 = vpop.f32.mrb[0].mxu0
        %780 = vmatprep.mubr.bf16.mxu0 0
        %781 = vmatmul.mubr.bf16.gmra.mrb[0].mxu0 %v627
        %v782 = vpop.f32.mrb[0].mxu0
        %v783 = vadd.f32 %v437, %v782
        %v784 = vpop.f32.mrb[0].mxu0
        %v785 = vpop.f32.mrb[0].mxu0
        %v786 = vadd.f32 %v437, %v785
        %v787 = vpop.f32.mrb[0].mxu0
        %788 = vmatprep.mubr.bf16.mxu0 0
        %789 = vmatmul.mubr.bf16.gmra.mrb[0].mxu0 %v630
        %v790 = vpop.f32.mrb[0].mxu0
        %v791 = vadd.f32 %v437, %v790
        %v792 = vpop.f32.mrb[0].mxu0
        %v793 = vpop.f32.mrb[0].mxu0
        %v794 = vadd.f32 %v437, %v793
        %v795 = vpop.f32.mrb[0].mxu0
        %796 = vmatprep.mubr.bf16.mxu0 0
        %797 = vmatmul.mubr.bf16.gmra.mrb[0].mxu0 %v633
        %v798 = vpop.f32.mrb[0].mxu0
        %v799 = vadd.f32 %v437, %v798
        %v800 = vpop.f32.mrb[0].mxu0
        %v801 = vpop.f32.mrb[0].mxu0
        %v802 = vadd.f32 %v437, %v801
        %v803 = vpop.f32.mrb[0].mxu0
        %804 = vmatprep.mubr.bf16.mxu0 0
        %805 = vmatmul.mubr.bf16.gmra.mrb[0].mxu0 %v636
        %v806 = vpop.f32.mrb[0].mxu0
        %v807 = vadd.f32 %v437, %v806
        %v808 = vpop.f32.mrb[0].mxu0
        %v809 = vpop.f32.mrb[0].mxu0
        %v810 = vadd.f32 %v437, %v809
        %v811 = vpop.f32.mrb[0].mxu0
        %812 = vmatprep.mubr.bf16.mxu0 0
        %813 = vmatmul.mubr.bf16.gmra.mrb[0].mxu0 %v639
        %v814 = vpop.f32.mrb[0].mxu0
        %v815 = vadd.f32 %v437, %v814
        %v816 = vpop.f32.mrb[0].mxu0
        %v817 = vpop.f32.mrb[0].mxu0
        %v818 = vadd.f32 %v437, %v817
        %v819 = vpop.f32.mrb[0].mxu0
        %820 = vmatprep.mubr.bf16.mxu0 0
        %821 = vmatmul.mubr.bf16.gmra.mrb[0].mxu0 %v642
        %v822 = vpop.f32.mrb[0].mxu0
        %v823 = vadd.f32 %v437, %v822
        %v824 = vpop.f32.mrb[0].mxu0
        %v825 = vpop.f32.mrb[0].mxu0
        %v826 = vadd.f32 %v437, %v825
        %v827 = vpop.f32.mrb[0].mxu0
        %828 = vmatprep.mubr.bf16.mxu0 0
        %829 = vmatmul.mubr.bf16.gmra.mrb[0].mxu0 %v645
        %v830 = vpop.f32.mrb[0].mxu0
        %v831 = vadd.f32 %v437, %v830
        %v832 = vpop.f32.mrb[0].mxu0
        %v833 = vpop.f32.mrb[0].mxu0
        %v834 = vadd.f32 %v437, %v833
        %v835 = vpop.f32.mrb[0].mxu0
        %836 = vmatprep.mubr.bf16.mxu0 0
        %837 = vmatmul.mubr.bf16.gmra.mrb[0].mxu0 %v648
        %v838 = vpop.f32.mrb[0].mxu0
        %v839 = vadd.f32 %v437, %v838
        %v840 = vpop.f32.mrb[0].mxu0
        %v841 = vpop.f32.mrb[0].mxu0
        %v842 = vadd.f32 %v437, %v841
        %v843 = vpop.f32.mrb[0].mxu0
        %844 = vmatprep.mubr.bf16.mxu0 0
        %845 = vmatmul.mubr.bf16.gmra.mrb[0].mxu0 %v651
        %v846 = vpop.f32.mrb[0].mxu0
        %v847 = vadd.f32 %v437, %v846
        %v848 = vpop.f32.mrb[0].mxu0
        %v849 = vpop.f32.mrb[0].mxu0
        %v850 = vadd.f32 %v437, %v849
        %v851 = vpop.f32.mrb[0].mxu0
        %852 = vmatprep.mubr.bf16.mxu0 0
        %853 = vmatmul.mubr.bf16.gmra.mrb[0].mxu0 %v654
        %v854 = vpop.f32.mrb[0].mxu0
        %v855 = vadd.f32 %v437, %v854
        %v856 = vpop.f32.mrb[0].mxu0
        %v857 = vpop.f32.mrb[0].mxu0
        %v858 = vadd.f32 %v437, %v857
        %v859 = vpop.f32.mrb[0].mxu0
        %860 = vmatprep.mubr.bf16.mxu0 0
        %861 = vmatmul.mubr.bf16.gmra.mrb[0].mxu0 %v657
        %v862 = vpop.f32.mrb[0].mxu0
        %v863 = vadd.f32 %v437, %v862
        %v864 = vpop.f32.mrb[0].mxu0
        %v865 = vpop.f32.mrb[0].mxu0
        %v866 = vadd.f32 %v437, %v865
        %v867 = vpop.f32.mrb[0].mxu0
        %868 = vmatprep.mubr.bf16.mxu0 0
        %869 = vmatmul.mubr.bf16.gmra.mrb[0].mxu0 %v660
        %v870 = vpop.f32.mrb[0].mxu0
        %v871 = vadd.f32 %v437, %v870
        %v872 = vpop.f32.mrb[0].mxu0
        %v873 = vpop.f32.mrb[0].mxu0
        %v874 = vadd.f32 %v437, %v873
        %v875 = vpop.f32.mrb[0].mxu0
        %876 = vmatprep.mubr.bf16.mxu0 0
        %877 = vmatmul.mubr.bf16.gmra.mrb[0].mxu0 %v663
        %v878 = vpop.f32.mrb[0].mxu0
        %v879 = vadd.f32 %v437, %v878
        %v880 = vpop.f32.mrb[0].mxu0
        %v881 = vpop.f32.mrb[0].mxu0
        %v882 = vadd.f32 %v437, %v881
        %v883 = vpop.f32.mrb[0].mxu0
        %884 = vmatprep.mubr.bf16.mxu0 0
        %885 = vmatmul.mubr.bf16.gmra.mrb[0].mxu0 %v666
        %v886 = vpop.f32.mrb[0].mxu0
        %v887 = vadd.f32 %v437, %v886
        %v888 = vpop.f32.mrb[0].mxu0
        %v889 = vpop.f32.mrb[0].mxu0
        %v890 = vadd.f32 %v437, %v889
        %v891 = vpop.f32.mrb[0].mxu0
        %892 = vmatprep.mubr.bf16.mxu0 0
        %893 = vmatmul.mubr.bf16.gmra.mrb[0].mxu0 %v669
        %v894 = vpop.f32.mrb[0].mxu0
        %v895 = vadd.f32 %v437, %v894
        %v896 = vpop.f32.mrb[0].mxu0
        %v897 = vpop.f32.mrb[0].mxu0
        %v898 = vadd.f32 %v437, %v897
        %v899 = vpop.f32.mrb[0].mxu0
        %900 = vmatprep.mubr.bf16.mxu0 0
        %901 = vmatmul.mubr.bf16.gmra.mrb[0].mxu0 %v672
        %v902 = vpop.f32.mrb[0].mxu0
        %v903 = vadd.f32 %v437, %v902
        %v904 = vpop.f32.mrb[0].mxu0
        %v905 = vpop.f32.mrb[0].mxu0
        %v906 = vadd.f32 %v437, %v905
        %v907 = vpop.f32.mrb[0].mxu0
        %908 = vmatprep.mubr.bf16.mxu0 0
        %909 = vmatmul.mubr.bf16.gmra.mrb[0].mxu0 %v675
        %v910 = vpop.f32.mrb[0].mxu0
        %v911 = vadd.f32 %v437, %v910
        %v912 = vpop.f32.mrb[0].mxu0
        %v913 = vpop.f32.mrb[0].mxu0
        %v914 = vadd.f32 %v437, %v913
        %v915 = vpop.f32.mrb[0].mxu0
        %916 = vmatprep.mubr.bf16.mxu0 0
        %917 = vmatmul.mubr.bf16.gmra.mrb[0].mxu0 %v678
        %v918 = vpop.f32.mrb[0].mxu0
        %v919 = vadd.f32 %v437, %v918
        %v920 = vpop.f32.mrb[0].mxu0
        %v921 = vpop.f32.mrb[0].mxu0
        %v922 = vadd.f32 %v437, %v921
        %v923 = vpop.f32.mrb[0].mxu0
        %924 = vmatprep.mubr.bf16.mxu0 0
        %925 = vmatmul.mubr.bf16.gmra.mrb[0].mxu0 %v681
        %v926 = vpop.f32.mrb[0].mxu0
        %v927 = vadd.f32 %v437, %v926
        %v928 = vpop.f32.mrb[0].mxu0
        %v929 = vpop.f32.mrb[0].mxu0
        %v930 = vadd.f32 %v437, %v929
        %v931 = vpop.f32.mrb[0].mxu0
        %932 = vmatprep.mubr.bf16.mxu0 0
        %933 = vmatmul.mubr.bf16.gmra.mrb[0].mxu0 %v684
        %v934 = vpop.f32.mrb[0].mxu0
        %v935 = vadd.f32 %v437, %v934
        %v936 = vpop.f32.mrb[0].mxu0
        %v937 = vpop.f32.mrb[0].mxu0
        %v938 = vadd.f32 %v437, %v937
        %v939 = vpop.f32.mrb[0].mxu0
        %940 = vmatprep.mubr.bf16.mxu0 0
        %941 = vmatmul.mubr.bf16.gmra.mrb[0].mxu0 %v687
        %v942 = vpop.f32.mrb[0].mxu0
        %v943 = vadd.f32 %v437, %v942
        %v944 = vpop.f32.mrb[0].mxu0
        %v945 = vpop.f32.mrb[0].mxu0
        %v946 = vadd.f32 %v437, %v945
        %v947 = vpop.f32.mrb[0].mxu0
        %948 = vmatprep.mubr.bf16.mxu0 0
        %949 = vmatmul.mubr.bf16.gmra.mrb[0].mxu0 %v690
        %v950 = vpop.f32.mrb[0].mxu0
        %v951 = vadd.f32 %v437, %v950
        %v952 = vpop.f32.mrb[0].mxu0
        %v953 = vpop.f32.mrb[0].mxu0
        %v954 = vadd.f32 %v437, %v953
        %v955 = vpop.f32.mrb[0].mxu0
        %956 = vmatprep.mubr.bf16.mxu0 0
        %957 = vmatmul.mubr.bf16.gmra.mrb[0].mxu0 %v693
        %v958 = vpop.f32.mrb[0].mxu0
        %v959 = vadd.f32 %v437, %v958
        %v960 = vpop.f32.mrb[0].mxu0
        %v961 = vpop.f32.mrb[0].mxu0
        %v962 = vadd.f32 %v437, %v961
        %v963 = vpop.f32.mrb[0].mxu0
        %964 = vmatprep.mubr.bf16.mxu0 0
        %965 = vmatmul.mubr.bf16.gmra.mrb[0].mxu0 %v696
        %v966 = vpop.f32.mrb[0].mxu0
        %v967 = vadd.f32 %v437, %v966
        %v968 = vpop.f32.mrb[0].mxu0
        %v969 = vpop.f32.mrb[0].mxu0
        %v970 = vadd.f32 %v437, %v969
        %v971 = vpop.f32.mrb[0].mxu0
        %972 = vmatprep.mubr.bf16.mxu0 0
        %973 = vmatmul.mubr.bf16.gmra.mrb[0].mxu0 %v699
        %v974 = vpop.f32.mrb[0].mxu0
        %v975 = vadd.f32 %v437, %v974
        %v976 = vpop.f32.mrb[0].mxu0
        %v977 = vpop.f32.mrb[0].mxu0
        %v978 = vadd.f32 %v437, %v977
        %v979 = vpop.f32.mrb[0].mxu0
        %980 = vmatprep.mubr.bf16.mxu0 0
        %981 = vmatmul.mubr.bf16.gmra.mrb[0].mxu0 %v702
        %v982 = vpop.f32.mrb[0].mxu0
        %v983 = vadd.f32 %v437, %v982
        %v984 = vpop.f32.mrb[0].mxu0
        %v985 = vpop.f32.mrb[0].mxu0
        %v986 = vadd.f32 %v437, %v985
        %v987 = vpop.f32.mrb[0].mxu0
        %988 = vmatprep.mubr.bf16.mxu0 0
        %989 = vmatmul.mubr.bf16.gmra.mrb[0].mxu0 %v705
        %v990 = vpop.f32.mrb[0].mxu0
        %v991 = vadd.f32 %v437, %v990
        %v992 = vpop.f32.mrb[0].mxu0
        %v993 = vpop.f32.mrb[0].mxu0
        %v994 = vadd.f32 %v437, %v993
        %v995 = vpop.f32.mrb[0].mxu0
        %996 = vmatprep.mubr.bf16.mxu0 0
        %997 = vmatmul.mubr.bf16.gmra.mrb[0].mxu0 %v708
        %v998 = vpop.f32.mrb[0].mxu0
        %v999 = vadd.f32 %v437, %v998
        %v1000 = vpop.f32.mrb[0].mxu0
        %v1001 = vpop.f32.mrb[0].mxu0
        %v1002 = vadd.f32 %v437, %v1001
        %v1003 = vpop.f32.mrb[0].mxu0
        %1004 = vmatprep.mubr.bf16.mxu0 0
        %1005 = vmatmul.mubr.bf16.gmra.mrb[0].mxu0 %v711
        %v1006 = vpop.f32.mrb[0].mxu0
        %v1007 = vadd.f32 %v437, %v1006
        %v1008 = vpop.f32.mrb[0].mxu0
        %v1009 = vpop.f32.mrb[0].mxu0
        %v1010 = vadd.f32 %v437, %v1009
        %v1011 = vpop.f32.mrb[0].mxu0
        %1012 = vmatprep.mubr.bf16.mxu0 0
        %1013 = vmatmul.mubr.bf16.gmra.mrb[0].mxu0 %v714
        %v1014 = vpop.f32.mrb[0].mxu0
        %v1015 = vadd.f32 %v437, %v1014
        %v1016 = vpop.f32.mrb[0].mxu0
        %v1017 = vpop.f32.mrb[0].mxu0
        %v1018 = vadd.f32 %v437, %v1017
        %v1019 = vpop.f32.mrb[0].mxu0
        %1020 = vmatprep.mubr.bf16.mxu0 0
        %1021 = vmatmul.mubr.bf16.gmra.mrb[0].mxu0 %v717
        %v1022 = vpop.f32.mrb[0].mxu0
        %v1023 = vadd.f32 %v437, %v1022
        %v1024 = vpop.f32.mrb[0].mxu0
        %v1025 = vpop.f32.mrb[0].mxu0
        %v1026 = vadd.f32 %v437, %v1025
        %v1027 = vpop.f32.mrb[0].mxu0
        %1028 = vmatprep.mubr.bf16.mxu0 0
        %1029 = vmatmul.mubr.bf16.gmra.mrb[0].mxu0 %v720
        %v1030 = vpop.f32.mrb[0].mxu0
        %v1031 = vadd.f32 %v437, %v1030
        %v1032 = vpop.f32.mrb[0].mxu0
        %v1033 = vpop.f32.mrb[0].mxu0
        %v1034 = vadd.f32 %v437, %v1033
        %v1035 = vpop.f32.mrb[0].mxu0
        %1036 = vmatprep.mubr.bf16.mxu0 0
        %1037 = vmatmul.mubr.bf16.gmra.mrb[0].mxu0 %v723
        %v1038 = vpop.f32.mrb[0].mxu0
        %v1039 = vadd.f32 %v437, %v1038
        %v1040 = vpop.f32.mrb[0].mxu0
        %v1041 = vpop.f32.mrb[0].mxu0
        %v1042 = vadd.f32 %v437, %v1041
        %v1043 = vpop.f32.mrb[0].mxu0
        %1044 = vmatprep.mubr.bf16.mxu0 0
        %1045 = vmatmul.mubr.bf16.gmra.mrb[0].mxu0 %v726
        %v1046 = vpop.f32.mrb[0].mxu0
        %v1047 = vadd.f32 %v437, %v1046
        %v1048 = vpop.f32.mrb[0].mxu0
        %v1049 = vpop.f32.mrb[0].mxu0
        %v1050 = vadd.f32 %v437, %v1049
        %v1051 = vpop.f32.mrb[0].mxu0
        %1052 = vdwg.mxu0
        %v1053 = vmax.f32 %v767, 0.0
        %v1054 = vmax.f32 %v770, 0.0
        %v1055 = vmax.f32 %v775, 0.0
        %v1056 = vmax.f32 %v778, 0.0
        %v1057 = vmax.f32 %v783, 0.0
        %v1058 = vmax.f32 %v786, 0.0
        %v1059 = vmax.f32 %v791, 0.0
        %v1060 = vmax.f32 %v794, 0.0
        %v1061 = vmax.f32 %v799, 0.0
        %v1062 = vmax.f32 %v802, 0.0
        %v1063 = vmax.f32 %v807, 0.0
        %v1064 = vmax.f32 %v810, 0.0
        %v1065 = vmax.f32 %v815, 0.0
        %v1066 = vmax.f32 %v818, 0.0
        %v1067 = vmax.f32 %v823, 0.0
        %v1068 = vmax.f32 %v826, 0.0
        %v1069 = vmax.f32 %v831, 0.0
        %v1070 = vmax.f32 %v834, 0.0
        %v1071 = vmax.f32 %v839, 0.0
        %v1072 = vmax.f32 %v842, 0.0
        %v1073 = vmax.f32 %v847, 0.0
        %v1074 = vmax.f32 %v850, 0.0
        %v1075 = vmax.f32 %v855, 0.0
        %v1076 = vmax.f32 %v858, 0.0
        %v1077 = vmax.f32 %v863, 0.0
        %v1078 = vmax.f32 %v866, 0.0
        %v1079 = vmax.f32 %v871, 0.0
        %v1080 = vmax.f32 %v874, 0.0
        %v1081 = vmax.f32 %v879, 0.0
        %v1082 = vmax.f32 %v882, 0.0
        %v1083 = vmax.f32 %v887, 0.0
        %v1084 = vmax.f32 %v890, 0.0
        %v1085 = vmax.f32 %v895, 0.0
        %v1086 = vmax.f32 %v898, 0.0
        %v1087 = vmax.f32 %v903, 0.0
        %v1088 = vmax.f32 %v906, 0.0
        %v1089 = vmax.f32 %v911, 0.0
        %v1090 = vmax.f32 %v914, 0.0
        %v1091 = vmax.f32 %v919, 0.0
        %v1092 = vmax.f32 %v922, 0.0
        %v1093 = vmax.f32 %v927, 0.0
        %v1094 = vmax.f32 %v930, 0.0
        %v1095 = vmax.f32 %v935, 0.0
        %v1096 = vmax.f32 %v938, 0.0
        %v1097 = vmax.f32 %v943, 0.0
        %v1098 = vmax.f32 %v946, 0.0
        %v1099 = vmax.f32 %v951, 0.0
        %v1100 = vmax.f32 %v954, 0.0
        %v1101 = vmax.f32 %v959, 0.0
        %v1102 = vmax.f32 %v962, 0.0
        %v1103 = vmax.f32 %v967, 0.0
        %v1104 = vmax.f32 %v970, 0.0
        %v1105 = vmax.f32 %v975, 0.0
        %v1106 = vmax.f32 %v978, 0.0
        %v1107 = vmax.f32 %v983, 0.0
        %v1108 = vmax.f32 %v986, 0.0
        %v1109 = vmax.f32 %v991, 0.0
        %v1110 = vmax.f32 %v994, 0.0
        %v1111 = vmax.f32 %v999, 0.0
        %v1112 = vmax.f32 %v1002, 0.0
        %v1113 = vmax.f32 %v1007, 0.0
        %v1114 = vmax.f32 %v1010, 0.0
        %v1115 = vmax.f32 %v1015, 0.0
        %v1116 = vmax.f32 %v1018, 0.0
        %v1117 = vmax.f32 %v1023, 0.0
        %v1118 = vmax.f32 %v1026, 0.0
        %v1119 = vmax.f32 %v1031, 0.0
        %v1120 = vmax.f32 %v1034, 0.0
        %v1121 = vmax.f32 %v1039, 0.0
        %v1122 = vmax.f32 %v1042, 0.0
        %v1123 = vmax.f32 %v1047, 0.0
        %v1124 = vmax.f32 %v1050, 0.0
        %v1125 = vld [vmem:[%s1] sm:$0xff]
        %v1126 = vld [vmem:[%s1 + $0x8] sm:$0xff]
        %v1127 = vld [vmem:[%s1 + $0x10] sm:$0xff]
        %v1128 = vld [vmem:[%s1 + $0x18] sm:$0xff]
        %v1129 = vld [vmem:[%s1 + $0x20] sm:$0xff]
        %v1130 = vld [vmem:[%s1 + $0x28] sm:$0xff]
        %v1131 = vld [vmem:[%s1 + $0x30] sm:$0xff]
        %v1132 = vld [vmem:[%s1 + $0x38] sm:$0xff]
        %v1133 = vld [vmem:[%s1 + $0x40] sm:$0xff]
        %v1134 = vld [vmem:[%s1 + $0x48] sm:$0xff]
        %v1135 = vld [vmem:[%s1 + $0x50] sm:$0xff]
        %v1136 = vld [vmem:[%s1 + $0x58] sm:$0xff]
        %v1137 = vld [vmem:[%s1 + $0x60] sm:$0xff]
        %v1138 = vld [vmem:[%s1 + $0x68] sm:$0xff]
        %v1139 = vld [vmem:[%s1 + $0x70] sm:$0xff]
        %v1140 = vld [vmem:[%s1 + $0x78] sm:$0xff]
        %v1141 = vld [vmem:[%s1 + $0x80] sm:$0xff]
        %v1142 = vld [vmem:[%s1 + $0x88] sm:$0xff]
        %v1143 = vld [vmem:[%s1 + $0x90] sm:$0xff]
        %v1144 = vld [vmem:[%s1 + $0x98] sm:$0xff]
        %v1145 = vld [vmem:[%s1 + $0xa0] sm:$0xff]
        %v1146 = vld [vmem:[%s1 + $0xa8] sm:$0xff]
        %v1147 = vld [vmem:[%s1 + $0xb0] sm:$0xff]
        %v1148 = vld [vmem:[%s1 + $0xb8] sm:$0xff]
        %v1149 = vld [vmem:[%s1 + $0xc0] sm:$0xff]
        %v1150 = vld [vmem:[%s1 + $0xc8] sm:$0xff]
        %v1151 = vld [vmem:[%s1 + $0xd0] sm:$0xff]
        %v1152 = vld [vmem:[%s1 + $0xd8] sm:$0xff]
        %v1153 = vld [vmem:[%s1 + $0xe0] sm:$0xff]
        %v1154 = vld [vmem:[%s1 + $0xe8] sm:$0xff]
        %v1155 = vld [vmem:[%s1 + $0xf0] sm:$0xff]
        %v1156 = vld [vmem:[%s1 + $0xf8] sm:$0xff]
        %v1157 = vld [vmem:[%s1 + $0x100] sm:$0xff]
        %v1158 = vld [vmem:[%s1 + $0x108] sm:$0xff]
        %v1159 = vld [vmem:[%s1 + $0x110] sm:$0xff]
        %v1160 = vld [vmem:[%s1 + $0x118] sm:$0xff]
        %v1161 = vld [vmem:[%s1 + $0x120] sm:$0xff]
        %v1162 = vld [vmem:[%s1 + $0x128] sm:$0xff]
        %v1163 = vld [vmem:[%s1 + $0x130] sm:$0xff]
        %v1164 = vld [vmem:[%s1 + $0x138] sm:$0xff]
        %v1165 = vld [vmem:[%s1 + $0x140] sm:$0xff]
        %v1166 = vld [vmem:[%s1 + $0x148] sm:$0xff]
        %v1167 = vld [vmem:[%s1 + $0x150] sm:$0xff]
        %v1168 = vld [vmem:[%s1 + $0x158] sm:$0xff]
        %v1169 = vld [vmem:[%s1 + $0x160] sm:$0xff]
        %v1170 = vld [vmem:[%s1 + $0x168] sm:$0xff]
        %v1171 = vld [vmem:[%s1 + $0x170] sm:$0xff]
        %v1172 = vld [vmem:[%s1 + $0x178] sm:$0xff]
        %v1173 = vld [vmem:[%s1 + $0x180] sm:$0xff]
        %v1174 = vld [vmem:[%s1 + $0x188] sm:$0xff]
        %v1175 = vld [vmem:[%s1 + $0x190] sm:$0xff]
        %v1176 = vld [vmem:[%s1 + $0x198] sm:$0xff]
        %v1177 = vld [vmem:[%s1 + $0x1a0] sm:$0xff]
        %v1178 = vld [vmem:[%s1 + $0x1a8] sm:$0xff]
        %v1179 = vld [vmem:[%s1 + $0x1b0] sm:$0xff]
        %v1180 = vld [vmem:[%s1 + $0x1b8] sm:$0xff]
        %v1181 = vld [vmem:[%s1 + $0x1c0] sm:$0xff]
        %v1182 = vld [vmem:[%s1 + $0x1c8] sm:$0xff]
        %v1183 = vld [vmem:[%s1 + $0x1d0] sm:$0xff]
        %v1184 = vld [vmem:[%s1 + $0x1d8] sm:$0xff]
        %v1185 = vld [vmem:[%s1 + $0x1e0] sm:$0xff]
        %v1186 = vld [vmem:[%s1 + $0x1e8] sm:$0xff]
        %v1187 = vld [vmem:[%s1 + $0x1f0] sm:$0xff]
        %v1188 = vld [vmem:[%s1 + $0x1f8] sm:$0xff]
        %v1189 = vld [vmem:[%s1 + $0x200] sm:$0xff]
        %v1190 = vld [vmem:[%s1 + $0x208] sm:$0xff]
        %v1191 = vld [vmem:[%s1 + $0x210] sm:$0xff]
        %v1192 = vld [vmem:[%s1 + $0x218] sm:$0xff]
        %v1193 = vld [vmem:[%s1 + $0x220] sm:$0xff]
        %v1194 = vld [vmem:[%s1 + $0x228] sm:$0xff]
        %v1195 = vld [vmem:[%s1 + $0x230] sm:$0xff]
        %v1196 = vld [vmem:[%s1 + $0x238] sm:$0xff]
        %1198 = vset.pattern.permute.xlu0 0
        %1199 = vperm.xlu0 %1198, %v1125
        %v1200 = vpop.permute.xlu0 %1199
        %1203 = vset.pattern.permute.xlu0 0
        %1204 = vperm.xlu0 %1203, %v1126
        %v1205 = vpop.permute.xlu0 %1204
        %1208 = vset.pattern.permute.xlu0 0
        %1209 = vperm.xlu0 %1208, %v1127
        %v1210 = vpop.permute.xlu0 %1209
        %1213 = vset.pattern.permute.xlu0 0
        %1214 = vperm.xlu0 %1213, %v1128
        %v1215 = vpop.permute.xlu0 %1214
        %1218 = vset.pattern.permute.xlu0 0
        %1219 = vperm.xlu0 %1218, %v1129
        %v1220 = vpop.permute.xlu0 %1219
        %1223 = vset.pattern.permute.xlu0 0
        %1224 = vperm.xlu0 %1223, %v1130
        %v1225 = vpop.permute.xlu0 %1224
        %1228 = vset.pattern.permute.xlu0 0
        %1229 = vperm.xlu0 %1228, %v1131
        %v1230 = vpop.permute.xlu0 %1229
        %1233 = vset.pattern.permute.xlu0 0
        %1234 = vperm.xlu0 %1233, %v1132
        %v1235 = vpop.permute.xlu0 %1234
        %1238 = vset.pattern.permute.xlu0 0
        %1239 = vperm.xlu0 %1238, %v1133
        %v1240 = vpop.permute.xlu0 %1239
        %1243 = vset.pattern.permute.xlu0 0
        %1244 = vperm.xlu0 %1243, %v1134
        %v1245 = vpop.permute.xlu0 %1244
        %1248 = vset.pattern.permute.xlu0 0
        %1249 = vperm.xlu0 %1248, %v1135
        %v1250 = vpop.permute.xlu0 %1249
        %1253 = vset.pattern.permute.xlu0 0
        %1254 = vperm.xlu0 %1253, %v1136
        %v1255 = vpop.permute.xlu0 %1254
        %1258 = vset.pattern.permute.xlu0 0
        %1259 = vperm.xlu0 %1258, %v1137
        %v1260 = vpop.permute.xlu0 %1259
        %1263 = vset.pattern.permute.xlu0 0
        %1264 = vperm.xlu0 %1263, %v1138
        %v1265 = vpop.permute.xlu0 %1264
        %1268 = vset.pattern.permute.xlu0 0
        %1269 = vperm.xlu0 %1268, %v1139
        %v1270 = vpop.permute.xlu0 %1269
        %1273 = vset.pattern.permute.xlu0 0
        %1274 = vperm.xlu0 %1273, %v1140
        %v1275 = vpop.permute.xlu0 %1274
        %1278 = vset.pattern.permute.xlu0 0
        %1279 = vperm.xlu0 %1278, %v1141
        %v1280 = vpop.permute.xlu0 %1279
        %1283 = vset.pattern.permute.xlu0 0
        %1284 = vperm.xlu0 %1283, %v1142
        %v1285 = vpop.permute.xlu0 %1284
        %1288 = vset.pattern.permute.xlu0 0
        %1289 = vperm.xlu0 %1288, %v1143
        %v1290 = vpop.permute.xlu0 %1289
        %1293 = vset.pattern.permute.xlu0 0
        %1294 = vperm.xlu0 %1293, %v1144
        %v1295 = vpop.permute.xlu0 %1294
        %1298 = vset.pattern.permute.xlu0 0
        %1299 = vperm.xlu0 %1298, %v1145
        %v1300 = vpop.permute.xlu0 %1299
        %1303 = vset.pattern.permute.xlu0 0
        %1304 = vperm.xlu0 %1303, %v1146
        %v1305 = vpop.permute.xlu0 %1304
        %1308 = vset.pattern.permute.xlu0 0
        %1309 = vperm.xlu0 %1308, %v1147
        %v1310 = vpop.permute.xlu0 %1309
        %1313 = vset.pattern.permute.xlu0 0
        %1314 = vperm.xlu0 %1313, %v1148
        %v1315 = vpop.permute.xlu0 %1314
        %1318 = vset.pattern.permute.xlu0 0
        %1319 = vperm.xlu0 %1318, %v1149
        %v1320 = vpop.permute.xlu0 %1319
        %1323 = vset.pattern.permute.xlu0 0
        %1324 = vperm.xlu0 %1323, %v1150
        %v1325 = vpop.permute.xlu0 %1324
        %1328 = vset.pattern.permute.xlu0 0
        %1329 = vperm.xlu0 %1328, %v1151
        %v1330 = vpop.permute.xlu0 %1329
        %1333 = vset.pattern.permute.xlu0 0
        %1334 = vperm.xlu0 %1333, %v1152
        %v1335 = vpop.permute.xlu0 %1334
        %1338 = vset.pattern.permute.xlu0 0
        %1339 = vperm.xlu0 %1338, %v1153
        %v1340 = vpop.permute.xlu0 %1339
        %1343 = vset.pattern.permute.xlu0 0
        %1344 = vperm.xlu0 %1343, %v1154
        %v1345 = vpop.permute.xlu0 %1344
        %1348 = vset.pattern.permute.xlu0 0
        %1349 = vperm.xlu0 %1348, %v1155
        %v1350 = vpop.permute.xlu0 %1349
        %1353 = vset.pattern.permute.xlu0 0
        %1354 = vperm.xlu0 %1353, %v1156
        %v1355 = vpop.permute.xlu0 %1354
        %1358 = vset.pattern.permute.xlu0 0
        %1359 = vperm.xlu0 %1358, %v1157
        %v1360 = vpop.permute.xlu0 %1359
        %1363 = vset.pattern.permute.xlu0 0
        %1364 = vperm.xlu0 %1363, %v1158
        %v1365 = vpop.permute.xlu0 %1364
        %1368 = vset.pattern.permute.xlu0 0
        %1369 = vperm.xlu0 %1368, %v1159
        %v1370 = vpop.permute.xlu0 %1369
        %1373 = vset.pattern.permute.xlu0 0
        %1374 = vperm.xlu0 %1373, %v1160
        %v1375 = vpop.permute.xlu0 %1374
        %1378 = vset.pattern.permute.xlu0 0
        %1379 = vperm.xlu0 %1378, %v1161
        %v1380 = vpop.permute.xlu0 %1379
        %1383 = vset.pattern.permute.xlu0 0
        %1384 = vperm.xlu0 %1383, %v1162
        %v1385 = vpop.permute.xlu0 %1384
        %1388 = vset.pattern.permute.xlu0 0
        %1389 = vperm.xlu0 %1388, %v1163
        %v1390 = vpop.permute.xlu0 %1389
        %1393 = vset.pattern.permute.xlu0 0
        %1394 = vperm.xlu0 %1393, %v1164
        %v1395 = vpop.permute.xlu0 %1394
        %1398 = vset.pattern.permute.xlu0 0
        %1399 = vperm.xlu0 %1398, %v1165
        %v1400 = vpop.permute.xlu0 %1399
        %1403 = vset.pattern.permute.xlu0 0
        %1404 = vperm.xlu0 %1403, %v1166
        %v1405 = vpop.permute.xlu0 %1404
        %1408 = vset.pattern.permute.xlu0 0
        %1409 = vperm.xlu0 %1408, %v1167
        %v1410 = vpop.permute.xlu0 %1409
        %1413 = vset.pattern.permute.xlu0 0
        %1414 = vperm.xlu0 %1413, %v1168
        %v1415 = vpop.permute.xlu0 %1414
        %1418 = vset.pattern.permute.xlu0 0
        %1419 = vperm.xlu0 %1418, %v1169
        %v1420 = vpop.permute.xlu0 %1419
        %1423 = vset.pattern.permute.xlu0 0
        %1424 = vperm.xlu0 %1423, %v1170
        %v1425 = vpop.permute.xlu0 %1424
        %1428 = vset.pattern.permute.xlu0 0
        %1429 = vperm.xlu0 %1428, %v1171
        %v1430 = vpop.permute.xlu0 %1429
        %1433 = vset.pattern.permute.xlu0 0
        %1434 = vperm.xlu0 %1433, %v1172
        %v1435 = vpop.permute.xlu0 %1434
        %1438 = vset.pattern.permute.xlu0 0
        %1439 = vperm.xlu0 %1438, %v1173
        %v1440 = vpop.permute.xlu0 %1439
        %1443 = vset.pattern.permute.xlu0 0
        %1444 = vperm.xlu0 %1443, %v1174
        %v1445 = vpop.permute.xlu0 %1444
        %1448 = vset.pattern.permute.xlu0 0
        %1449 = vperm.xlu0 %1448, %v1175
        %v1450 = vpop.permute.xlu0 %1449
        %1453 = vset.pattern.permute.xlu0 0
        %1454 = vperm.xlu0 %1453, %v1176
        %v1455 = vpop.permute.xlu0 %1454
        %1458 = vset.pattern.permute.xlu0 0
        %1459 = vperm.xlu0 %1458, %v1177
        %v1460 = vpop.permute.xlu0 %1459
        %1463 = vset.pattern.permute.xlu0 0
        %1464 = vperm.xlu0 %1463, %v1178
        %v1465 = vpop.permute.xlu0 %1464
        %1468 = vset.pattern.permute.xlu0 0
        %1469 = vperm.xlu0 %1468, %v1179
        %v1470 = vpop.permute.xlu0 %1469
        %1473 = vset.pattern.permute.xlu0 0
        %1474 = vperm.xlu0 %1473, %v1180
        %v1475 = vpop.permute.xlu0 %1474
        %1478 = vset.pattern.permute.xlu0 0
        %1479 = vperm.xlu0 %1478, %v1181
        %v1480 = vpop.permute.xlu0 %1479
        %1483 = vset.pattern.permute.xlu0 0
        %1484 = vperm.xlu0 %1483, %v1182
        %v1485 = vpop.permute.xlu0 %1484
        %1488 = vset.pattern.permute.xlu0 0
        %1489 = vperm.xlu0 %1488, %v1183
        %v1490 = vpop.permute.xlu0 %1489
        %1493 = vset.pattern.permute.xlu0 0
        %1494 = vperm.xlu0 %1493, %v1184
        %v1495 = vpop.permute.xlu0 %1494
        %1498 = vset.pattern.permute.xlu0 0
        %1499 = vperm.xlu0 %1498, %v1185
        %v1500 = vpop.permute.xlu0 %1499
        %1503 = vset.pattern.permute.xlu0 0
        %1504 = vperm.xlu0 %1503, %v1186
        %v1505 = vpop.permute.xlu0 %1504
        %1508 = vset.pattern.permute.xlu0 0
        %1509 = vperm.xlu0 %1508, %v1187
        %v1510 = vpop.permute.xlu0 %1509
        %1513 = vset.pattern.permute.xlu0 0
        %1514 = vperm.xlu0 %1513, %v1188
        %v1515 = vpop.permute.xlu0 %1514
        %1518 = vset.pattern.permute.xlu0 0
        %1519 = vperm.xlu0 %1518, %v1189
        %v1520 = vpop.permute.xlu0 %1519
        %1523 = vset.pattern.permute.xlu0 0
        %1524 = vperm.xlu0 %1523, %v1190
        %v1525 = vpop.permute.xlu0 %1524
        %1528 = vset.pattern.permute.xlu0 0
        %1529 = vperm.xlu0 %1528, %v1191
        %v1530 = vpop.permute.xlu0 %1529
        %1533 = vset.pattern.permute.xlu0 0
        %1534 = vperm.xlu0 %1533, %v1192
        %v1535 = vpop.permute.xlu0 %1534
        %1538 = vset.pattern.permute.xlu0 0
        %1539 = vperm.xlu0 %1538, %v1193
        %v1540 = vpop.permute.xlu0 %1539
        %1543 = vset.pattern.permute.xlu0 0
        %1544 = vperm.xlu0 %1543, %v1194
        %v1545 = vpop.permute.xlu0 %1544
        %1548 = vset.pattern.permute.xlu0 0
        %1549 = vperm.xlu0 %1548, %v1195
        %v1550 = vpop.permute.xlu0 %1549
        %1553 = vset.pattern.permute.xlu0 0
        %1554 = vperm.xlu0 %1553, %v1196
        %v1555 = vpop.permute.xlu0 %1554
        %v1557 = vmul.f32 %v1053, %v1200
        %v1558 = vmul.f32 %v1054, %v1205
        %v1559 = vmul.f32 %v1055, %v1210
        %v1560 = vmul.f32 %v1056, %v1215
        %v1561 = vmul.f32 %v1057, %v1220
        %v1562 = vmul.f32 %v1058, %v1225
        %v1563 = vmul.f32 %v1059, %v1230
        %v1564 = vmul.f32 %v1060, %v1235
        %v1565 = vmul.f32 %v1061, %v1240
        %v1566 = vmul.f32 %v1062, %v1245
        %v1567 = vmul.f32 %v1063, %v1250
        %v1568 = vmul.f32 %v1064, %v1255
        %v1569 = vmul.f32 %v1065, %v1260
        %v1570 = vmul.f32 %v1066, %v1265
        %v1571 = vmul.f32 %v1067, %v1270
        %v1572 = vmul.f32 %v1068, %v1275
        %v1573 = vmul.f32 %v1069, %v1280
        %v1574 = vmul.f32 %v1070, %v1285
        %v1575 = vmul.f32 %v1071, %v1290
        %v1576 = vmul.f32 %v1072, %v1295
        %v1577 = vmul.f32 %v1073, %v1300
        %v1578 = vmul.f32 %v1074, %v1305
        %v1579 = vmul.f32 %v1075, %v1310
        %v1580 = vmul.f32 %v1076, %v1315
        %v1581 = vmul.f32 %v1077, %v1320
        %v1582 = vmul.f32 %v1078, %v1325
        %v1583 = vmul.f32 %v1079, %v1330
        %v1584 = vmul.f32 %v1080, %v1335
        %v1585 = vmul.f32 %v1081, %v1340
        %v1586 = vmul.f32 %v1082, %v1345
        %v1587 = vmul.f32 %v1083, %v1350
        %v1588 = vmul.f32 %v1084, %v1355
        %v1589 = vmul.f32 %v1085, %v1360
        %v1590 = vmul.f32 %v1086, %v1365
        %v1591 = vmul.f32 %v1087, %v1370
        %v1592 = vmul.f32 %v1088, %v1375
        %v1593 = vmul.f32 %v1089, %v1380
        %v1594 = vmul.f32 %v1090, %v1385
        %v1595 = vmul.f32 %v1091, %v1390
        %v1596 = vmul.f32 %v1092, %v1395
        %v1597 = vmul.f32 %v1093, %v1400
        %v1598 = vmul.f32 %v1094, %v1405
        %v1599 = vmul.f32 %v1095, %v1410
        %v1600 = vmul.f32 %v1096, %v1415
        %v1601 = vmul.f32 %v1097, %v1420
        %v1602 = vmul.f32 %v1098, %v1425
        %v1603 = vmul.f32 %v1099, %v1430
        %v1604 = vmul.f32 %v1100, %v1435
        %v1605 = vmul.f32 %v1101, %v1440
        %v1606 = vmul.f32 %v1102, %v1445
        %v1607 = vmul.f32 %v1103, %v1450
        %v1608 = vmul.f32 %v1104, %v1455
        %v1609 = vmul.f32 %v1105, %v1460
        %v1610 = vmul.f32 %v1106, %v1465
        %v1611 = vmul.f32 %v1107, %v1470
        %v1612 = vmul.f32 %v1108, %v1475
        %v1613 = vmul.f32 %v1109, %v1480
        %v1614 = vmul.f32 %v1110, %v1485
        %v1615 = vmul.f32 %v1111, %v1490
        %v1616 = vmul.f32 %v1112, %v1495
        %v1617 = vmul.f32 %v1113, %v1500
        %v1618 = vmul.f32 %v1114, %v1505
        %v1619 = vmul.f32 %v1115, %v1510
        %v1620 = vmul.f32 %v1116, %v1515
        %v1621 = vmul.f32 %v1117, %v1520
        %v1622 = vmul.f32 %v1118, %v1525
        %v1623 = vmul.f32 %v1119, %v1530
        %v1624 = vmul.f32 %v1120, %v1535
        %v1625 = vmul.f32 %v1121, %v1540
        %v1626 = vmul.f32 %v1122, %v1545
        %v1627 = vmul.f32 %v1123, %v1550
        %v1628 = vmul.f32 %v1124, %v1555
        %vm1629 = vcmask 64512
        %1630 = vst.msk [vmem:[#allocation2] sm:$0xff] %vm1629, %v1557
        %1631 = vst.msk [vmem:[#allocation2 + $0x8] sm:$0xff] %vm1629, %v1558
        %1632 = vst.msk [vmem:[#allocation2 + $0x10] sm:$0xff] %vm1629, %v1559
        %1633 = vst.msk [vmem:[#allocation2 + $0x18] sm:$0xff] %vm1629, %v1560
        %1634 = vst.msk [vmem:[#allocation2 + $0x20] sm:$0xff] %vm1629, %v1561
        %1635 = vst.msk [vmem:[#allocation2 + $0x28] sm:$0xff] %vm1629, %v1562
        %1636 = vst.msk [vmem:[#allocation2 + $0x30] sm:$0xff] %vm1629, %v1563
        %1637 = vst.msk [vmem:[#allocation2 + $0x38] sm:$0xff] %vm1629, %v1564
        %1638 = vst.msk [vmem:[#allocation2 + $0x40] sm:$0xff] %vm1629, %v1565
        %1639 = vst.msk [vmem:[#allocation2 + $0x48] sm:$0xff] %vm1629, %v1566
        %1640 = vst.msk [vmem:[#allocation2 + $0x50] sm:$0xff] %vm1629, %v1567
        %1641 = vst.msk [vmem:[#allocation2 + $0x58] sm:$0xff] %vm1629, %v1568
        %1642 = vst.msk [vmem:[#allocation2 + $0x60] sm:$0xff] %vm1629, %v1569
        %1643 = vst.msk [vmem:[#allocation2 + $0x68] sm:$0xff] %vm1629, %v1570
        %1644 = vst.msk [vmem:[#allocation2 + $0x70] sm:$0xff] %vm1629, %v1571
        %1645 = vst.msk [vmem:[#allocation2 + $0x78] sm:$0xff] %vm1629, %v1572
        %1646 = vst.msk [vmem:[#allocation2 + $0x80] sm:$0xff] %vm1629, %v1573
        %1647 = vst.msk [vmem:[#allocation2 + $0x88] sm:$0xff] %vm1629, %v1574
        %1648 = vst.msk [vmem:[#allocation2 + $0x90] sm:$0xff] %vm1629, %v1575
        %1649 = vst.msk [vmem:[#allocation2 + $0x98] sm:$0xff] %vm1629, %v1576
        %1650 = vst.msk [vmem:[#allocation2 + $0xa0] sm:$0xff] %vm1629, %v1577
        %1651 = vst.msk [vmem:[#allocation2 + $0xa8] sm:$0xff] %vm1629, %v1578
        %1652 = vst.msk [vmem:[#allocation2 + $0xb0] sm:$0xff] %vm1629, %v1579
        %1653 = vst.msk [vmem:[#allocation2 + $0xb8] sm:$0xff] %vm1629, %v1580
        %1654 = vst.msk [vmem:[#allocation2 + $0xc0] sm:$0xff] %vm1629, %v1581
        %1655 = vst.msk [vmem:[#allocation2 + $0xc8] sm:$0xff] %vm1629, %v1582
        %1656 = vst.msk [vmem:[#allocation2 + $0xd0] sm:$0xff] %vm1629, %v1583
        %1657 = vst.msk [vmem:[#allocation2 + $0xd8] sm:$0xff] %vm1629, %v1584
        %1658 = vst.msk [vmem:[#allocation2 + $0xe0] sm:$0xff] %vm1629, %v1585
        %1659 = vst.msk [vmem:[#allocation2 + $0xe8] sm:$0xff] %vm1629, %v1586
        %1660 = vst.msk [vmem:[#allocation2 + $0xf0] sm:$0xff] %vm1629, %v1587
        %1661 = vst.msk [vmem:[#allocation2 + $0xf8] sm:$0xff] %vm1629, %v1588
        %1662 = vst.msk [vmem:[#allocation2 + $0x100] sm:$0xff] %vm1629, %v1589
        %1663 = vst.msk [vmem:[#allocation2 + $0x108] sm:$0xff] %vm1629, %v1590
        %1664 = vst.msk [vmem:[#allocation2 + $0x110] sm:$0xff] %vm1629, %v1591
        %1665 = vst.msk [vmem:[#allocation2 + $0x118] sm:$0xff] %vm1629, %v1592
        %1666 = vst.msk [vmem:[#allocation2 + $0x120] sm:$0xff] %vm1629, %v1593
        %1667 = vst.msk [vmem:[#allocation2 + $0x128] sm:$0xff] %vm1629, %v1594
        %1668 = vst.msk [vmem:[#allocation2 + $0x130] sm:$0xff] %vm1629, %v1595
        %1669 = vst.msk [vmem:[#allocation2 + $0x138] sm:$0xff] %vm1629, %v1596
        %1670 = vst.msk [vmem:[#allocation2 + $0x140] sm:$0xff] %vm1629, %v1597
        %1671 = vst.msk [vmem:[#allocation2 + $0x148] sm:$0xff] %vm1629, %v1598
        %1672 = vst.msk [vmem:[#allocation2 + $0x150] sm:$0xff] %vm1629, %v1599
        %1673 = vst.msk [vmem:[#allocation2 + $0x158] sm:$0xff] %vm1629, %v1600
        %1674 = vst.msk [vmem:[#allocation2 + $0x160] sm:$0xff] %vm1629, %v1601
        %1675 = vst.msk [vmem:[#allocation2 + $0x168] sm:$0xff] %vm1629, %v1602
        %1676 = vst.msk [vmem:[#allocation2 + $0x170] sm:$0xff] %vm1629, %v1603
        %1677 = vst.msk [vmem:[#allocation2 + $0x178] sm:$0xff] %vm1629, %v1604
        %1678 = vst.msk [vmem:[#allocation2 + $0x180] sm:$0xff] %vm1629, %v1605
        %1679 = vst.msk [vmem:[#allocation2 + $0x188] sm:$0xff] %vm1629, %v1606
        %1680 = vst.msk [vmem:[#allocation2 + $0x190] sm:$0xff] %vm1629, %v1607
        %1681 = vst.msk [vmem:[#allocation2 + $0x198] sm:$0xff] %vm1629, %v1608
        %1682 = vst.msk [vmem:[#allocation2 + $0x1a0] sm:$0xff] %vm1629, %v1609
        %1683 = vst.msk [vmem:[#allocation2 + $0x1a8] sm:$0xff] %vm1629, %v1610
        %1684 = vst.msk [vmem:[#allocation2 + $0x1b0] sm:$0xff] %vm1629, %v1611
        %1685 = vst.msk [vmem:[#allocation2 + $0x1b8] sm:$0xff] %vm1629, %v1612
        %1686 = vst.msk [vmem:[#allocation2 + $0x1c0] sm:$0xff] %vm1629, %v1613
        %1687 = vst.msk [vmem:[#allocation2 + $0x1c8] sm:$0xff] %vm1629, %v1614
        %1688 = vst.msk [vmem:[#allocation2 + $0x1d0] sm:$0xff] %vm1629, %v1615
        %1689 = vst.msk [vmem:[#allocation2 + $0x1d8] sm:$0xff] %vm1629, %v1616
        %1690 = vst.msk [vmem:[#allocation2 + $0x1e0] sm:$0xff] %vm1629, %v1617
        %1691 = vst.msk [vmem:[#allocation2 + $0x1e8] sm:$0xff] %vm1629, %v1618
        %1692 = vst.msk [vmem:[#allocation2 + $0x1f0] sm:$0xff] %vm1629, %v1619
        %1693 = vst.msk [vmem:[#allocation2 + $0x1f8] sm:$0xff] %vm1629, %v1620
        %1694 = vst.msk [vmem:[#allocation2 + $0x200] sm:$0xff] %vm1629, %v1621
        %1695 = vst.msk [vmem:[#allocation2 + $0x208] sm:$0xff] %vm1629, %v1622
        %1696 = vst.msk [vmem:[#allocation2 + $0x210] sm:$0xff] %vm1629, %v1623
        %1697 = vst.msk [vmem:[#allocation2 + $0x218] sm:$0xff] %vm1629, %v1624
        %1698 = vst.msk [vmem:[#allocation2 + $0x220] sm:$0xff] %vm1629, %v1625
        %1699 = vst.msk [vmem:[#allocation2 + $0x228] sm:$0xff] %vm1629, %v1626
        %1700 = vst.msk [vmem:[#allocation2 + $0x230] sm:$0xff] %vm1629, %v1627
        %1701 = vst.msk [vmem:[#allocation2 + $0x238] sm:$0xff] %vm1629, %v1628
        %v1702 = vld [vmem:[#allocation2] sm:$0xff]
        %v1703 = vld [vmem:[#allocation2 + $0x10] sm:$0xff]
        %v1704 = vld [vmem:[#allocation2 + $0x20] sm:$0xff]
        %v1705 = vld [vmem:[#allocation2 + $0x30] sm:$0xff]
        %v1706 = vld [vmem:[#allocation2 + $0x40] sm:$0xff]
        %v1707 = vld [vmem:[#allocation2 + $0x50] sm:$0xff]
        %v1708 = vld [vmem:[#allocation2 + $0x60] sm:$0xff]
        %v1709 = vld [vmem:[#allocation2 + $0x70] sm:$0xff]
        %v1710 = vpack.c.bf16 %v1703, %v1702
        %v1711 = vpack.c.bf16 %v1705, %v1704
        %v1712 = vpack.c.bf16 %v1707, %v1706
        %v1713 = vpack.c.bf16 %v1709, %v1708
        %v1714 = vld [vmem:[%s4] sm:$0xf]
        %s1715 = scalar_lea.vmem [#allocation2], 144
        %v1716 = vld [vmem:[%s1715] sm:$0xff]
        %v1717 = vld [vmem:[%s1715 + $0x10] sm:$0xff]
        %v1718 = vld [vmem:[%s1715 + $0x20] sm:$0xff]
        %v1719 = vld [vmem:[%s1715 + $0x30] sm:$0xff]
        %v1720 = vld [vmem:[%s1715 + $0x40] sm:$0xff]
        %v1721 = vld [vmem:[%s1715 + $0x50] sm:$0xff]
        %v1722 = vld [vmem:[%s1715 + $0x60] sm:$0xff]
        %v1723 = vld [vmem:[%s1715 + $0x70] sm:$0xff]
        %v1724 = vpack.c.bf16 %v1717, %v1716
        %v1725 = vpack.c.bf16 %v1719, %v1718
        %v1726 = vpack.c.bf16 %v1721, %v1720
        %v1727 = vpack.c.bf16 %v1723, %v1722
        %s1728 = scalar_lea.vmem %s4, 4
        %v1729 = vld [vmem:[%s1728] sm:$0xf]
        %v1731 = vsel %vm1629, %v1724, 0
        %v1734 = vsel %vm1629, %v1725, 0
        %v1737 = vsel %vm1629, %v1726, 0
        %v1740 = vsel %vm1629, %v1727, 0
        %vm1742 = vcmask 1043456
        %v1744 = vsel %vm1742, %v1729, 0
        %1746 = vmatprep.subr.bf16.mxu0 0
        %1747 = vmatpush1.bf16.msra.mxu0 %v1744
        %1748 = vmatprep.subr.bf16.mxu0 0
        %1749 = vmatpush1.bf16.msra.mxu0 0
        %1750 = vmatprep.subr.bf16.mxu0 0
        %1751 = vmatpush1.bf16.msra.mxu0 0
        %1752 = vmatprep.subr.bf16.mxu0 0
        %1753 = vmatpush1.bf16.msra.mxu0 0
        %1754 = vmatprep.subr.bf16.mxu0 0
        %1755 = vmatpush1.bf16.msra.mxu0 0
        %1756 = vmatprep.subr.bf16.mxu0 0
        %1757 = vmatpush1.bf16.msra.mxu0 0
        %1758 = vmatprep.subr.bf16.mxu0 0
        %1759 = vmatpush1.bf16.msra.mxu0 0
        %1760 = vmatprep.subr.bf16.mxu0 0
        %1761 = vmatpush1.bf16.msra.mxu0 0
        %1762 = vmatprep.subr.bf16.mxu0 0
        %1763 = vmatpush1.bf16.msra.mxu0 0
        %1764 = vmatprep.subr.bf16.mxu0 0
        %1765 = vmatpush1.bf16.msra.mxu0 0
        %1766 = vmatprep.subr.bf16.mxu0 0
        %1767 = vmatpush1.bf16.msra.mxu0 0
        %1768 = vmatprep.subr.bf16.mxu0 0
        %1769 = vmatpush1.bf16.msra.mxu0 0
        %1770 = vmatprep.subr.bf16.mxu0 0
        %1771 = vmatpush1.bf16.msra.mxu0 0
        %1772 = vmatprep.subr.bf16.mxu0 0
        %1773 = vmatpush1.bf16.msra.mxu0 0
        %1774 = vmatprep.subr.bf16.mxu0 0
        %1775 = vmatpush1.bf16.msra.mxu0 0
        %1776 = vmatprep.subr.bf16.mxu0 0
        %1777 = vmatpush1.bf16.msra.mxu0 0
        %1778 = vmatprep.mubr.bf16.mxu0 0
        %1779 = vmatmul.mubr.bf16.gmra.mrb[0].mxu0 %v1731
        %v1780 = vpop.f32.mrb[0].mxu0
        %v1781 = vadd.f32 0.0, %v1780
        %v1782 = vpop.f32.mrb[0].mxu0
        %v1783 = vpop.f32.mrb[0].mxu0
        %v1784 = vadd.f32 0.0, %v1783
        %v1785 = vpop.f32.mrb[0].mxu0
        %1786 = vmatprep.mubr.bf16.mxu0 0
        %1787 = vmatmul.mubr.bf16.gmra.mrb[0].mxu0 %v1734
        %v1788 = vpop.f32.mrb[0].mxu0
        %v1789 = vadd.f32 0.0, %v1788
        %v1790 = vpop.f32.mrb[0].mxu0
        %v1791 = vpop.f32.mrb[0].mxu0
        %v1792 = vadd.f32 0.0, %v1791
        %v1793 = vpop.f32.mrb[0].mxu0
        %1794 = vmatprep.mubr.bf16.mxu0 0
        %1795 = vmatmul.mubr.bf16.gmra.mrb[0].mxu0 %v1737
        %v1796 = vpop.f32.mrb[0].mxu0
        %v1797 = vadd.f32 0.0, %v1796
        %v1798 = vpop.f32.mrb[0].mxu0
        %v1799 = vpop.f32.mrb[0].mxu0
        %v1800 = vadd.f32 0.0, %v1799
        %v1801 = vpop.f32.mrb[0].mxu0
        %1802 = vmatprep.mubr.bf16.mxu0 0
        %1803 = vmatmul.mubr.bf16.gmra.mrb[0].mxu0 %v1740
        %v1804 = vpop.f32.mrb[0].mxu0
        %v1805 = vadd.f32 0.0, %v1804
        %v1806 = vpop.f32.mrb[0].mxu0
        %v1807 = vpop.f32.mrb[0].mxu0
        %v1808 = vadd.f32 0.0, %v1807
        %v1809 = vpop.f32.mrb[0].mxu0
        %1810 = vdwg.mxu0
        %v1812 = vsel %vm1629, %v1710, 0
        %v1815 = vsel %vm1629, %v1711, 0
        %v1818 = vsel %vm1629, %v1712, 0
        %v1821 = vsel %vm1629, %v1713, 0
        %v1824 = vsel %vm1742, %v1714, 0
        %1826 = vmatprep.subr.bf16.mxu0 0
        %1827 = vmatpush1.bf16.msra.mxu0 %v1824
        %1828 = vmatprep.subr.bf16.mxu0 0
        %1829 = vmatpush1.bf16.msra.mxu0 0
        %1830 = vmatprep.subr.bf16.mxu0 0
        %1831 = vmatpush1.bf16.msra.mxu0 0
        %1832 = vmatprep.subr.bf16.mxu0 0
        %1833 = vmatpush1.bf16.msra.mxu0 0
        %1834 = vmatprep.subr.bf16.mxu0 0
        %1835 = vmatpush1.bf16.msra.mxu0 0
        %1836 = vmatprep.subr.bf16.mxu0 0
        %1837 = vmatpush1.bf16.msra.mxu0 0
        %1838 = vmatprep.subr.bf16.mxu0 0
        %1839 = vmatpush1.bf16.msra.mxu0 0
        %1840 = vmatprep.subr.bf16.mxu0 0
        %1841 = vmatpush1.bf16.msra.mxu0 0
        %1842 = vmatprep.subr.bf16.mxu0 0
        %1843 = vmatpush1.bf16.msra.mxu0 0
        %1844 = vmatprep.subr.bf16.mxu0 0
        %1845 = vmatpush1.bf16.msra.mxu0 0
        %1846 = vmatprep.subr.bf16.mxu0 0
        %1847 = vmatpush1.bf16.msra.mxu0 0
        %1848 = vmatprep.subr.bf16.mxu0 0
        %1849 = vmatpush1.bf16.msra.mxu0 0
        %1850 = vmatprep.subr.bf16.mxu0 0
        %1851 = vmatpush1.bf16.msra.mxu0 0
        %1852 = vmatprep.subr.bf16.mxu0 0
        %1853 = vmatpush1.bf16.msra.mxu0 0
        %1854 = vmatprep.subr.bf16.mxu0 0
        %1855 = vmatpush1.bf16.msra.mxu0 0
        %1856 = vmatprep.subr.bf16.mxu0 0
        %1857 = vmatpush1.bf16.msra.mxu0 0
        %1858 = vmatprep.mubr.bf16.mxu0 0
        %1859 = vmatmul.mubr.bf16.gmra.mrb[0].mxu0 %v1812
        %v1860 = vpop.f32.mrb[0].mxu0
        %v1861 = vadd.f32 %v1781, %v1860
        %v1862 = vpop.f32.mrb[0].mxu0
        %v1863 = vpop.f32.mrb[0].mxu0
        %v1864 = vadd.f32 %v1784, %v1863
        %v1865 = vpop.f32.mrb[0].mxu0
        %1866 = vmatprep.mubr.bf16.mxu0 0
        %1867 = vmatmul.mubr.bf16.gmra.mrb[0].mxu0 %v1815
        %v1868 = vpop.f32.mrb[0].mxu0
        %v1869 = vadd.f32 %v1789, %v1868
        %v1870 = vpop.f32.mrb[0].mxu0
        %v1871 = vpop.f32.mrb[0].mxu0
        %v1872 = vadd.f32 %v1792, %v1871
        %v1873 = vpop.f32.mrb[0].mxu0
        %1874 = vmatprep.mubr.bf16.mxu0 0
        %1875 = vmatmul.mubr.bf16.gmra.mrb[0].mxu0 %v1818
        %v1876 = vpop.f32.mrb[0].mxu0
        %v1877 = vadd.f32 %v1797, %v1876
        %v1878 = vpop.f32.mrb[0].mxu0
        %v1879 = vpop.f32.mrb[0].mxu0
        %v1880 = vadd.f32 %v1800, %v1879
        %v1881 = vpop.f32.mrb[0].mxu0
        %1882 = vmatprep.mubr.bf16.mxu0 0
        %1883 = vmatmul.mubr.bf16.gmra.mrb[0].mxu0 %v1821
        %v1884 = vpop.f32.mrb[0].mxu0
        %v1885 = vadd.f32 %v1805, %v1884
        %v1886 = vpop.f32.mrb[0].mxu0
        %v1887 = vpop.f32.mrb[0].mxu0
        %v1888 = vadd.f32 %v1808, %v1887
        %v1889 = vpop.f32.mrb[0].mxu0
        %1890 = vdwg.mxu0
        %v1891 = vld [vmem:[#allocation2 + $0x1] sm:$0xff]
        %v1892 = vld [vmem:[#allocation2 + $0x11] sm:$0xff]
        %v1893 = vld [vmem:[#allocation2 + $0x21] sm:$0xff]
        %v1894 = vld [vmem:[#allocation2 + $0x31] sm:$0xff]
        %v1895 = vld [vmem:[#allocation2 + $0x41] sm:$0xff]
        %v1896 = vld [vmem:[#allocation2 + $0x51] sm:$0xff]
        %v1897 = vld [vmem:[#allocation2 + $0x61] sm:$0xff]
        %v1898 = vld [vmem:[#allocation2 + $0x71] sm:$0xff]
        %v1899 = vpack.c.bf16 %v1892, %v1891
        %v1900 = vpack.c.bf16 %v1894, %v1893
        %v1901 = vpack.c.bf16 %v1896, %v1895
        %v1902 = vpack.c.bf16 %v1898, %v1897
        %s1903 = scalar_lea.vmem %s4, 8
        %v1904 = vld [vmem:[%s1903] sm:$0xf]
        %v1906 = vsel %vm1629, %v1899, 0
        %v1909 = vsel %vm1629, %v1900, 0
        %v1912 = vsel %vm1629, %v1901, 0
        %v1915 = vsel %vm1629, %v1902, 0
        %v1918 = vsel %vm1742, %v1904, 0
        %1920 = vmatprep.subr.bf16.mxu0 0
        %1921 = vmatpush1.bf16.msra.mxu0 %v1918
        %1922 = vmatprep.subr.bf16.mxu0 0
        %1923 = vmatpush1.bf16.msra.mxu0 0
        %1924 = vmatprep.subr.bf16.mxu0 0
        %1925 = vmatpush1.bf16.msra.mxu0 0
        %1926 = vmatprep.subr.bf16.mxu0 0
        %1927 = vmatpush1.bf16.msra.mxu0 0
        %1928 = vmatprep.subr.bf16.mxu0 0
        %1929 = vmatpush1.bf16.msra.mxu0 0
        %1930 = vmatprep.subr.bf16.mxu0 0
        %1931 = vmatpush1.bf16.msra.mxu0 0
        %1932 = vmatprep.subr.bf16.mxu0 0
        %1933 = vmatpush1.bf16.msra.mxu0 0
        %1934 = vmatprep.subr.bf16.mxu0 0
        %1935 = vmatpush1.bf16.msra.mxu0 0
        %1936 = vmatprep.subr.bf16.mxu0 0
        %1937 = vmatpush1.bf16.msra.mxu0 0
        %1938 = vmatprep.subr.bf16.mxu0 0
        %1939 = vmatpush1.bf16.msra.mxu0 0
        %1940 = vmatprep.subr.bf16.mxu0 0
        %1941 = vmatpush1.bf16.msra.mxu0 0
        %1942 = vmatprep.subr.bf16.mxu0 0
        %1943 = vmatpush1.bf16.msra.mxu0 0
        %1944 = vmatprep.subr.bf16.mxu0 0
        %1945 = vmatpush1.bf16.msra.mxu0 0
        %1946 = vmatprep.subr.bf16.mxu0 0
        %1947 = vmatpush1.bf16.msra.mxu0 0
        %1948 = vmatprep.subr.bf16.mxu0 0
        %1949 = vmatpush1.bf16.msra.mxu0 0
        %1950 = vmatprep.subr.bf16.mxu0 0
        %1951 = vmatpush1.bf16.msra.mxu0 0
        %1952 = vmatprep.mubr.bf16.mxu0 0
        %1953 = vmatmul.mubr.bf16.gmra.mrb[0].mxu0 %v1906
        %v1954 = vpop.f32.mrb[0].mxu0
        %v1955 = vadd.f32 0.0, %v1954
        %v1956 = vpop.f32.mrb[0].mxu0
        %v1957 = vpop.f32.mrb[0].mxu0
        %v1958 = vadd.f32 0.0, %v1957
        %v1959 = vpop.f32.mrb[0].mxu0
        %1960 = vmatprep.mubr.bf16.mxu0 0
        %1961 = vmatmul.mubr.bf16.gmra.mrb[0].mxu0 %v1909
        %v1962 = vpop.f32.mrb[0].mxu0
        %v1963 = vadd.f32 0.0, %v1962
        %v1964 = vpop.f32.mrb[0].mxu0
        %v1965 = vpop.f32.mrb[0].mxu0
        %v1966 = vadd.f32 0.0, %v1965
        %v1967 = vpop.f32.mrb[0].mxu0
        %1968 = vmatprep.mubr.bf16.mxu0 0
        %1969 = vmatmul.mubr.bf16.gmra.mrb[0].mxu0 %v1912
        %v1970 = vpop.f32.mrb[0].mxu0
        %v1971 = vadd.f32 0.0, %v1970
        %v1972 = vpop.f32.mrb[0].mxu0
        %v1973 = vpop.f32.mrb[0].mxu0
        %v1974 = vadd.f32 0.0, %v1973
        %v1975 = vpop.f32.mrb[0].mxu0
        %1976 = vmatprep.mubr.bf16.mxu0 0
        %1977 = vmatmul.mubr.bf16.gmra.mrb[0].mxu0 %v1915
        %v1978 = vpop.f32.mrb[0].mxu0
        %v1979 = vadd.f32 0.0, %v1978
        %v1980 = vpop.f32.mrb[0].mxu0
        %v1981 = vpop.f32.mrb[0].mxu0
        %v1982 = vadd.f32 0.0, %v1981
        %v1983 = vpop.f32.mrb[0].mxu0
        %1984 = vdwg.mxu0
        %v1985 = vadd.f32 %v1861, %v1955
        %v1986 = vadd.f32 %v1864, %v1958
        %v1987 = vadd.f32 %v1869, %v1963
        %v1988 = vadd.f32 %v1872, %v1966
        %v1989 = vadd.f32 %v1877, %v1971
        %v1990 = vadd.f32 %v1880, %v1974
        %v1991 = vadd.f32 %v1885, %v1979
        %v1992 = vadd.f32 %v1888, %v1982
        %s1993 = scalar_lea.vmem [#allocation2], 288
        %v1994 = vld [vmem:[%s1993] sm:$0xff]
        %v1995 = vld [vmem:[%s1993 + $0x10] sm:$0xff]
        %v1996 = vld [vmem:[%s1993 + $0x20] sm:$0xff]
        %v1997 = vld [vmem:[%s1993 + $0x30] sm:$0xff]
        %v1998 = vld [vmem:[%s1993 + $0x40] sm:$0xff]
        %v1999 = vld [vmem:[%s1993 + $0x50] sm:$0xff]
        %v2000 = vld [vmem:[%s1993 + $0x60] sm:$0xff]
        %v2001 = vld [vmem:[%s1993 + $0x70] sm:$0xff]
        %v2002 = vpack.c.bf16 %v1995, %v1994
        %v2003 = vpack.c.bf16 %v1997, %v1996
        %v2004 = vpack.c.bf16 %v1999, %v1998
        %v2005 = vpack.c.bf16 %v2001, %v2000
        %s2006 = scalar_lea.vmem %s4, 12
        %v2007 = vld [vmem:[%s2006] sm:$0xf]
        %v2009 = vsel %vm1629, %v2002, 0
        %v2012 = vsel %vm1629, %v2003, 0
        %v2015 = vsel %vm1629, %v2004, 0
        %v2018 = vsel %vm1629, %v2005, 0
        %v2021 = vsel %vm1742, %v2007, 0
        %2023 = vmatprep.subr.bf16.mxu0 0
        %2024 = vmatpush1.bf16.msra.mxu0 %v2021
        %2025 = vmatprep.subr.bf16.mxu0 0
        %2026 = vmatpush1.bf16.msra.mxu0 0
        %2027 = vmatprep.subr.bf16.mxu0 0
        %2028 = vmatpush1.bf16.msra.mxu0 0
        %2029 = vmatprep.subr.bf16.mxu0 0
        %2030 = vmatpush1.bf16.msra.mxu0 0
        %2031 = vmatprep.subr.bf16.mxu0 0
        %2032 = vmatpush1.bf16.msra.mxu0 0
        %2033 = vmatprep.subr.bf16.mxu0 0
        %2034 = vmatpush1.bf16.msra.mxu0 0
        %2035 = vmatprep.subr.bf16.mxu0 0
        %2036 = vmatpush1.bf16.msra.mxu0 0
        %2037 = vmatprep.subr.bf16.mxu0 0
        %2038 = vmatpush1.bf16.msra.mxu0 0
        %2039 = vmatprep.subr.bf16.mxu0 0
        %2040 = vmatpush1.bf16.msra.mxu0 0
        %2041 = vmatprep.subr.bf16.mxu0 0
        %2042 = vmatpush1.bf16.msra.mxu0 0
        %2043 = vmatprep.subr.bf16.mxu0 0
        %2044 = vmatpush1.bf16.msra.mxu0 0
        %2045 = vmatprep.subr.bf16.mxu0 0
        %2046 = vmatpush1.bf16.msra.mxu0 0
        %2047 = vmatprep.subr.bf16.mxu0 0
        %2048 = vmatpush1.bf16.msra.mxu0 0
        %2049 = vmatprep.subr.bf16.mxu0 0
        %2050 = vmatpush1.bf16.msra.mxu0 0
        %2051 = vmatprep.subr.bf16.mxu0 0
        %2052 = vmatpush1.bf16.msra.mxu0 0
        %2053 = vmatprep.subr.bf16.mxu0 0
        %2054 = vmatpush1.bf16.msra.mxu0 0
        %2055 = vmatprep.mubr.bf16.mxu0 0
        %2056 = vmatmul.mubr.bf16.gmra.mrb[0].mxu0 %v2009
        %v2057 = vpop.f32.mrb[0].mxu0
        %v2058 = vadd.f32 0.0, %v2057
        %v2059 = vpop.f32.mrb[0].mxu0
        %v2060 = vpop.f32.mrb[0].mxu0
        %v2061 = vadd.f32 0.0, %v2060
        %v2062 = vpop.f32.mrb[0].mxu0
        %2063 = vmatprep.mubr.bf16.mxu0 0
        %2064 = vmatmul.mubr.bf16.gmra.mrb[0].mxu0 %v2012
        %v2065 = vpop.f32.mrb[0].mxu0
        %v2066 = vadd.f32 0.0, %v2065
        %v2067 = vpop.f32.mrb[0].mxu0
        %v2068 = vpop.f32.mrb[0].mxu0
        %v2069 = vadd.f32 0.0, %v2068
        %v2070 = vpop.f32.mrb[0].mxu0
        %2071 = vmatprep.mubr.bf16.mxu0 0
        %2072 = vmatmul.mubr.bf16.gmra.mrb[0].mxu0 %v2015
        %v2073 = vpop.f32.mrb[0].mxu0
        %v2074 = vadd.f32 0.0, %v2073
        %v2075 = vpop.f32.mrb[0].mxu0
        %v2076 = vpop.f32.mrb[0].mxu0
        %v2077 = vadd.f32 0.0, %v2076
        %v2078 = vpop.f32.mrb[0].mxu0
        %2079 = vmatprep.mubr.bf16.mxu0 0
        %2080 = vmatmul.mubr.bf16.gmra.mrb[0].mxu0 %v2018
        %v2081 = vpop.f32.mrb[0].mxu0
        %v2082 = vadd.f32 0.0, %v2081
        %v2083 = vpop.f32.mrb[0].mxu0
        %v2084 = vpop.f32.mrb[0].mxu0
        %v2085 = vadd.f32 0.0, %v2084
        %v2086 = vpop.f32.mrb[0].mxu0
        %2087 = vdwg.mxu0
        %v2088 = vadd.f32 %v1985, %v2058
        %v2089 = vadd.f32 %v1986, %v2061
        %v2090 = vadd.f32 %v1987, %v2066
        %v2091 = vadd.f32 %v1988, %v2069
        %v2092 = vadd.f32 %v1989, %v2074
        %v2093 = vadd.f32 %v1990, %v2077
        %v2094 = vadd.f32 %v1991, %v2082
        %v2095 = vadd.f32 %v1992, %v2085
        %s2096 = scalar_lea.vmem [#allocation2], 432
        %v2097 = vld [vmem:[%s2096] sm:$0xff]
        %v2098 = vld [vmem:[%s2096 + $0x10] sm:$0xff]
        %v2099 = vld [vmem:[%s2096 + $0x20] sm:$0xff]
        %v2100 = vld [vmem:[%s2096 + $0x30] sm:$0xff]
        %v2101 = vld [vmem:[%s2096 + $0x40] sm:$0xff]
        %v2102 = vld [vmem:[%s2096 + $0x50] sm:$0xff]
        %v2103 = vld [vmem:[%s2096 + $0x60] sm:$0xff]
        %v2104 = vld [vmem:[%s2096 + $0x70] sm:$0xff]
        %v2105 = vpack.c.bf16 %v2098, %v2097
        %v2106 = vpack.c.bf16 %v2100, %v2099
        %v2107 = vpack.c.bf16 %v2102, %v2101
        %v2108 = vpack.c.bf16 %v2104, %v2103
        %s2109 = scalar_lea.vmem %s4, 16
        %v2110 = vld [vmem:[%s2109] sm:$0xf]
        %v2112 = vsel %vm1629, %v2105, 0
        %v2115 = vsel %vm1629, %v2106, 0
        %v2118 = vsel %vm1629, %v2107, 0
        %v2121 = vsel %vm1629, %v2108, 0
        %v2124 = vsel %vm1742, %v2110, 0
        %2126 = vmatprep.subr.bf16.mxu0 0
        %2127 = vmatpush1.bf16.msra.mxu0 %v2124
        %2128 = vmatprep.subr.bf16.mxu0 0
        %2129 = vmatpush1.bf16.msra.mxu0 0
        %2130 = vmatprep.subr.bf16.mxu0 0
        %2131 = vmatpush1.bf16.msra.mxu0 0
        %2132 = vmatprep.subr.bf16.mxu0 0
        %2133 = vmatpush1.bf16.msra.mxu0 0
        %2134 = vmatprep.subr.bf16.mxu0 0
        %2135 = vmatpush1.bf16.msra.mxu0 0
        %2136 = vmatprep.subr.bf16.mxu0 0
        %2137 = vmatpush1.bf16.msra.mxu0 0
        %2138 = vmatprep.subr.bf16.mxu0 0
        %2139 = vmatpush1.bf16.msra.mxu0 0
        %2140 = vmatprep.subr.bf16.mxu0 0
        %2141 = vmatpush1.bf16.msra.mxu0 0
        %2142 = vmatprep.subr.bf16.mxu0 0
        %2143 = vmatpush1.bf16.msra.mxu0 0
        %2144 = vmatprep.subr.bf16.mxu0 0
        %2145 = vmatpush1.bf16.msra.mxu0 0
        %2146 = vmatprep.subr.bf16.mxu0 0
        %2147 = vmatpush1.bf16.msra.mxu0 0
        %2148 = vmatprep.subr.bf16.mxu0 0
        %2149 = vmatpush1.bf16.msra.mxu0 0
        %2150 = vmatprep.subr.bf16.mxu0 0
        %2151 = vmatpush1.bf16.msra.mxu0 0
        %2152 = vmatprep.subr.bf16.mxu0 0
        %2153 = vmatpush1.bf16.msra.mxu0 0
        %2154 = vmatprep.subr.bf16.mxu0 0
        %2155 = vmatpush1.bf16.msra.mxu0 0
        %2156 = vmatprep.subr.bf16.mxu0 0
        %2157 = vmatpush1.bf16.msra.mxu0 0
        %2158 = vmatprep.mubr.bf16.mxu0 0
        %2159 = vmatmul.mubr.bf16.gmra.mrb[0].mxu0 %v2112
        %v2160 = vpop.f32.mrb[0].mxu0
        %v2161 = vadd.f32 0.0, %v2160
        %v2162 = vpop.f32.mrb[0].mxu0
        %v2163 = vpop.f32.mrb[0].mxu0
        %v2164 = vadd.f32 0.0, %v2163
        %v2165 = vpop.f32.mrb[0].mxu0
        %2166 = vmatprep.mubr.bf16.mxu0 0
        %2167 = vmatmul.mubr.bf16.gmra.mrb[0].mxu0 %v2115
        %v2168 = vpop.f32.mrb[0].mxu0
        %v2169 = vadd.f32 0.0, %v2168
        %v2170 = vpop.f32.mrb[0].mxu0
        %v2171 = vpop.f32.mrb[0].mxu0
        %v2172 = vadd.f32 0.0, %v2171
        %v2173 = vpop.f32.mrb[0].mxu0
        %2174 = vmatprep.mubr.bf16.mxu0 0
        %2175 = vmatmul.mubr.bf16.gmra.mrb[0].mxu0 %v2118
        %v2176 = vpop.f32.mrb[0].mxu0
        %v2177 = vadd.f32 0.0, %v2176
        %v2178 = vpop.f32.mrb[0].mxu0
        %v2179 = vpop.f32.mrb[0].mxu0
        %v2180 = vadd.f32 0.0, %v2179
        %v2181 = vpop.f32.mrb[0].mxu0
        %2182 = vmatprep.mubr.bf16.mxu0 0
        %2183 = vmatmul.mubr.bf16.gmra.mrb[0].mxu0 %v2121
        %v2184 = vpop.f32.mrb[0].mxu0
        %v2185 = vadd.f32 0.0, %v2184
        %v2186 = vpop.f32.mrb[0].mxu0
        %v2187 = vpop.f32.mrb[0].mxu0
        %v2188 = vadd.f32 0.0, %v2187
        %v2189 = vpop.f32.mrb[0].mxu0
        %2190 = vdwg.mxu0
        %v2191 = vadd.f32 %v2088, %v2161
        %v2192 = vadd.f32 %v2089, %v2164
        %v2193 = vadd.f32 %v2090, %v2169
        %v2194 = vadd.f32 %v2091, %v2172
        %v2195 = vadd.f32 %v2092, %v2177
        %v2196 = vadd.f32 %v2093, %v2180
        %v2197 = vadd.f32 %v2094, %v2185
        %v2198 = vadd.f32 %v2095, %v2188
        %v2199 = vld [vmem:[%s1993 + $0x1] sm:$0xff]
        %v2200 = vld [vmem:[%s1993 + $0x11] sm:$0xff]
        %v2201 = vld [vmem:[%s1993 + $0x21] sm:$0xff]
        %v2202 = vld [vmem:[%s1993 + $0x31] sm:$0xff]
        %v2203 = vld [vmem:[%s1993 + $0x41] sm:$0xff]
        %v2204 = vld [vmem:[%s1993 + $0x51] sm:$0xff]
        %v2205 = vld [vmem:[%s1993 + $0x61] sm:$0xff]
        %v2206 = vld [vmem:[%s1993 + $0x71] sm:$0xff]
        %v2207 = vpack.c.bf16 %v2200, %v2199
        %v2208 = vpack.c.bf16 %v2202, %v2201
        %v2209 = vpack.c.bf16 %v2204, %v2203
        %v2210 = vpack.c.bf16 %v2206, %v2205
        %s2211 = scalar_lea.vmem %s4, 20
        %v2212 = vld [vmem:[%s2211] sm:$0xf]
        %v2214 = vsel %vm1629, %v2207, 0
        %v2217 = vsel %vm1629, %v2208, 0
        %v2220 = vsel %vm1629, %v2209, 0
        %v2223 = vsel %vm1629, %v2210, 0
        %v2226 = vsel %vm1742, %v2212, 0
        %2228 = vmatprep.subr.bf16.mxu0 0
        %2229 = vmatpush1.bf16.msra.mxu0 %v2226
        %2230 = vmatprep.subr.bf16.mxu0 0
        %2231 = vmatpush1.bf16.msra.mxu0 0
        %2232 = vmatprep.subr.bf16.mxu0 0
        %2233 = vmatpush1.bf16.msra.mxu0 0
        %2234 = vmatprep.subr.bf16.mxu0 0
        %2235 = vmatpush1.bf16.msra.mxu0 0
        %2236 = vmatprep.subr.bf16.mxu0 0
        %2237 = vmatpush1.bf16.msra.mxu0 0
        %2238 = vmatprep.subr.bf16.mxu0 0
        %2239 = vmatpush1.bf16.msra.mxu0 0
        %2240 = vmatprep.subr.bf16.mxu0 0
        %2241 = vmatpush1.bf16.msra.mxu0 0
        %2242 = vmatprep.subr.bf16.mxu0 0
        %2243 = vmatpush1.bf16.msra.mxu0 0
        %2244 = vmatprep.subr.bf16.mxu0 0
        %2245 = vmatpush1.bf16.msra.mxu0 0
        %2246 = vmatprep.subr.bf16.mxu0 0
        %2247 = vmatpush1.bf16.msra.mxu0 0
        %2248 = vmatprep.subr.bf16.mxu0 0
        %2249 = vmatpush1.bf16.msra.mxu0 0
        %2250 = vmatprep.subr.bf16.mxu0 0
        %2251 = vmatpush1.bf16.msra.mxu0 0
        %2252 = vmatprep.subr.bf16.mxu0 0
        %2253 = vmatpush1.bf16.msra.mxu0 0
        %2254 = vmatprep.subr.bf16.mxu0 0
        %2255 = vmatpush1.bf16.msra.mxu0 0
        %2256 = vmatprep.subr.bf16.mxu0 0
        %2257 = vmatpush1.bf16.msra.mxu0 0
        %2258 = vmatprep.subr.bf16.mxu0 0
        %2259 = vmatpush1.bf16.msra.mxu0 0
        %2260 = vmatprep.mubr.bf16.mxu0 0
        %2261 = vmatmul.mubr.bf16.gmra.mrb[0].mxu0 %v2214
        %v2262 = vpop.f32.mrb[0].mxu0
        %v2263 = vadd.f32 0.0, %v2262
        %v2264 = vpop.f32.mrb[0].mxu0
        %v2265 = vpop.f32.mrb[0].mxu0
        %v2266 = vadd.f32 0.0, %v2265
        %v2267 = vpop.f32.mrb[0].mxu0
        %2268 = vmatprep.mubr.bf16.mxu0 0
        %2269 = vmatmul.mubr.bf16.gmra.mrb[0].mxu0 %v2217
        %v2270 = vpop.f32.mrb[0].mxu0
        %v2271 = vadd.f32 0.0, %v2270
        %v2272 = vpop.f32.mrb[0].mxu0
        %v2273 = vpop.f32.mrb[0].mxu0
        %v2274 = vadd.f32 0.0, %v2273
        %v2275 = vpop.f32.mrb[0].mxu0
        %2276 = vmatprep.mubr.bf16.mxu0 0
        %2277 = vmatmul.mubr.bf16.gmra.mrb[0].mxu0 %v2220
        %v2278 = vpop.f32.mrb[0].mxu0
        %v2279 = vadd.f32 0.0, %v2278
        %v2280 = vpop.f32.mrb[0].mxu0
        %v2281 = vpop.f32.mrb[0].mxu0
        %v2282 = vadd.f32 0.0, %v2281
        %v2283 = vpop.f32.mrb[0].mxu0
        %2284 = vmatprep.mubr.bf16.mxu0 0
        %2285 = vmatmul.mubr.bf16.gmra.mrb[0].mxu0 %v2223
        %v2286 = vpop.f32.mrb[0].mxu0
        %v2287 = vadd.f32 0.0, %v2286
        %v2288 = vpop.f32.mrb[0].mxu0
        %v2289 = vpop.f32.mrb[0].mxu0
        %v2290 = vadd.f32 0.0, %v2289
        %v2291 = vpop.f32.mrb[0].mxu0
        %2292 = vdwg.mxu0
        %v2293 = vadd.f32 %v2191, %v2263
        %v2294 = vadd.f32 %v2192, %v2266
        %v2295 = vadd.f32 %v2193, %v2271
        %v2296 = vadd.f32 %v2194, %v2274
        %v2297 = vadd.f32 %v2195, %v2279
        %v2298 = vadd.f32 %v2196, %v2282
        %v2299 = vadd.f32 %v2197, %v2287
        %v2300 = vadd.f32 %v2198, %v2290
        %s2301 = scalar_lea.vmem [#allocation2], 16
        %v2302 = vld [vmem:[%s2301] sm:$0xff]
        %v2303 = vld [vmem:[%s2301 + $0x10] sm:$0xff]
        %v2304 = vld [vmem:[%s2301 + $0x20] sm:$0xff]
        %v2305 = vld [vmem:[%s2301 + $0x30] sm:$0xff]
        %v2306 = vld [vmem:[%s2301 + $0x40] sm:$0xff]
        %v2307 = vld [vmem:[%s2301 + $0x50] sm:$0xff]
        %v2308 = vld [vmem:[%s2301 + $0x60] sm:$0xff]
        %v2309 = vld [vmem:[%s2301 + $0x70] sm:$0xff]
        %v2310 = vpack.c.bf16 %v2303, %v2302
        %v2311 = vpack.c.bf16 %v2305, %v2304
        %v2312 = vpack.c.bf16 %v2307, %v2306
        %v2313 = vpack.c.bf16 %v2309, %v2308
        %s2314 = scalar_lea.vmem %s4, 24
        %v2315 = vld [vmem:[%s2314] sm:$0xf]
        %v2317 = vsel %vm1629, %v2310, 0
        %v2320 = vsel %vm1629, %v2311, 0
        %v2323 = vsel %vm1629, %v2312, 0
        %v2326 = vsel %vm1629, %v2313, 0
        %v2329 = vsel %vm1742, %v2315, 0
        %2331 = vmatprep.subr.bf16.mxu0 0
        %2332 = vmatpush1.bf16.msra.mxu0 %v2329
        %2333 = vmatprep.subr.bf16.mxu0 0
        %2334 = vmatpush1.bf16.msra.mxu0 0
        %2335 = vmatprep.subr.bf16.mxu0 0
        %2336 = vmatpush1.bf16.msra.mxu0 0
        %2337 = vmatprep.subr.bf16.mxu0 0
        %2338 = vmatpush1.bf16.msra.mxu0 0
        %2339 = vmatprep.subr.bf16.mxu0 0
        %2340 = vmatpush1.bf16.msra.mxu0 0
        %2341 = vmatprep.subr.bf16.mxu0 0
        %2342 = vmatpush1.bf16.msra.mxu0 0
        %2343 = vmatprep.subr.bf16.mxu0 0
        %2344 = vmatpush1.bf16.msra.mxu0 0
        %2345 = vmatprep.subr.bf16.mxu0 0
        %2346 = vmatpush1.bf16.msra.mxu0 0
        %2347 = vmatprep.subr.bf16.mxu0 0
        %2348 = vmatpush1.bf16.msra.mxu0 0
        %2349 = vmatprep.subr.bf16.mxu0 0
        %2350 = vmatpush1.bf16.msra.mxu0 0
        %2351 = vmatprep.subr.bf16.mxu0 0
        %2352 = vmatpush1.bf16.msra.mxu0 0
        %2353 = vmatprep.subr.bf16.mxu0 0
        %2354 = vmatpush1.bf16.msra.mxu0 0
        %2355 = vmatprep.subr.bf16.mxu0 0
        %2356 = vmatpush1.bf16.msra.mxu0 0
        %2357 = vmatprep.subr.bf16.mxu0 0
        %2358 = vmatpush1.bf16.msra.mxu0 0
        %2359 = vmatprep.subr.bf16.mxu0 0
        %2360 = vmatpush1.bf16.msra.mxu0 0
        %2361 = vmatprep.subr.bf16.mxu0 0
        %2362 = vmatpush1.bf16.msra.mxu0 0
        %2363 = vmatprep.mubr.bf16.mxu0 0
        %2364 = vmatmul.mubr.bf16.gmra.mrb[0].mxu0 %v2317
        %v2365 = vpop.f32.mrb[0].mxu0
        %v2366 = vadd.f32 0.0, %v2365
        %v2367 = vpop.f32.mrb[0].mxu0
        %v2368 = vpop.f32.mrb[0].mxu0
        %v2369 = vadd.f32 0.0, %v2368
        %v2370 = vpop.f32.mrb[0].mxu0
        %2371 = vmatprep.mubr.bf16.mxu0 0
        %2372 = vmatmul.mubr.bf16.gmra.mrb[0].mxu0 %v2320
        %v2373 = vpop.f32.mrb[0].mxu0
        %v2374 = vadd.f32 0.0, %v2373
        %v2375 = vpop.f32.mrb[0].mxu0
        %v2376 = vpop.f32.mrb[0].mxu0
        %v2377 = vadd.f32 0.0, %v2376
        %v2378 = vpop.f32.mrb[0].mxu0
        %2379 = vmatprep.mubr.bf16.mxu0 0
        %2380 = vmatmul.mubr.bf16.gmra.mrb[0].mxu0 %v2323
        %v2381 = vpop.f32.mrb[0].mxu0
        %v2382 = vadd.f32 0.0, %v2381
        %v2383 = vpop.f32.mrb[0].mxu0
        %v2384 = vpop.f32.mrb[0].mxu0
        %v2385 = vadd.f32 0.0, %v2384
        %v2386 = vpop.f32.mrb[0].mxu0
        %2387 = vmatprep.mubr.bf16.mxu0 0
        %2388 = vmatmul.mubr.bf16.gmra.mrb[0].mxu0 %v2326
        %v2389 = vpop.f32.mrb[0].mxu0
        %v2390 = vadd.f32 0.0, %v2389
        %v2391 = vpop.f32.mrb[0].mxu0
        %v2392 = vpop.f32.mrb[0].mxu0
        %v2393 = vadd.f32 0.0, %v2392
        %v2394 = vpop.f32.mrb[0].mxu0
        %2395 = vdwg.mxu0
        %v2396 = vadd.f32 %v2293, %v2366
        %v2397 = vadd.f32 %v2294, %v2369
        %v2398 = vadd.f32 %v2295, %v2374
        %v2399 = vadd.f32 %v2296, %v2377
        %v2400 = vadd.f32 %v2297, %v2382
        %v2401 = vadd.f32 %v2298, %v2385
        %v2402 = vadd.f32 %v2299, %v2390
        %v2403 = vadd.f32 %v2300, %v2393
        %s2404 = scalar_lea.vmem [#allocation2], 160
        %v2405 = vld [vmem:[%s2404] sm:$0xff]
        %v2406 = vld [vmem:[%s2404 + $0x10] sm:$0xff]
        %v2407 = vld [vmem:[%s2404 + $0x20] sm:$0xff]
        %v2408 = vld [vmem:[%s2404 + $0x30] sm:$0xff]
        %v2409 = vld [vmem:[%s2404 + $0x40] sm:$0xff]
        %v2410 = vld [vmem:[%s2404 + $0x50] sm:$0xff]
        %v2411 = vld [vmem:[%s2404 + $0x60] sm:$0xff]
        %v2412 = vld [vmem:[%s2404 + $0x70] sm:$0xff]
        %v2413 = vpack.c.bf16 %v2406, %v2405
        %v2414 = vpack.c.bf16 %v2408, %v2407
        %v2415 = vpack.c.bf16 %v2410, %v2409
        %v2416 = vpack.c.bf16 %v2412, %v2411
        %s2417 = scalar_lea.vmem %s4, 28
        %v2418 = vld [vmem:[%s2417] sm:$0xf]
        %v2420 = vsel %vm1629, %v2413, 0
        %v2423 = vsel %vm1629, %v2414, 0
        %v2426 = vsel %vm1629, %v2415, 0
        %v2429 = vsel %vm1629, %v2416, 0
        %v2432 = vsel %vm1742, %v2418, 0
        %2434 = vmatprep.subr.bf16.mxu0 0
        %2435 = vmatpush1.bf16.msra.mxu0 %v2432
        %2436 = vmatprep.subr.bf16.mxu0 0
        %2437 = vmatpush1.bf16.msra.mxu0 0
        %2438 = vmatprep.subr.bf16.mxu0 0
        %2439 = vmatpush1.bf16.msra.mxu0 0
        %2440 = vmatprep.subr.bf16.mxu0 0
        %2441 = vmatpush1.bf16.msra.mxu0 0
        %2442 = vmatprep.subr.bf16.mxu0 0
        %2443 = vmatpush1.bf16.msra.mxu0 0
        %2444 = vmatprep.subr.bf16.mxu0 0
        %2445 = vmatpush1.bf16.msra.mxu0 0
        %2446 = vmatprep.subr.bf16.mxu0 0
        %2447 = vmatpush1.bf16.msra.mxu0 0
        %2448 = vmatprep.subr.bf16.mxu0 0
        %2449 = vmatpush1.bf16.msra.mxu0 0
        %2450 = vmatprep.subr.bf16.mxu0 0
        %2451 = vmatpush1.bf16.msra.mxu0 0
        %2452 = vmatprep.subr.bf16.mxu0 0
        %2453 = vmatpush1.bf16.msra.mxu0 0
        %2454 = vmatprep.subr.bf16.mxu0 0
        %2455 = vmatpush1.bf16.msra.mxu0 0
        %2456 = vmatprep.subr.bf16.mxu0 0
        %2457 = vmatpush1.bf16.msra.mxu0 0
        %2458 = vmatprep.subr.bf16.mxu0 0
        %2459 = vmatpush1.bf16.msra.mxu0 0
        %2460 = vmatprep.subr.bf16.mxu0 0
        %2461 = vmatpush1.bf16.msra.mxu0 0
        %2462 = vmatprep.subr.bf16.mxu0 0
        %2463 = vmatpush1.bf16.msra.mxu0 0
        %2464 = vmatprep.subr.bf16.mxu0 0
        %2465 = vmatpush1.bf16.msra.mxu0 0
        %2466 = vmatprep.mubr.bf16.mxu0 0
        %2467 = vmatmul.mubr.bf16.gmra.mrb[0].mxu0 %v2420
        %v2468 = vpop.f32.mrb[0].mxu0
        %v2469 = vadd.f32 0.0, %v2468
        %v2470 = vpop.f32.mrb[0].mxu0
        %v2471 = vpop.f32.mrb[0].mxu0
        %v2472 = vadd.f32 0.0, %v2471
        %v2473 = vpop.f32.mrb[0].mxu0
        %2474 = vmatprep.mubr.bf16.mxu0 0
        %2475 = vmatmul.mubr.bf16.gmra.mrb[0].mxu0 %v2423
        %v2476 = vpop.f32.mrb[0].mxu0
        %v2477 = vadd.f32 0.0, %v2476
        %v2478 = vpop.f32.mrb[0].mxu0
        %v2479 = vpop.f32.mrb[0].mxu0
        %v2480 = vadd.f32 0.0, %v2479
        %v2481 = vpop.f32.mrb[0].mxu0
        %2482 = vmatprep.mubr.bf16.mxu0 0
        %2483 = vmatmul.mubr.bf16.gmra.mrb[0].mxu0 %v2426
        %v2484 = vpop.f32.mrb[0].mxu0
        %v2485 = vadd.f32 0.0, %v2484
        %v2486 = vpop.f32.mrb[0].mxu0
        %v2487 = vpop.f32.mrb[0].mxu0
        %v2488 = vadd.f32 0.0, %v2487
        %v2489 = vpop.f32.mrb[0].mxu0
        %2490 = vmatprep.mubr.bf16.mxu0 0
        %2491 = vmatmul.mubr.bf16.gmra.mrb[0].mxu0 %v2429
        %v2492 = vpop.f32.mrb[0].mxu0
        %v2493 = vadd.f32 0.0, %v2492
        %v2494 = vpop.f32.mrb[0].mxu0
        %v2495 = vpop.f32.mrb[0].mxu0
        %v2496 = vadd.f32 0.0, %v2495
        %v2497 = vpop.f32.mrb[0].mxu0
        %2498 = vdwg.mxu0
        %v2499 = vadd.f32 %v2396, %v2469
        %v2500 = vadd.f32 %v2397, %v2472
        %v2501 = vadd.f32 %v2398, %v2477
        %v2502 = vadd.f32 %v2399, %v2480
        %v2503 = vadd.f32 %v2400, %v2485
        %v2504 = vadd.f32 %v2401, %v2488
        %v2505 = vadd.f32 %v2402, %v2493
        %v2506 = vadd.f32 %v2403, %v2496
        %v2507 = vld [vmem:[%s2301 + $0x1] sm:$0xff]
        %v2508 = vld [vmem:[%s2301 + $0x11] sm:$0xff]
        %v2509 = vld [vmem:[%s2301 + $0x21] sm:$0xff]
        %v2510 = vld [vmem:[%s2301 + $0x31] sm:$0xff]
        %v2511 = vld [vmem:[%s2301 + $0x41] sm:$0xff]
        %v2512 = vld [vmem:[%s2301 + $0x51] sm:$0xff]
        %v2513 = vld [vmem:[%s2301 + $0x61] sm:$0xff]
        %v2514 = vld [vmem:[%s2301 + $0x71] sm:$0xff]
        %v2515 = vpack.c.bf16 %v2508, %v2507
        %v2516 = vpack.c.bf16 %v2510, %v2509
        %v2517 = vpack.c.bf16 %v2512, %v2511
        %v2518 = vpack.c.bf16 %v2514, %v2513
        %s2519 = scalar_lea.vmem %s4, 32
        %v2520 = vld [vmem:[%s2519] sm:$0xf]
        %v2522 = vsel %vm1629, %v2515, 0
        %v2525 = vsel %vm1629, %v2516, 0
        %v2528 = vsel %vm1629, %v2517, 0
        %v2531 = vsel %vm1629, %v2518, 0
        %v2534 = vsel %vm1742, %v2520, 0
        %2536 = vmatprep.subr.bf16.mxu0 0
        %2537 = vmatpush1.bf16.msra.mxu0 %v2534
        %2538 = vmatprep.subr.bf16.mxu0 0
        %2539 = vmatpush1.bf16.msra.mxu0 0
        %2540 = vmatprep.subr.bf16.mxu0 0
        %2541 = vmatpush1.bf16.msra.mxu0 0
        %2542 = vmatprep.subr.bf16.mxu0 0
        %2543 = vmatpush1.bf16.msra.mxu0 0
        %2544 = vmatprep.subr.bf16.mxu0 0
        %2545 = vmatpush1.bf16.msra.mxu0 0
        %2546 = vmatprep.subr.bf16.mxu0 0
        %2547 = vmatpush1.bf16.msra.mxu0 0
        %2548 = vmatprep.subr.bf16.mxu0 0
        %2549 = vmatpush1.bf16.msra.mxu0 0
        %2550 = vmatprep.subr.bf16.mxu0 0
        %2551 = vmatpush1.bf16.msra.mxu0 0
        %2552 = vmatprep.subr.bf16.mxu0 0
        %2553 = vmatpush1.bf16.msra.mxu0 0
        %2554 = vmatprep.subr.bf16.mxu0 0
        %2555 = vmatpush1.bf16.msra.mxu0 0
        %2556 = vmatprep.subr.bf16.mxu0 0
        %2557 = vmatpush1.bf16.msra.mxu0 0
        %2558 = vmatprep.subr.bf16.mxu0 0
        %2559 = vmatpush1.bf16.msra.mxu0 0
        %2560 = vmatprep.subr.bf16.mxu0 0
        %2561 = vmatpush1.bf16.msra.mxu0 0
        %2562 = vmatprep.subr.bf16.mxu0 0
        %2563 = vmatpush1.bf16.msra.mxu0 0
        %2564 = vmatprep.subr.bf16.mxu0 0
        %2565 = vmatpush1.bf16.msra.mxu0 0
        %2566 = vmatprep.subr.bf16.mxu0 0
        %2567 = vmatpush1.bf16.msra.mxu0 0
        %2568 = vmatprep.mubr.bf16.mxu0 0
        %2569 = vmatmul.mubr.bf16.gmra.mrb[0].mxu0 %v2522
        %v2570 = vpop.f32.mrb[0].mxu0
        %v2571 = vadd.f32 0.0, %v2570
        %v2572 = vpop.f32.mrb[0].mxu0
        %v2573 = vpop.f32.mrb[0].mxu0
        %v2574 = vadd.f32 0.0, %v2573
        %v2575 = vpop.f32.mrb[0].mxu0
        %2576 = vmatprep.mubr.bf16.mxu0 0
        %2577 = vmatmul.mubr.bf16.gmra.mrb[0].mxu0 %v2525
        %v2578 = vpop.f32.mrb[0].mxu0
        %v2579 = vadd.f32 0.0, %v2578
        %v2580 = vpop.f32.mrb[0].mxu0
        %v2581 = vpop.f32.mrb[0].mxu0
        %v2582 = vadd.f32 0.0, %v2581
        %v2583 = vpop.f32.mrb[0].mxu0
        %2584 = vmatprep.mubr.bf16.mxu0 0
        %2585 = vmatmul.mubr.bf16.gmra.mrb[0].mxu0 %v2528
        %v2586 = vpop.f32.mrb[0].mxu0
        %v2587 = vadd.f32 0.0, %v2586
        %v2588 = vpop.f32.mrb[0].mxu0
        %v2589 = vpop.f32.mrb[0].mxu0
        %v2590 = vadd.f32 0.0, %v2589
        %v2591 = vpop.f32.mrb[0].mxu0
        %2592 = vmatprep.mubr.bf16.mxu0 0
        %2593 = vmatmul.mubr.bf16.gmra.mrb[0].mxu0 %v2531
        %v2594 = vpop.f32.mrb[0].mxu0
        %v2595 = vadd.f32 0.0, %v2594
        %v2596 = vpop.f32.mrb[0].mxu0
        %v2597 = vpop.f32.mrb[0].mxu0
        %v2598 = vadd.f32 0.0, %v2597
        %v2599 = vpop.f32.mrb[0].mxu0
        %2600 = vdwg.mxu0
        %v2601 = vadd.f32 %v2499, %v2571
        %v2602 = vadd.f32 %v2500, %v2574
        %v2603 = vadd.f32 %v2501, %v2579
        %v2604 = vadd.f32 %v2502, %v2582
        %v2605 = vadd.f32 %v2503, %v2587
        %v2606 = vadd.f32 %v2504, %v2590
        %v2607 = vadd.f32 %v2505, %v2595
        %v2608 = vadd.f32 %v2506, %v2598
        %v2609 = vld [vmem:[%s5] sm:$0x1]
        %v2611 = vlaneseq
        %v2612 = vshrl.u32 %v2611, 7
        %v2613 = vsub.s32 0, %v2612
        %v2614 = vrot.slane %v2609, %v2613
        %v2616 = vadd.f32 %v2601, %v2614
        %v2617 = vadd.f32 %v2602, %v2614
        %v2618 = vadd.f32 %v2603, %v2614
        %v2619 = vadd.f32 %v2604, %v2614
        %v2620 = vadd.f32 %v2605, %v2614
        %v2621 = vadd.f32 %v2606, %v2614
        %v2622 = vadd.f32 %v2607, %v2614
        %v2623 = vadd.f32 %v2608, %v2614
        %v2624 = vmax.f32 %v2616, 0.0
        %v2625 = vmax.f32 %v2617, 0.0
        %v2626 = vmax.f32 %v2618, 0.0
        %v2627 = vmax.f32 %v2619, 0.0
        %v2628 = vmax.f32 %v2620, 0.0
        %v2629 = vmax.f32 %v2621, 0.0
        %v2630 = vmax.f32 %v2622, 0.0
        %v2631 = vmax.f32 %v2623, 0.0
        %v2632 = vpack.c.bf16 %v2625, %v2624
        %v2633 = vpack.c.bf16 %v2627, %v2626
        %v2634 = vpack.c.bf16 %v2629, %v2628
        %v2635 = vpack.c.bf16 %v2631, %v2630
        %v2636 = vld [vmem:[%s6] sm:$0xf]
        %v2637 = vld [vmem:[%s7] sm:$0x1]
        %v2639 = vlaneseq
        %v2640 = vshrl.u32 %v2639, 7
        %v2641 = vsub.s32 0, %v2640
        %v2642 = vrot.slane %v2637, %v2641
        %v2645 = vsel %vm1629, %v2632, 0
        %v2648 = vsel %vm1629, %v2633, 0
        %v2651 = vsel %vm1629, %v2634, 0
        %v2654 = vsel %vm1629, %v2635, 0
        %v2657 = vsel %vm1742, %v2636, 0
        %2659 = vmatprep.subr.bf16.mxu0 0
        %2660 = vmatpush1.bf16.msra.mxu0 %v2657
        %2661 = vmatprep.subr.bf16.mxu0 0
        %2662 = vmatpush1.bf16.msra.mxu0 0
        %2663 = vmatprep.subr.bf16.mxu0 0
        %2664 = vmatpush1.bf16.msra.mxu0 0
        %2665 = vmatprep.subr.bf16.mxu0 0
        %2666 = vmatpush1.bf16.msra.mxu0 0
        %2667 = vmatprep.subr.bf16.mxu0 0
        %2668 = vmatpush1.bf16.msra.mxu0 0
        %2669 = vmatprep.subr.bf16.mxu0 0
        %2670 = vmatpush1.bf16.msra.mxu0 0
        %2671 = vmatprep.subr.bf16.mxu0 0
        %2672 = vmatpush1.bf16.msra.mxu0 0
        %2673 = vmatprep.subr.bf16.mxu0 0
        %2674 = vmatpush1.bf16.msra.mxu0 0
        %2675 = vmatprep.subr.bf16.mxu0 0
        %2676 = vmatpush1.bf16.msra.mxu0 0
        %2677 = vmatprep.subr.bf16.mxu0 0
        %2678 = vmatpush1.bf16.msra.mxu0 0
        %2679 = vmatprep.subr.bf16.mxu0 0
        %2680 = vmatpush1.bf16.msra.mxu0 0
        %2681 = vmatprep.subr.bf16.mxu0 0
        %2682 = vmatpush1.bf16.msra.mxu0 0
        %2683 = vmatprep.subr.bf16.mxu0 0
        %2684 = vmatpush1.bf16.msra.mxu0 0
        %2685 = vmatprep.subr.bf16.mxu0 0
        %2686 = vmatpush1.bf16.msra.mxu0 0
        %2687 = vmatprep.subr.bf16.mxu0 0
        %2688 = vmatpush1.bf16.msra.mxu0 0
        %2689 = vmatprep.subr.bf16.mxu0 0
        %2690 = vmatpush1.bf16.msra.mxu0 0
        %2691 = vmatprep.mubr.bf16.mxu0 0
        %2692 = vmatmul.mubr.bf16.gmra.mrb[0].mxu0 %v2645
        %v2693 = vpop.f32.mrb[0].mxu0
        %v2694 = vadd.f32 %v2642, %v2693
        %v2695 = vpop.f32.mrb[0].mxu0
        %v2696 = vpop.f32.mrb[0].mxu0
        %v2697 = vadd.f32 %v2642, %v2696
        %v2698 = vpop.f32.mrb[0].mxu0
        %2699 = vmatprep.mubr.bf16.mxu0 0
        %2700 = vmatmul.mubr.bf16.gmra.mrb[0].mxu0 %v2648
        %v2701 = vpop.f32.mrb[0].mxu0
        %v2702 = vadd.f32 %v2642, %v2701
        %v2703 = vpop.f32.mrb[0].mxu0
        %v2704 = vpop.f32.mrb[0].mxu0
        %v2705 = vadd.f32 %v2642, %v2704
        %v2706 = vpop.f32.mrb[0].mxu0
        %2707 = vmatprep.mubr.bf16.mxu0 0
        %2708 = vmatmul.mubr.bf16.gmra.mrb[0].mxu0 %v2651
        %v2709 = vpop.f32.mrb[0].mxu0
        %v2710 = vadd.f32 %v2642, %v2709
        %v2711 = vpop.f32.mrb[0].mxu0
        %v2712 = vpop.f32.mrb[0].mxu0
        %v2713 = vadd.f32 %v2642, %v2712
        %v2714 = vpop.f32.mrb[0].mxu0
        %2715 = vmatprep.mubr.bf16.mxu0 0
        %2716 = vmatmul.mubr.bf16.gmra.mrb[0].mxu0 %v2654
        %v2717 = vpop.f32.mrb[0].mxu0
        %v2718 = vadd.f32 %v2642, %v2717
        %v2719 = vpop.f32.mrb[0].mxu0
        %v2720 = vpop.f32.mrb[0].mxu0
        %v2721 = vadd.f32 %v2642, %v2720
        %v2722 = vpop.f32.mrb[0].mxu0
        %2723 = vdwg.mxu0
        %s2724 = scalar_lea.vmem %s357, 216
        %v2725 = vld [vmem:[%s2724] sm:$0xf]
        %v2726 = vld [vmem:[%s2724 + $0x4] sm:$0xf]
        %v2727 = vld [vmem:[%s2724 + $0x8] sm:$0xf]
        %v2728 = vld [vmem:[%s2724 + $0xc] sm:$0xf]
        %v2729 = vld [vmem:[%s2724 + $0x10] sm:$0xf]
        %v2730 = vld [vmem:[%s2724 + $0x14] sm:$0xf]
        %v2731 = vld [vmem:[%s2724 + $0x18] sm:$0xf]
        %v2732 = vld [vmem:[%s2724 + $0x1c] sm:$0xf]
        %v2733 = vld [vmem:[%s2724 + $0x20] sm:$0xf]
        %v2734 = vld [vmem:[%s2724 + $0x24] sm:$0xf]
        %v2735 = vld [vmem:[%s2724 + $0x28] sm:$0xf]
        %v2736 = vld [vmem:[%s2724 + $0x2c] sm:$0xf]
        %v2737 = vld [vmem:[%s2724 + $0x30] sm:$0xf]
        %v2738 = vld [vmem:[%s2724 + $0x34] sm:$0xf]
        %v2739 = vld [vmem:[%s2724 + $0x38] sm:$0xf]
        %v2740 = vld [vmem:[%s2724 + $0x3c] sm:$0xf]
        %v2741 = vld [vmem:[%s8] sm:$0x3]
        %v2758 = vunpack.c.l.b16 %v2725
        %v2759 = vunpack.c.l.b16 %v2726
        %v2760 = vunpack.c.l.b16 %v2727
        %v2761 = vunpack.c.l.b16 %v2728
        %v2762 = vunpack.c.l.b16 %v2729
        %v2763 = vunpack.c.l.b16 %v2730
        %v2764 = vunpack.c.l.b16 %v2731
        %v2765 = vunpack.c.l.b16 %v2732
        %v2766 = vunpack.c.l.b16 %v2733
        %v2767 = vunpack.c.l.b16 %v2734
        %v2768 = vunpack.c.l.b16 %v2735
        %v2769 = vunpack.c.l.b16 %v2736
        %v2770 = vunpack.c.l.b16 %v2737
        %v2771 = vunpack.c.l.b16 %v2738
        %v2772 = vunpack.c.l.b16 %v2739
        %v2773 = vunpack.c.l.b16 %v2740
        %v2774 = vpack.c.b16 %v2759, %v2758
        %v2775 = vpack.c.b16 %v2761, %v2760
        %v2776 = vpack.c.b16 %v2763, %v2762
        %v2777 = vpack.c.b16 %v2765, %v2764
        %v2778 = vpack.c.b16 %v2767, %v2766
        %v2779 = vpack.c.b16 %v2769, %v2768
        %v2780 = vpack.c.b16 %v2771, %v2770
        %v2781 = vpack.c.b16 %v2773, %v2772
        %v2783 = vsel %vm619, %v2774, 0
        %v2786 = vsel %vm619, %v2775, 0
        %v2789 = vsel %vm619, %v2776, 0
        %v2792 = vsel %vm619, %v2777, 0
        %v2795 = vsel %vm619, %v2778, 0
        %v2798 = vsel %vm619, %v2779, 0
        %v2801 = vsel %vm619, %v2780, 0
        %v2804 = vsel %vm619, %v2781, 0
        %v2807 = vsel %vm728, %v2741, 0
        %2809 = vmatprep.subr.bf16.mxu0 0
        %2810 = vmatpush1.bf16.msra.mxu0 %v2807
        %2811 = vmatprep.subr.bf16.mxu0 0
        %2812 = vmatpush1.bf16.msra.mxu0 0
        %2813 = vmatprep.subr.bf16.mxu0 0
        %2814 = vmatpush1.bf16.msra.mxu0 0
        %2815 = vmatprep.subr.bf16.mxu0 0
        %2816 = vmatpush1.bf16.msra.mxu0 0
        %2817 = vmatprep.subr.bf16.mxu0 0
        %2818 = vmatpush1.bf16.msra.mxu0 0
        %2819 = vmatprep.subr.bf16.mxu0 0
        %2820 = vmatpush1.bf16.msra.mxu0 0
        %2821 = vmatprep.subr.bf16.mxu0 0
        %2822 = vmatpush1.bf16.msra.mxu0 0
        %2823 = vmatprep.subr.bf16.mxu0 0
        %2824 = vmatpush1.bf16.msra.mxu0 0
        %2825 = vmatprep.subr.bf16.mxu0 0
        %2826 = vmatpush1.bf16.msra.mxu0 0
        %2827 = vmatprep.subr.bf16.mxu0 0
        %2828 = vmatpush1.bf16.msra.mxu0 0
        %2829 = vmatprep.subr.bf16.mxu0 0
        %2830 = vmatpush1.bf16.msra.mxu0 0
        %2831 = vmatprep.subr.bf16.mxu0 0
        %2832 = vmatpush1.bf16.msra.mxu0 0
        %2833 = vmatprep.subr.bf16.mxu0 0
        %2834 = vmatpush1.bf16.msra.mxu0 0
        %2835 = vmatprep.subr.bf16.mxu0 0
        %2836 = vmatpush1.bf16.msra.mxu0 0
        %2837 = vmatprep.subr.bf16.mxu0 0
        %2838 = vmatpush1.bf16.msra.mxu0 0
        %2839 = vmatprep.subr.bf16.mxu0 0
        %2840 = vmatpush1.bf16.msra.mxu0 0
        %2841 = vmatprep.mubr.bf16.mxu0 0
        %2842 = vmatmul.mubr.bf16.gmra.mrb[0].mxu0 %v2783
        %v2843 = vpop.f32.mrb[0].mxu0
        %v2844 = vadd.f32 0.0, %v2843
        %v2845 = vpop.f32.mrb[0].mxu0
        %v2846 = vpop.f32.mrb[0].mxu0
        %v2847 = vpop.f32.mrb[0].mxu0
        %2848 = vmatprep.mubr.bf16.mxu0 0
        %2849 = vmatmul.mubr.bf16.gmra.mrb[0].mxu0 %v2786
        %v2850 = vpop.f32.mrb[0].mxu0
        %v2851 = vadd.f32 0.0, %v2850
        %v2852 = vpop.f32.mrb[0].mxu0
        %v2853 = vpop.f32.mrb[0].mxu0
        %v2854 = vpop.f32.mrb[0].mxu0
        %2855 = vmatprep.mubr.bf16.mxu0 0
        %2856 = vmatmul.mubr.bf16.gmra.mrb[0].mxu0 %v2789
        %v2857 = vpop.f32.mrb[0].mxu0
        %v2858 = vadd.f32 0.0, %v2857
        %v2859 = vpop.f32.mrb[0].mxu0
        %v2860 = vpop.f32.mrb[0].mxu0
        %v2861 = vpop.f32.mrb[0].mxu0
        %2862 = vmatprep.mubr.bf16.mxu0 0
        %2863 = vmatmul.mubr.bf16.gmra.mrb[0].mxu0 %v2792
        %v2864 = vpop.f32.mrb[0].mxu0
        %v2865 = vadd.f32 0.0, %v2864
        %v2866 = vpop.f32.mrb[0].mxu0
        %v2867 = vpop.f32.mrb[0].mxu0
        %v2868 = vpop.f32.mrb[0].mxu0
        %2869 = vmatprep.mubr.bf16.mxu0 0
        %2870 = vmatmul.mubr.bf16.gmra.mrb[0].mxu0 %v2795
        %v2871 = vpop.f32.mrb[0].mxu0
        %v2872 = vadd.f32 0.0, %v2871
        %v2873 = vpop.f32.mrb[0].mxu0
        %v2874 = vpop.f32.mrb[0].mxu0
        %v2875 = vpop.f32.mrb[0].mxu0
        %2876 = vmatprep.mubr.bf16.mxu0 0
        %2877 = vmatmul.mubr.bf16.gmra.mrb[0].mxu0 %v2798
        %v2878 = vpop.f32.mrb[0].mxu0
        %v2879 = vadd.f32 0.0, %v2878
        %v2880 = vpop.f32.mrb[0].mxu0
        %v2881 = vpop.f32.mrb[0].mxu0
        %v2882 = vpop.f32.mrb[0].mxu0
        %2883 = vmatprep.mubr.bf16.mxu0 0
        %2884 = vmatmul.mubr.bf16.gmra.mrb[0].mxu0 %v2801
        %v2885 = vpop.f32.mrb[0].mxu0
        %v2886 = vadd.f32 0.0, %v2885
        %v2887 = vpop.f32.mrb[0].mxu0
        %v2888 = vpop.f32.mrb[0].mxu0
        %v2889 = vpop.f32.mrb[0].mxu0
        %2890 = vmatprep.mubr.bf16.mxu0 0
        %2891 = vmatmul.mubr.bf16.gmra.mrb[0].mxu0 %v2804
        %v2892 = vpop.f32.mrb[0].mxu0
        %v2893 = vadd.f32 0.0, %v2892
        %v2894 = vpop.f32.mrb[0].mxu0
        %v2895 = vpop.f32.mrb[0].mxu0
        %v2896 = vpop.f32.mrb[0].mxu0
        %2897 = vdwg.mxu0
        %v2898 = vld [vmem:[%s9] sm:$0x1]
        %v2900 = vlaneseq
        %v2901 = vshrl.u32 %v2900, 7
        %v2902 = vsub.s32 0, %v2901
        %v2903 = vrot.slane %v2898, %v2902
        %v2905 = vadd.f32 %v2844, %v2903
        %v2906 = vadd.f32 %v2851, %v2903
        %v2907 = vadd.f32 %v2858, %v2903
        %v2908 = vadd.f32 %v2865, %v2903
        %v2909 = vadd.f32 %v2872, %v2903
        %v2910 = vadd.f32 %v2879, %v2903
        %v2911 = vadd.f32 %v2886, %v2903
        %v2912 = vadd.f32 %v2893, %v2903
        %v2913 = vadd.f32 %v2694, %v2905
        %v2914 = vadd.f32 %v2697, %v2906
        %v2915 = vadd.f32 %v2702, %v2907
        %v2916 = vadd.f32 %v2705, %v2908
        %v2917 = vadd.f32 %v2710, %v2909
        %v2918 = vadd.f32 %v2713, %v2910
        %v2919 = vadd.f32 %v2718, %v2911
        %v2920 = vadd.f32 %v2721, %v2912
        %v2921 = vmax.f32 %v2913, 0.0
        %v2922 = vmax.f32 %v2914, 0.0
        %v2923 = vmax.f32 %v2915, 0.0
        %v2924 = vmax.f32 %v2916, 0.0
        %v2925 = vmax.f32 %v2917, 0.0
        %v2926 = vmax.f32 %v2918, 0.0
        %v2927 = vmax.f32 %v2919, 0.0
        %v2928 = vmax.f32 %v2920, 0.0
        %vm2929 = vcmask 261120
        %2930 = vst.msk [vmem:[%s352] sm:$0xff] %vm2929, %v2921
        %2931 = vst.msk [vmem:[%s352 + $0x8] sm:$0xff] %vm2929, %v2922
        %2932 = vst.msk [vmem:[%s352 + $0x10] sm:$0xff] %vm2929, %v2923
        %2933 = vst.msk [vmem:[%s352 + $0x18] sm:$0xff] %vm2929, %v2924
        %2934 = vst.msk [vmem:[%s352 + $0x20] sm:$0xff] %vm2929, %v2925
        %2935 = vst.msk [vmem:[%s352 + $0x28] sm:$0xff] %vm2929, %v2926
        %2936 = vst.msk [vmem:[%s352 + $0x30] sm:$0xff] %vm2929, %v2927
        %2937 = vst.msk [vmem:[%s352 + $0x38] sm:$0xff] %vm2929, %v2928
        %s2938 = sand.u32 %s247, 1
        %s2939 = scalar_lea.sflag [#allocation4], %s2938
        %s2940 = sand.u32 %s247, 1
        %s2941 = smul.addr %s2940, 64
        %s2942 = scalar_lea.vmem [#allocation3], %s2941
        // Predicated region
        $region61: #{bottleneck_forward.1} parent=59 // pred_check
          %p2943 = pneg %p257
        $region62: #{bottleneck_forward.1} parent=59 // pred_check_branch
          %2945 = sbr.rel (%p2943) target = $region64
        $region63: #{bottleneck_forward.1} parent=59 // pred_region
          %s2947 = ssub.s32 1024, 1024
          %2948 = vsyncadd %s2939, %s2947
          %s2949 = smul.addr %s24, 8
          %s2950 = smul.addr %s2949, 128
          %s2951 = scalar_lea.hbm %s10, %s2950
          %s2952 = sshll.u32 %s2942, 4
          %s2953 = int_to_ptr.vmem [resolvable:$true] %s2952
          %2958 = dma.vmem_to_hbm [thread:$0]  %s2953, 1024, %s2951, %s2939, 128, 128, 8
        $region64: #{bottleneck_forward.1} parent=59 // pred_fallthru
          _
      $region60: #{bottleneck_forward.1} parent=5 // pred_fallthru
        _
      %p2959 = scmp.le.s32.totalorder 2, %s19
      // Predicated region
      $region65: #{bottleneck_forward.1} parent=5 // pred_check
        %p2960 = pneg %p2959
      $region66: #{bottleneck_forward.1} parent=5 // pred_check_branch
        %2962 = sbr.rel (%p2960) target = $region68
      $region67: #{bottleneck_forward.1} parent=5 // pred_region
        %s2963 = ssub.s32 %s19, 2
        // Predicated region
        $region69: #{bottleneck_forward.1} parent=67 // pred_check
          %p2964 = pneg %p263
        $region70: #{bottleneck_forward.1} parent=67 // pred_check_branch
          %2966 = sbr.rel (%p2964) target = $region72
        $region71: #{bottleneck_forward.1} parent=67 // pred_region
          %s2967 = sand.u32 %s248, 1
          %s2968 = scalar_lea.sflag [#allocation4], %s2967
          %s2969 = sand.u32 %s248, 1
          %s2970 = smul.addr %s2969, 64
          %s2971 = scalar_lea.vmem [#allocation3], %s2970
          %2972 = dma.done %s2968, 1024
        $region72: #{bottleneck_forward.1} parent=67 // pred_fallthru
          _
      $region68: #{bottleneck_forward.1} parent=5 // pred_fallthru
        _
    $region6: #{bottleneck_forward.1} parent=1 // loop_footer
      %s23 = sadd.s32 1, %s19
    $region7: #{bottleneck_forward.1} parent=1 // loop_footer_branch
      %18 = sbr.rel target = $region3
    $region8: #{bottleneck_forward.1} parent=1 // loop_exit
      _
    %2973 = vsyncpa [#allocation4], 1
    %s2974 = scalar_lea.sflag [#allocation4], 1
    %2975 = vsyncpa %s2974, 1

</llo_original>
